<compile_context>
chip_gen: v7x
topology: tpu7x:2x2x1
jax: 0.10.0
libtpu: 0.0.40
codegen_flags: <defaults>
</compile_context>

<pallas_src>
import numpy as np

import jax
import jax.numpy as jnp
from jax.experimental import pallas as pl
from jax.experimental.pallas import tpu as pltpu


# ---------------------------------------------------------------------------
# Model config (small): nc=3, nz=16, gf=df=8,
#   generator_features_multipliers=[2], discriminator_features_multipliers=[1,2]
#   image 16x16, batch 2.
# ---------------------------------------------------------------------------
CFG = dict(nc=3, nz=16, gf=8, df=8)
BATCH = 2


# ---------------------------------------------------------------------------
# The single fused Pallas kernel
# ---------------------------------------------------------------------------
def _dcgan_fused_kernel(
        real_ref, z_ref,
        tg0_ref, g0g_ref, g0b_ref,
        tg1_ref, g1g_ref, g1b_ref,
        glb_ref, d0b_ref, d1g_ref, d1b_ref,
        p16_ref, pt16_ref, p8_ref, pt8_ref,
        tgl_hbm, td0_hbm, td1_hbm, tdl_hbm,
        errd_ref, errg_ref,
        tgl_v, td0_v, td1_v, tdl_v, xstack_v, dma_sem):
    f32 = jnp.float32
    bf16 = jnp.bfloat16
    B = real_ref.shape[0]

    # -- Kick off the DMA of the large, late-use GEMM operators so the copies
    #    overlap the generator compute; each is waited right before first use.
    cp_gl = pltpu.make_async_copy(tgl_hbm, tgl_v, dma_sem.at[0])
    cp_d0 = pltpu.make_async_copy(td0_hbm, td0_v, dma_sem.at[1])
    cp_d1 = pltpu.make_async_copy(td1_hbm, td1_v, dma_sem.at[2])
    cp_dl = pltpu.make_async_copy(tdl_hbm, tdl_v, dma_sem.at[3])
    cp_gl.start(); cp_d0.start(); cp_d1.start(); cp_dl.start()

    def gemm(x, t_ref):
        # bf16 MXU operands, f32 accumulation.
        return jnp.dot(x.astype(bf16), t_ref[...], preferred_element_type=f32)

    def stack2(a, b):
        # a, b: (1, N)  ->  (2, N)   (avoids sublane concatenate)
        r = jax.lax.broadcasted_iota(jnp.int32, (2, a.shape[1]), 0)
        return jnp.where(r == 0, a, b)

    def stack4(a, b, c, d):
        # a..d: (1, N)  ->  (4, N)
        r = jax.lax.broadcasted_iota(jnp.int32, (4, a.shape[1]), 0)
        return jnp.where(r == 0, a,
               jnp.where(r == 1, b,
               jnp.where(r == 2, c, d)))

    def bn_single(y, p_ref, pt_ref, g_ref, b_ref, count):
        # BatchNorm2d (train mode, biased var) over all rows of y (M, C*HW).
        # Exactly 2 MXU ops: one reduce matmul, one broadcast matmul.
        inv = 1.0 / float(count)
        s1 = jnp.sum(y, axis=0, keepdims=True)                    # (1, CHW)
        s2 = jnp.sum(y * y, axis=0, keepdims=True)                # (1, CHW)
        stats = stack2(s1, s2)                                    # (2, CHW)
        sums_c = jnp.dot(stats.astype(bf16), p_ref[...],
                         preferred_element_type=f32)              # (2, C)
        mean_c = sums_c[0:1] * inv
        var_c = jnp.maximum(sums_c[1:2] * inv - mean_c * mean_c, 0.0)
        scale_c = g_ref[...] * jax.lax.rsqrt(var_c + 1e-5)        # (1, C)
        shift_c = b_ref[...] - mean_c * scale_c                   # (1, C)
        aff = stack2(scale_c, shift_c)                            # (2, C)
        full = jnp.dot(aff.astype(bf16), pt_ref[...],
                       preferred_element_type=f32)                # (2, CHW)
        return y * full[0:1] + full[1:2]

    def bn_per_half(y, p_ref, pt_ref, g_ref, b_ref, count):
        # y: (2B, C*HW); rows [0,B) (real pass) and [B,2B) (fake pass) are
        # independent BN groups, matching PyTorch's two discriminator calls.
        inv = 1.0 / float(count)
        y_r = y[0:B]
        y_f = y[B:2 * B]
        stats = stack4(jnp.sum(y_r, axis=0, keepdims=True),
                       jnp.sum(y_f, axis=0, keepdims=True),
                       jnp.sum(y_r * y_r, axis=0, keepdims=True),
                       jnp.sum(y_f * y_f, axis=0, keepdims=True))  # (4, CHW)
        sums_c = jnp.dot(stats.astype(bf16), p_ref[...],
                         preferred_element_type=f32)               # (4, C)
        mean_c = sums_c[0:2] * inv                                 # (2, C)
        var_c = jnp.maximum(sums_c[2:4] * inv - mean_c * mean_c, 0.0)
        scale_c = g_ref[...] * jax.lax.rsqrt(var_c + 1e-5)         # (2, C)
        shift_c = b_ref[...] - mean_c * scale_c                    # (2, C)
        aff = stack4(scale_c[0:1], scale_c[1:2],
                     shift_c[0:1], shift_c[1:2])                   # (4, C)
        full = jnp.dot(aff.astype(bf16), pt_ref[...],
                       preferred_element_type=f32)                 # (4, CHW)
        row = jax.lax.broadcasted_iota(jnp.int32, y.shape, 0)
        is_fake = row >= B
        scale_rows = jnp.where(is_fake, full[1:2], full[0:1])
        shift_rows = jnp.where(is_fake, full[3:4], full[2:3])
        return y * scale_rows + shift_rows

    def lrelu(y):
        return jnp.where(y > 0.0, y, 0.2 * y)

    def softplus(t):
        # numerically stable softplus, f32 all the way (v5e-safe).
        return jnp.maximum(t, 0.0) + jnp.log(1.0 + jnp.exp(-jnp.abs(t)))

    # ---- Generator ---------------------------------------------------------
    h = jnp.maximum(bn_single(gemm(z_ref[...], tg0_ref),
                              p16_ref, pt16_ref, g0g_ref, g0b_ref, B * 16),
                    0.0)                                          # (B, 256)
    h = jnp.maximum(bn_single(gemm(h, tg1_ref),
                              p8_ref, pt8_ref, g1g_ref, g1b_ref, B * 64),
                    0.0)                                          # (B, 512)
    cp_gl.wait()
    fake = jnp.tanh(gemm(h, tgl_v) + glb_ref[...])                # (B, 768)

    # ---- Discriminator, real & fake fused along the batch (M) axis ---------
    xstack_v[pl.ds(0, B), :] = real_ref[...]
    xstack_v[pl.ds(B, B), :] = fake
    x = xstack_v[...]                                             # (2B, 768)

    cp_d0.wait()
    h = lrelu(gemm(x, td0_v) + d0b_ref[...])                      # (2B, 512)
    cp_d1.wait()
    h = lrelu(bn_per_half(gemm(h, td1_v),
                          p16_ref, pt16_ref, d1g_ref, d1b_ref, B * 16))  # (2B, 256)
    cp_dl.wait()
    logits = gemm(h, tdl_v)                                       # (2B, 1)

    # ---- BCE in logit space (exact, no approx reciprocal):
    #      log D     = -softplus(-y)   -> -log D     =  softplus(-y)
    #      log(1-D)  = -softplus( y)   -> -log(1-D)  =  softplus( y)
    #      PyTorch BCELoss clamps log at -100  ==  clamp softplus at 100.
    neg_log_p = jnp.minimum(softplus(-logits), 100.0)             # (2B, 1)
    neg_log_1mp = jnp.minimum(softplus(logits), 100.0)            # (2B, 1)

    row = jax.lax.broadcasted_iota(jnp.int32, logits.shape, 0)
    real_mask = (row < B).astype(f32)
    fake_mask = 1.0 - real_mask
    inv_b = 1.0 / float(B)
    err_real = jnp.sum(neg_log_p * real_mask, axis=0, keepdims=True) * inv_b
    err_fake = jnp.sum(neg_log_1mp * fake_mask, axis=0, keepdims=True) * inv_b
    err_g = jnp.sum(neg_log_p * fake_mask, axis=0, keepdims=True) * inv_b

    errd_ref[...] = 0.5 * (err_real + err_fake)    # errD = (real + fake) / 2
    errg_ref[...] = err_g                          # errG: target 1 on fake


# ---------------------------------------------------------------------------
# Init-time preparation: raw params -> GEMM-layout operators (done ONCE)
# ---------------------------------------------------------------------------
def _conv_toeplitz(w, hin, win, stride, padding, transposed=False):
    """Dense GEMM operator T with  y.reshape(B,-1) = x.reshape(B,-1) @ T
    for NCHW tensors flattened in (c, h, w) order.  Bias not included."""
    w = jnp.asarray(w, jnp.float32)
    if transposed:
        cin, cout, kh, kw = w.shape
        hout = (hin - 1) * stride - 2 * padding + kh
        wout = (win - 1) * stride - 2 * padding + kw
    else:
        cout, cin, kh, kw = w.shape
        hout = (hin + 2 * padding - kh) // stride + 1
        wout = (win + 2 * padding - kw) // stride + 1

    rows, cols, widx = [], [], []
    for ci in range(cin):
        for co in range(cout):
            for ky in range(kh):
                for kx in range(kw):
                    if transposed:
                        flat_w = ((ci * cout + co) * kh + ky) * kw + kx
                        for hi in range(hin):
                            ho = stride * hi - padding + ky
                            if not (0 <= ho < hout):
                                continue
                            for wi in range(win):
                                wo = stride * wi - padding + kx
                                if not (0 <= wo < wout):
                                    continue
                                rows.append(ci * hin * win + hi * win + wi)
                                cols.append(co * hout * wout + ho * wout + wo)
                                widx.append(flat_w)
                    else:
                        flat_w = ((co * cin + ci) * kh + ky) * kw + kx
                        for ho in range(hout):
                            hi = stride * ho - padding + ky
                            if not (0 <= hi < hin):
                                continue
                            for wo in range(wout):
                                wi = stride * wo - padding + kx
                                if not (0 <= wi < win):
                                    continue
                                rows.append(ci * hin * win + hi * win + wi)
                                cols.append(co * hout * wout + ho * wout + wo)
                                widx.append(flat_w)

    vals = w.reshape(-1)[np.asarray(widx, np.int32)]
    t = jnp.zeros((cin * hin * win, cout * hout * wout), jnp.float32)
    t = t.at[np.asarray(rows, np.int32), np.asarray(cols, np.int32)].add(vals)
    return t


def _pool_mats(c, hw):
    m = np.kron(np.eye(c, dtype=np.float32), np.ones((hw, 1), np.float32))
    return jnp.asarray(m), jnp.asarray(m.T)          # (c*hw, c), (c, c*hw)


def prepare_gemm_operands(params):
    """Precompute all GEMM-layout weights / BN operands once at init."""
    bf16 = jnp.bfloat16
    f32 = jnp.float32

    t_g0 = _conv_toeplitz(params["g0_w"], 1, 1, 1, 0, transposed=True)    # (16, 256)
    t_g1 = _conv_toeplitz(params["g1_w"], 4, 4, 2, 1, transposed=True)    # (256, 512)
    t_gl = _conv_toeplitz(params["gl_w"], 8, 8, 2, 1, transposed=True)    # (512, 768)
    t_d0 = _conv_toeplitz(params["d0_w"], 16, 16, 2, 1)                   # (768, 512)
    t_d1 = _conv_toeplitz(params["d1_w"], 8, 8, 2, 1)                     # (512, 256)
    t_dl = _conv_toeplitz(params["dl_w"], 4, 4, 1, 0)                     # (256, 1)

    p16, pt16 = _pool_mats(16, 16)   # BN pooling for C=16, HW=16 (g0, d1)
    p8, pt8 = _pool_mats(8, 64)      # BN pooling for C=8,  HW=64 (g1)

    def row(v):                      # (C,) -> (1, C) f32
        return jnp.asarray(v, f32)[None, :]

    def bias_full(v, hw):            # per-channel bias expanded to lanes
        return jnp.repeat(jnp.asarray(v, f32), hw)[None, :]

    return (
        # resident-in-VMEM operands (early use / tiny)
        t_g0.astype(bf16), row(params["g0_gamma"]), row(params["g0_beta"]),
        t_g1.astype(bf16), row(params["g1_gamma"]), row(params["g1_beta"]),
        bias_full(params["gl_b"], 256),
        bias_full(params["d0_b"], 64),
        row(params["d1_gamma"]), row(params["d1_beta"]),
        p16.astype(bf16), pt16.astype(bf16), p8.astype(bf16), pt8.astype(bf16),
        # large late-use operators: stay in HBM, prefetched inside the kernel
        t_gl.astype(bf16), t_d0.astype(bf16), t_d1.astype(bf16), t_dl.astype(bf16),
    )


# ---------------------------------------------------------------------------
# Parameter init (weights_init: Conv ~ N(0, .02), BN weight ~ N(1, .02), BN bias 0)
# ---------------------------------------------------------------------------
def init_params(key):
    nc, nz, gf, df = CFG["nc"], CFG["nz"], CFG["gf"], CFG["df"]
    ks = jax.random.split(key, 9)

    def nrm(k, shape, mean=0.0, std=0.02):
        return mean + std * jax.random.normal(k, shape, jnp.float32)

    return {
        # Generator: ConvT(nz, gf*2, 4,1,0) + BN + ReLU
        "g0_w": nrm(ks[0], (nz, gf * 2, 4, 4)),
        "g0_gamma": nrm(ks[1], (gf * 2,), mean=1.0),
        "g0_beta": jnp.zeros((gf * 2,), jnp.float32),
        # ConvT(gf*2, gf, 4,2,1) + BN + ReLU
        "g1_w": nrm(ks[2], (gf * 2, gf, 4, 4)),
        "g1_gamma": nrm(ks[3], (gf,), mean=1.0),
        "g1_beta": jnp.zeros((gf,), jnp.float32),
        # ConvT(gf, nc, 4,2,1, bias=True) + Tanh
        "gl_w": nrm(ks[4], (gf, nc, 4, 4)),
        "gl_b": jnp.zeros((nc,), jnp.float32),   # bias untouched by weights_init
        # Discriminator: Conv(nc, df, 4,2,1, bias=True) + LeakyReLU
        "d0_w": nrm(ks[5], (df, nc, 4, 4)),
        "d0_b": jnp.zeros((df,), jnp.float32),
        # Conv(df, df*2, 4,2,1, bias=False) + BN + LeakyReLU
        "d1_w": nrm(ks[6], (df * 2, df, 4, 4)),
        "d1_gamma": nrm(ks[7], (df * 2,), mean=1.0),
        "d1_beta": jnp.zeros((df * 2,), jnp.float32),
        # Conv(df*2, 1, 4,1,0, bias=False) + Sigmoid
        "dl_w": nrm(ks[8], (1, df * 2, 4, 4)),
    }


# ---------------------------------------------------------------------------
# Fused forward: DCGAN.forward(x) loss computation -> (errD, errG)
# ---------------------------------------------------------------------------
def dcgan_forward(prep, x_nchw, z):
    B = x_nchw.shape[0]
    real2d = x_nchw.reshape(B, -1).astype(jnp.float32)  # NCHW flatten == (c,h,w) cols
    z2d = z.reshape(B, -1).astype(jnp.float32)
    args = (real2d, z2d) + tuple(prep)

    n_hbm = 4   # t_gl, t_d0, t_d1, t_dl stay in HBM; DMA'd inside the kernel
    in_specs = (
        [pl.BlockSpec(memory_space=pltpu.MemorySpace.VMEM)
         for _ in range(len(args) - n_hbm)]
        + [pl.BlockSpec(memory_space=pl.ANY) for _ in range(n_hbm)])
    out_specs = (pl.BlockSpec(memory_space=pltpu.MemorySpace.VMEM),
                 pl.BlockSpec(memory_space=pltpu.MemorySpace.VMEM))
    out_shape = (jax.ShapeDtypeStruct((1, 1), jnp.float32),
                 jax.ShapeDtypeStruct((1, 1), jnp.float32))

    t_gl, t_d0, t_d1, t_dl = prep[-4], prep[-3], prep[-2], prep[-1]
    scratch_shapes = [
        pltpu.VMEM(t_gl.shape, t_gl.dtype),               # prefetched t_gl
        pltpu.VMEM(t_d0.shape, t_d0.dtype),               # prefetched t_d0
        pltpu.VMEM(t_d1.shape, t_d1.dtype),               # prefetched t_d1
        pltpu.VMEM(t_dl.shape, t_dl.dtype),               # prefetched t_dl
        pltpu.VMEM((2 * B, real2d.shape[1]), jnp.float32),  # stacked real|fake
        pltpu.SemaphoreType.DMA((4,)),
    ]

    errd, errg = pl.pallas_call(
        _dcgan_fused_kernel,
        out_shape=out_shape,
        in_specs=in_specs,
        out_specs=out_specs,
        scratch_shapes=scratch_shapes,
    )(*args)

    # TODO(synk): .backward(), Adam optimizer.step(), BN running-stat updates,
    # and the historical-averaging / feature-matching branches are training-side
    # effects with no forward-kernel equivalent; only the default forward/loss
    # path is reproduced (errG uses the pre-update discriminator weights).
    return errd[0, 0], errg[0, 0]


if __name__ == "__main__":
    key = jax.random.PRNGKey(0)
    k_param, k_data, k_z = jax.random.split(key, 3)

    params = init_params(k_param)
    prep = prepare_gemm_operands(params)      # GEMM-layout weights built once

    B = BATCH
    x = jax.random.normal(k_data, (B, CFG["nc"], 16, 16), jnp.float32)  # NCHW real images
    z = jax.random.normal(k_z, (B, CFG["nz"]), jnp.float32)             # latent vectors

    fwd = jax.jit(dcgan_forward)
    errD, errG = fwd(prep, x, z)
    jax.block_until_ready((errD, errG))
    assert jnp.isfinite(errD) and jnp.isfinite(errG)
    print("KERNEL_OK")
</pallas_src>

<mosaic_0001>
module attributes {stable_mosaic.version = 11 : i64} {
  func.func @_dcgan_fused_kernel(%arg0: memref<2x768xf32, #tpu.memory_space<vmem>>, %arg1: memref<2x16xf32, #tpu.memory_space<vmem>>, %arg2: memref<16x256xbf16, #tpu.memory_space<vmem>>, %arg3: memref<1x16xf32, #tpu.memory_space<vmem>>, %arg4: memref<1x16xf32, #tpu.memory_space<vmem>>, %arg5: memref<256x512xbf16, #tpu.memory_space<vmem>>, %arg6: memref<1x8xf32, #tpu.memory_space<vmem>>, %arg7: memref<1x8xf32, #tpu.memory_space<vmem>>, %arg8: memref<1x768xf32, #tpu.memory_space<vmem>>, %arg9: memref<1x512xf32, #tpu.memory_space<vmem>>, %arg10: memref<1x16xf32, #tpu.memory_space<vmem>>, %arg11: memref<1x16xf32, #tpu.memory_space<vmem>>, %arg12: memref<256x16xbf16, #tpu.memory_space<vmem>>, %arg13: memref<16x256xbf16, #tpu.memory_space<vmem>>, %arg14: memref<512x8xbf16, #tpu.memory_space<vmem>>, %arg15: memref<8x512xbf16, #tpu.memory_space<vmem>>, %arg16: memref<512x768xbf16, #tpu.memory_space<any>>, %arg17: memref<768x512xbf16, #tpu.memory_space<any>>, %arg18: memref<512x256xbf16, #tpu.memory_space<any>>, %arg19: memref<256x1xbf16, #tpu.memory_space<any>>, %arg20: memref<1x1xf32, #tpu.memory_space<vmem>>, %arg21: memref<1x1xf32, #tpu.memory_space<vmem>>, %arg22: memref<512x768xbf16, #tpu.memory_space<vmem>>, %arg23: memref<768x512xbf16, #tpu.memory_space<vmem>>, %arg24: memref<512x256xbf16, #tpu.memory_space<vmem>>, %arg25: memref<256x1xbf16, #tpu.memory_space<vmem>>, %arg26: memref<4x768xf32, #tpu.memory_space<vmem>>, %arg27: memref<4x!tpu.dma_semaphore, #tpu.memory_space<semaphore_mem>>) attributes {dimension_semantics = [], scalar_prefetch = 0 : i64, scratch_operands = 6 : i64, tpu.core_type = #tpu.core_type<tc>} {
    %c0_i32 = arith.constant 0 : i32
    %0 = tpu.memref_slice %arg27[%c0_i32] : memref<4x!tpu.dma_semaphore, #tpu.memory_space<semaphore_mem>> -> memref<1x!tpu.dma_semaphore, #tpu.memory_space<semaphore_mem>>
    %1 = tpu.memref_squeeze %0 : memref<1x!tpu.dma_semaphore, #tpu.memory_space<semaphore_mem>> -> memref<!tpu.dma_semaphore, #tpu.memory_space<semaphore_mem>>
    tpu.enqueue_dma source(%arg16 : memref<512x768xbf16, #tpu.memory_space<any>>) target(%arg22 : memref<512x768xbf16, #tpu.memory_space<vmem>>) target_semaphore(%1 : memref<!tpu.dma_semaphore, #tpu.memory_space<semaphore_mem>>)
    %c1_i32 = arith.constant 1 : i32
    %2 = tpu.memref_slice %arg27[%c1_i32] : memref<4x!tpu.dma_semaphore, #tpu.memory_space<semaphore_mem>> -> memref<1x!tpu.dma_semaphore, #tpu.memory_space<semaphore_mem>>
    %3 = tpu.memref_squeeze %2 : memref<1x!tpu.dma_semaphore, #tpu.memory_space<semaphore_mem>> -> memref<!tpu.dma_semaphore, #tpu.memory_space<semaphore_mem>>
    tpu.enqueue_dma source(%arg17 : memref<768x512xbf16, #tpu.memory_space<any>>) target(%arg23 : memref<768x512xbf16, #tpu.memory_space<vmem>>) target_semaphore(%3 : memref<!tpu.dma_semaphore, #tpu.memory_space<semaphore_mem>>)
    %c2_i32 = arith.constant 2 : i32
    %4 = tpu.memref_slice %arg27[%c2_i32] : memref<4x!tpu.dma_semaphore, #tpu.memory_space<semaphore_mem>> -> memref<1x!tpu.dma_semaphore, #tpu.memory_space<semaphore_mem>>
    %5 = tpu.memref_squeeze %4 : memref<1x!tpu.dma_semaphore, #tpu.memory_space<semaphore_mem>> -> memref<!tpu.dma_semaphore, #tpu.memory_space<semaphore_mem>>
    tpu.enqueue_dma source(%arg18 : memref<512x256xbf16, #tpu.memory_space<any>>) target(%arg24 : memref<512x256xbf16, #tpu.memory_space<vmem>>) target_semaphore(%5 : memref<!tpu.dma_semaphore, #tpu.memory_space<semaphore_mem>>)
    %c3_i32 = arith.constant 3 : i32
    %6 = tpu.memref_slice %arg27[%c3_i32] : memref<4x!tpu.dma_semaphore, #tpu.memory_space<semaphore_mem>> -> memref<1x!tpu.dma_semaphore, #tpu.memory_space<semaphore_mem>>
    %7 = tpu.memref_squeeze %6 : memref<1x!tpu.dma_semaphore, #tpu.memory_space<semaphore_mem>> -> memref<!tpu.dma_semaphore, #tpu.memory_space<semaphore_mem>>
    tpu.enqueue_dma source(%arg19 : memref<256x1xbf16, #tpu.memory_space<any>>) target(%arg25 : memref<256x1xbf16, #tpu.memory_space<vmem>>) target_semaphore(%7 : memref<!tpu.dma_semaphore, #tpu.memory_space<semaphore_mem>>)
    %c0 = arith.constant 0 : index
    %c0_0 = arith.constant 0 : index
    %8 = vector.load %arg1[%c0, %c0_0] : memref<2x16xf32, #tpu.memory_space<vmem>>, vector<2x16xf32>
    %9 = arith.truncf %8 : vector<2x16xf32> to vector<2x16xbf16>
    %c0_1 = arith.constant 0 : index
    %c0_2 = arith.constant 0 : index
    %10 = vector.load %arg2[%c0_1, %c0_2] : memref<16x256xbf16, #tpu.memory_space<vmem>>, vector<16x256xbf16>
    %cst = arith.constant dense<0.000000e+00> : vector<2x256xf32>
    %11 = tpu.matmul %9, %10, %cst {dimension_numbers = #tpu.dot_dimension_numbers<[1], [0], [0], [1], [0, 0, 1, 1], [], []>} : vector<2x16xbf16>, vector<16x256xbf16>, vector<2x256xf32> -> vector<2x256xf32>
    %cst_3 = arith.constant dense<0.000000e+00> : vector<256xf32>
    %12 = vector.multi_reduction <add>, %11, %cst_3 [0] : vector<2x256xf32> to vector<256xf32>
    %13 = vector.shape_cast %12 : vector<256xf32> to vector<1x256xf32>
    %14 = arith.mulf %11, %11 : vector<2x256xf32>
    %cst_4 = arith.constant dense<0.000000e+00> : vector<256xf32>
    %15 = vector.multi_reduction <add>, %14, %cst_4 [0] : vector<2x256xf32> to vector<256xf32>
    %16 = vector.shape_cast %15 : vector<256xf32> to vector<1x256xf32>
    %17 = tpu.iota {dimensions = array<i32: 0>} : vector<2x256xi32>
    %c0_i32_5 = arith.constant 0 : i32
    %18 = vector.broadcast %c0_i32_5 : i32 to vector<2x256xi32>
    %19 = arith.cmpi eq, %17, %18 : vector<2x256xi32>
    %20 = vector.shape_cast %13 : vector<1x256xf32> to vector<1x256xf32>
    %21 = vector.broadcast %20 : vector<1x256xf32> to vector<2x256xf32>
    %22 = vector.shape_cast %16 : vector<1x256xf32> to vector<1x256xf32>
    %23 = vector.broadcast %22 : vector<1x256xf32> to vector<2x256xf32>
    %24 = arith.select %19, %21, %23 : vector<2x256xi1>, vector<2x256xf32>
    %25 = arith.truncf %24 : vector<2x256xf32> to vector<2x256xbf16>
    %c0_6 = arith.constant 0 : index
    %c0_7 = arith.constant 0 : index
    %26 = vector.load %arg12[%c0_6, %c0_7] : memref<256x16xbf16, #tpu.memory_space<vmem>>, vector<256x16xbf16>
    %cst_8 = arith.constant dense<0.000000e+00> : vector<2x16xf32>
    %27 = tpu.matmul %25, %26, %cst_8 {dimension_numbers = #tpu.dot_dimension_numbers<[1], [0], [0], [1], [0, 0, 1, 1], [], []>} : vector<2x256xbf16>, vector<256x16xbf16>, vector<2x16xf32> -> vector<2x16xf32>
    %28 = vector.extract_strided_slice %27 {offsets = [0, 0], sizes = [1, 16], strides = [1, 1]} : vector<2x16xf32> to vector<1x16xf32>
    %cst_9 = arith.constant 3.125000e-02 : f32
    %29 = vector.broadcast %cst_9 : f32 to vector<1x16xf32>
    %30 = arith.mulf %28, %29 : vector<1x16xf32>
    %31 = vector.extract_strided_slice %27 {offsets = [1, 0], sizes = [1, 16], strides = [1, 1]} : vector<2x16xf32> to vector<1x16xf32>
    %cst_10 = arith.constant 3.125000e-02 : f32
    %32 = vector.broadcast %cst_10 : f32 to vector<1x16xf32>
    %33 = arith.mulf %31, %32 : vector<1x16xf32>
    %34 = arith.mulf %30, %30 : vector<1x16xf32>
    %35 = arith.subf %33, %34 : vector<1x16xf32>
    %cst_11 = arith.constant 0.000000e+00 : f32
    %36 = vector.broadcast %cst_11 : f32 to vector<1x16xf32>
    %37 = arith.maximumf %35, %36 : vector<1x16xf32>
    %c0_12 = arith.constant 0 : index
    %c0_13 = arith.constant 0 : index
    %38 = vector.load %arg3[%c0_12, %c0_13] : memref<1x16xf32, #tpu.memory_space<vmem>>, vector<1x16xf32>
    %cst_14 = arith.constant 9.99999974E-6 : f32
    %39 = vector.broadcast %cst_14 : f32 to vector<1x16xf32>
    %40 = arith.addf %37, %39 : vector<1x16xf32>
    %41 = math.rsqrt %40 : vector<1x16xf32>
    %42 = arith.mulf %38, %41 : vector<1x16xf32>
    %c0_15 = arith.constant 0 : index
    %c0_16 = arith.constant 0 : index
    %43 = vector.load %arg4[%c0_15, %c0_16] : memref<1x16xf32, #tpu.memory_space<vmem>>, vector<1x16xf32>
    %44 = arith.mulf %30, %42 : vector<1x16xf32>
    %45 = arith.subf %43, %44 : vector<1x16xf32>
    %46 = tpu.iota {dimensions = array<i32: 0>} : vector<2x16xi32>
    %c0_i32_17 = arith.constant 0 : i32
    %47 = vector.broadcast %c0_i32_17 : i32 to vector<2x16xi32>
    %48 = arith.cmpi eq, %46, %47 : vector<2x16xi32>
    %49 = vector.shape_cast %42 : vector<1x16xf32> to vector<1x16xf32>
    %50 = vector.broadcast %49 : vector<1x16xf32> to vector<2x16xf32>
    %51 = vector.shape_cast %45 : vector<1x16xf32> to vector<1x16xf32>
    %52 = vector.broadcast %51 : vector<1x16xf32> to vector<2x16xf32>
    %53 = arith.select %48, %50, %52 : vector<2x16xi1>, vector<2x16xf32>
    %54 = arith.truncf %53 : vector<2x16xf32> to vector<2x16xbf16>
    %c0_18 = arith.constant 0 : index
    %c0_19 = arith.constant 0 : index
    %55 = vector.load %arg13[%c0_18, %c0_19] : memref<16x256xbf16, #tpu.memory_space<vmem>>, vector<16x256xbf16>
    %cst_20 = arith.constant dense<0.000000e+00> : vector<2x256xf32>
    %56 = tpu.matmul %54, %55, %cst_20 {dimension_numbers = #tpu.dot_dimension_numbers<[1], [0], [0], [1], [0, 0, 1, 1], [], []>} : vector<2x16xbf16>, vector<16x256xbf16>, vector<2x256xf32> -> vector<2x256xf32>
    %57 = vector.extract_strided_slice %56 {offsets = [0, 0], sizes = [1, 256], strides = [1, 1]} : vector<2x256xf32> to vector<1x256xf32>
    %58 = vector.broadcast %57 : vector<1x256xf32> to vector<2x256xf32>
    %59 = arith.mulf %11, %58 : vector<2x256xf32>
    %60 = vector.extract_strided_slice %56 {offsets = [1, 0], sizes = [1, 256], strides = [1, 1]} : vector<2x256xf32> to vector<1x256xf32>
    %61 = vector.broadcast %60 : vector<1x256xf32> to vector<2x256xf32>
    %62 = arith.addf %59, %61 : vector<2x256xf32>
    %cst_21 = arith.constant 0.000000e+00 : f32
    %63 = vector.broadcast %cst_21 : f32 to vector<2x256xf32>
    %64 = arith.maximumf %62, %63 : vector<2x256xf32>
    %65 = arith.truncf %64 : vector<2x256xf32> to vector<2x256xbf16>
    %c0_22 = arith.constant 0 : index
    %c0_23 = arith.constant 0 : index
    %66 = vector.load %arg5[%c0_22, %c0_23] : memref<256x512xbf16, #tpu.memory_space<vmem>>, vector<256x512xbf16>
    %cst_24 = arith.constant dense<0.000000e+00> : vector<2x512xf32>
    %67 = tpu.matmul %65, %66, %cst_24 {dimension_numbers = #tpu.dot_dimension_numbers<[1], [0], [0], [1], [0, 0, 1, 1], [], []>} : vector<2x256xbf16>, vector<256x512xbf16>, vector<2x512xf32> -> vector<2x512xf32>
    %cst_25 = arith.constant dense<0.000000e+00> : vector<512xf32>
    %68 = vector.multi_reduction <add>, %67, %cst_25 [0] : vector<2x512xf32> to vector<512xf32>
    %69 = vector.shape_cast %68 : vector<512xf32> to vector<1x512xf32>
    %70 = arith.mulf %67, %67 : vector<2x512xf32>
    %cst_26 = arith.constant dense<0.000000e+00> : vector<512xf32>
    %71 = vector.multi_reduction <add>, %70, %cst_26 [0] : vector<2x512xf32> to vector<512xf32>
    %72 = vector.shape_cast %71 : vector<512xf32> to vector<1x512xf32>
    %73 = tpu.iota {dimensions = array<i32: 0>} : vector<2x512xi32>
    %c0_i32_27 = arith.constant 0 : i32
    %74 = vector.broadcast %c0_i32_27 : i32 to vector<2x512xi32>
    %75 = arith.cmpi eq, %73, %74 : vector<2x512xi32>
    %76 = vector.shape_cast %69 : vector<1x512xf32> to vector<1x512xf32>
    %77 = vector.broadcast %76 : vector<1x512xf32> to vector<2x512xf32>
    %78 = vector.shape_cast %72 : vector<1x512xf32> to vector<1x512xf32>
    %79 = vector.broadcast %78 : vector<1x512xf32> to vector<2x512xf32>
    %80 = arith.select %75, %77, %79 : vector<2x512xi1>, vector<2x512xf32>
    %81 = arith.truncf %80 : vector<2x512xf32> to vector<2x512xbf16>
    %c0_28 = arith.constant 0 : index
    %c0_29 = arith.constant 0 : index
    %82 = vector.load %arg14[%c0_28, %c0_29] : memref<512x8xbf16, #tpu.memory_space<vmem>>, vector<512x8xbf16>
    %cst_30 = arith.constant dense<0.000000e+00> : vector<2x8xf32>
    %83 = tpu.matmul %81, %82, %cst_30 {dimension_numbers = #tpu.dot_dimension_numbers<[1], [0], [0], [1], [0, 0, 1, 1], [], []>} : vector<2x512xbf16>, vector<512x8xbf16>, vector<2x8xf32> -> vector<2x8xf32>
    %84 = vector.extract_strided_slice %83 {offsets = [0, 0], sizes = [1, 8], strides = [1, 1]} : vector<2x8xf32> to vector<1x8xf32>
    %cst_31 = arith.constant 7.812500e-03 : f32
    %85 = vector.broadcast %cst_31 : f32 to vector<1x8xf32>
    %86 = arith.mulf %84, %85 : vector<1x8xf32>
    %87 = vector.extract_strided_slice %83 {offsets = [1, 0], sizes = [1, 8], strides = [1, 1]} : vector<2x8xf32> to vector<1x8xf32>
    %cst_32 = arith.constant 7.812500e-03 : f32
    %88 = vector.broadcast %cst_32 : f32 to vector<1x8xf32>
    %89 = arith.mulf %87, %88 : vector<1x8xf32>
    %90 = arith.mulf %86, %86 : vector<1x8xf32>
    %91 = arith.subf %89, %90 : vector<1x8xf32>
    %cst_33 = arith.constant 0.000000e+00 : f32
    %92 = vector.broadcast %cst_33 : f32 to vector<1x8xf32>
    %93 = arith.maximumf %91, %92 : vector<1x8xf32>
    %c0_34 = arith.constant 0 : index
    %c0_35 = arith.constant 0 : index
    %94 = vector.load %arg6[%c0_34, %c0_35] : memref<1x8xf32, #tpu.memory_space<vmem>>, vector<1x8xf32>
    %cst_36 = arith.constant 9.99999974E-6 : f32
    %95 = vector.broadcast %cst_36 : f32 to vector<1x8xf32>
    %96 = arith.addf %93, %95 : vector<1x8xf32>
    %97 = math.rsqrt %96 : vector<1x8xf32>
    %98 = arith.mulf %94, %97 : vector<1x8xf32>
    %c0_37 = arith.constant 0 : index
    %c0_38 = arith.constant 0 : index
    %99 = vector.load %arg7[%c0_37, %c0_38] : memref<1x8xf32, #tpu.memory_space<vmem>>, vector<1x8xf32>
    %100 = arith.mulf %86, %98 : vector<1x8xf32>
    %101 = arith.subf %99, %100 : vector<1x8xf32>
    %102 = tpu.iota {dimensions = array<i32: 0>} : vector<2x8xi32>
    %c0_i32_39 = arith.constant 0 : i32
    %103 = vector.broadcast %c0_i32_39 : i32 to vector<2x8xi32>
    %104 = arith.cmpi eq, %102, %103 : vector<2x8xi32>
    %105 = vector.shape_cast %98 : vector<1x8xf32> to vector<1x8xf32>
    %106 = vector.broadcast %105 : vector<1x8xf32> to vector<2x8xf32>
    %107 = vector.shape_cast %101 : vector<1x8xf32> to vector<1x8xf32>
    %108 = vector.broadcast %107 : vector<1x8xf32> to vector<2x8xf32>
    %109 = arith.select %104, %106, %108 : vector<2x8xi1>, vector<2x8xf32>
    %110 = arith.truncf %109 : vector<2x8xf32> to vector<2x8xbf16>
    %c0_40 = arith.constant 0 : index
    %c0_41 = arith.constant 0 : index
    %111 = vector.load %arg15[%c0_40, %c0_41] : memref<8x512xbf16, #tpu.memory_space<vmem>>, vector<8x512xbf16>
    %cst_42 = arith.constant dense<0.000000e+00> : vector<2x512xf32>
    %112 = tpu.matmul %110, %111, %cst_42 {dimension_numbers = #tpu.dot_dimension_numbers<[1], [0], [0], [1], [0, 0, 1, 1], [], []>} : vector<2x8xbf16>, vector<8x512xbf16>, vector<2x512xf32> -> vector<2x512xf32>
    %113 = vector.extract_strided_slice %112 {offsets = [0, 0], sizes = [1, 512], strides = [1, 1]} : vector<2x512xf32> to vector<1x512xf32>
    %114 = vector.broadcast %113 : vector<1x512xf32> to vector<2x512xf32>
    %115 = arith.mulf %67, %114 : vector<2x512xf32>
    %116 = vector.extract_strided_slice %112 {offsets = [1, 0], sizes = [1, 512], strides = [1, 1]} : vector<2x512xf32> to vector<1x512xf32>
    %117 = vector.broadcast %116 : vector<1x512xf32> to vector<2x512xf32>
    %118 = arith.addf %115, %117 : vector<2x512xf32>
    %cst_43 = arith.constant 0.000000e+00 : f32
    %119 = vector.broadcast %cst_43 : f32 to vector<2x512xf32>
    %120 = arith.maximumf %118, %119 : vector<2x512xf32>
    %c0_i32_44 = arith.constant 0 : i32
    %121 = tpu.memref_slice %arg27[%c0_i32_44] : memref<4x!tpu.dma_semaphore, #tpu.memory_space<semaphore_mem>> -> memref<1x!tpu.dma_semaphore, #tpu.memory_space<semaphore_mem>>
    %122 = tpu.memref_squeeze %121 : memref<1x!tpu.dma_semaphore, #tpu.memory_space<semaphore_mem>> -> memref<!tpu.dma_semaphore, #tpu.memory_space<semaphore_mem>>
    tpu.wait_dma2 semaphore(%122 : memref<!tpu.dma_semaphore, #tpu.memory_space<semaphore_mem>>) src(%arg16 : memref<512x768xbf16, #tpu.memory_space<any>>) dst(%arg22 : memref<512x768xbf16, #tpu.memory_space<vmem>>)
    %123 = arith.truncf %120 : vector<2x512xf32> to vector<2x512xbf16>
    %c0_45 = arith.constant 0 : index
    %c0_46 = arith.constant 0 : index
    %124 = vector.load %arg22[%c0_45, %c0_46] : memref<512x768xbf16, #tpu.memory_space<vmem>>, vector<512x768xbf16>
    %cst_47 = arith.constant dense<0.000000e+00> : vector<2x768xf32>
    %125 = tpu.matmul %123, %124, %cst_47 {dimension_numbers = #tpu.dot_dimension_numbers<[1], [0], [0], [1], [0, 0, 1, 1], [], []>} : vector<2x512xbf16>, vector<512x768xbf16>, vector<2x768xf32> -> vector<2x768xf32>
    %c0_48 = arith.constant 0 : index
    %c0_49 = arith.constant 0 : index
    %126 = vector.load %arg8[%c0_48, %c0_49] : memref<1x768xf32, #tpu.memory_space<vmem>>, vector<1x768xf32>
    %127 = vector.broadcast %126 : vector<1x768xf32> to vector<2x768xf32>
    %128 = arith.addf %125, %127 : vector<2x768xf32>
    %129 = math.tanh %128 : vector<2x768xf32>
    %c0_50 = arith.constant 0 : index
    %c0_51 = arith.constant 0 : index
    %130 = vector.load %arg0[%c0_50, %c0_51] : memref<2x768xf32, #tpu.memory_space<vmem>>, vector<2x768xf32>
    %c0_52 = arith.constant 0 : index
    %c0_53 = arith.constant 0 : index
    %131 = vector.load %arg26[%c0_52, %c0_53] : memref<4x768xf32, #tpu.memory_space<vmem>>, vector<2x768xf32>
    tpu.vector_store %arg26[%c0_52, %c0_53], %130 {strides = array<i32>} : memref<4x768xf32, #tpu.memory_space<vmem>>, vector<2x768xf32>,
    %c2 = arith.constant 2 : index
    %c0_54 = arith.constant 0 : index
    %132 = vector.load %arg26[%c2, %c0_54] : memref<4x768xf32, #tpu.memory_space<vmem>>, vector<2x768xf32>
    tpu.vector_store %arg26[%c2, %c0_54], %129 {strides = array<i32>} : memref<4x768xf32, #tpu.memory_space<vmem>>, vector<2x768xf32>,
    %c0_55 = arith.constant 0 : index
    %c0_56 = arith.constant 0 : index
    %133 = vector.load %arg26[%c0_55, %c0_56] : memref<4x768xf32, #tpu.memory_space<vmem>>, vector<4x768xf32>
    %c1_i32_57 = arith.constant 1 : i32
    %134 = tpu.memref_slice %arg27[%c1_i32_57] : memref<4x!tpu.dma_semaphore, #tpu.memory_space<semaphore_mem>> -> memref<1x!tpu.dma_semaphore, #tpu.memory_space<semaphore_mem>>
    %135 = tpu.memref_squeeze %134 : memref<1x!tpu.dma_semaphore, #tpu.memory_space<semaphore_mem>> -> memref<!tpu.dma_semaphore, #tpu.memory_space<semaphore_mem>>
    tpu.wait_dma2 semaphore(%135 : memref<!tpu.dma_semaphore, #tpu.memory_space<semaphore_mem>>) src(%arg17 : memref<768x512xbf16, #tpu.memory_space<any>>) dst(%arg23 : memref<768x512xbf16, #tpu.memory_space<vmem>>)
    %136 = arith.truncf %133 : vector<4x768xf32> to vector<4x768xbf16>
    %c0_58 = arith.constant 0 : index
    %c0_59 = arith.constant 0 : index
    %137 = vector.load %arg23[%c0_58, %c0_59] : memref<768x512xbf16, #tpu.memory_space<vmem>>, vector<768x512xbf16>
    %cst_60 = arith.constant dense<0.000000e+00> : vector<4x512xf32>
    %138 = tpu.matmul %136, %137, %cst_60 {dimension_numbers = #tpu.dot_dimension_numbers<[1], [0], [0], [1], [0, 0, 1, 1], [], []>} : vector<4x768xbf16>, vector<768x512xbf16>, vector<4x512xf32> -> vector<4x512xf32>
    %c0_61 = arith.constant 0 : index
    %c0_62 = arith.constant 0 : index
    %139 = vector.load %arg9[%c0_61, %c0_62] : memref<1x512xf32, #tpu.memory_space<vmem>>, vector<1x512xf32>
    %140 = vector.broadcast %139 : vector<1x512xf32> to vector<4x512xf32>
    %141 = arith.addf %138, %140 : vector<4x512xf32>
    %cst_63 = arith.constant 0.000000e+00 : f32
    %142 = vector.broadcast %cst_63 : f32 to vector<4x512xf32>
    %143 = arith.cmpf ogt, %141, %142 : vector<4x512xf32>
    %cst_64 = arith.constant 2.000000e-01 : f32
    %144 = vector.broadcast %cst_64 : f32 to vector<4x512xf32>
    %145 = arith.mulf %144, %141 : vector<4x512xf32>
    %146 = arith.select %143, %141, %145 : vector<4x512xi1>, vector<4x512xf32>
    %c2_i32_65 = arith.constant 2 : i32
    %147 = tpu.memref_slice %arg27[%c2_i32_65] : memref<4x!tpu.dma_semaphore, #tpu.memory_space<semaphore_mem>> -> memref<1x!tpu.dma_semaphore, #tpu.memory_space<semaphore_mem>>
    %148 = tpu.memref_squeeze %147 : memref<1x!tpu.dma_semaphore, #tpu.memory_space<semaphore_mem>> -> memref<!tpu.dma_semaphore, #tpu.memory_space<semaphore_mem>>
    tpu.wait_dma2 semaphore(%148 : memref<!tpu.dma_semaphore, #tpu.memory_space<semaphore_mem>>) src(%arg18 : memref<512x256xbf16, #tpu.memory_space<any>>) dst(%arg24 : memref<512x256xbf16, #tpu.memory_space<vmem>>)
    %149 = arith.truncf %146 : vector<4x512xf32> to vector<4x512xbf16>
    %c0_66 = arith.constant 0 : index
    %c0_67 = arith.constant 0 : index
    %150 = vector.load %arg24[%c0_66, %c0_67] : memref<512x256xbf16, #tpu.memory_space<vmem>>, vector<512x256xbf16>
    %cst_68 = arith.constant dense<0.000000e+00> : vector<4x256xf32>
    %151 = tpu.matmul %149, %150, %cst_68 {dimension_numbers = #tpu.dot_dimension_numbers<[1], [0], [0], [1], [0, 0, 1, 1], [], []>} : vector<4x512xbf16>, vector<512x256xbf16>, vector<4x256xf32> -> vector<4x256xf32>
    %152 = vector.extract_strided_slice %151 {offsets = [0, 0], sizes = [2, 256], strides = [1, 1]} : vector<4x256xf32> to vector<2x256xf32>
    %153 = vector.extract_strided_slice %151 {offsets = [2, 0], sizes = [2, 256], strides = [1, 1]} : vector<4x256xf32> to vector<2x256xf32>
    %cst_69 = arith.constant dense<0.000000e+00> : vector<256xf32>
    %154 = vector.multi_reduction <add>, %152, %cst_69 [0] : vector<2x256xf32> to vector<256xf32>
    %155 = vector.shape_cast %154 : vector<256xf32> to vector<1x256xf32>
    %cst_70 = arith.constant dense<0.000000e+00> : vector<256xf32>
    %156 = vector.multi_reduction <add>, %153, %cst_70 [0] : vector<2x256xf32> to vector<256xf32>
    %157 = vector.shape_cast %156 : vector<256xf32> to vector<1x256xf32>
    %158 = arith.mulf %152, %152 : vector<2x256xf32>
    %cst_71 = arith.constant dense<0.000000e+00> : vector<256xf32>
    %159 = vector.multi_reduction <add>, %158, %cst_71 [0] : vector<2x256xf32> to vector<256xf32>
    %160 = vector.shape_cast %159 : vector<256xf32> to vector<1x256xf32>
    %161 = arith.mulf %153, %153 : vector<2x256xf32>
    %cst_72 = arith.constant dense<0.000000e+00> : vector<256xf32>
    %162 = vector.multi_reduction <add>, %161, %cst_72 [0] : vector<2x256xf32> to vector<256xf32>
    %163 = vector.shape_cast %162 : vector<256xf32> to vector<1x256xf32>
    %164 = tpu.iota {dimensions = array<i32: 0>} : vector<4x256xi32>
    %c0_i32_73 = arith.constant 0 : i32
    %165 = vector.broadcast %c0_i32_73 : i32 to vector<4x256xi32>
    %166 = arith.cmpi eq, %164, %165 : vector<4x256xi32>
    %c1_i32_74 = arith.constant 1 : i32
    %167 = vector.broadcast %c1_i32_74 : i32 to vector<4x256xi32>
    %168 = arith.cmpi eq, %164, %167 : vector<4x256xi32>
    %c2_i32_75 = arith.constant 2 : i32
    %169 = vector.broadcast %c2_i32_75 : i32 to vector<4x256xi32>
    %170 = arith.cmpi eq, %164, %169 : vector<4x256xi32>
    %171 = vector.shape_cast %160 : vector<1x256xf32> to vector<1x256xf32>
    %172 = vector.broadcast %171 : vector<1x256xf32> to vector<4x256xf32>
    %173 = vector.shape_cast %163 : vector<1x256xf32> to vector<1x256xf32>
    %174 = vector.broadcast %173 : vector<1x256xf32> to vector<4x256xf32>
    %175 = arith.select %170, %172, %174 : vector<4x256xi1>, vector<4x256xf32>
    %176 = vector.shape_cast %157 : vector<1x256xf32> to vector<1x256xf32>
    %177 = vector.broadcast %176 : vector<1x256xf32> to vector<4x256xf32>
    %178 = arith.select %168, %177, %175 : vector<4x256xi1>, vector<4x256xf32>
    %179 = vector.shape_cast %155 : vector<1x256xf32> to vector<1x256xf32>
    %180 = vector.broadcast %179 : vector<1x256xf32> to vector<4x256xf32>
    %181 = arith.select %166, %180, %178 : vector<4x256xi1>, vector<4x256xf32>
    %182 = arith.truncf %181 : vector<4x256xf32> to vector<4x256xbf16>
    %c0_76 = arith.constant 0 : index
    %c0_77 = arith.constant 0 : index
    %183 = vector.load %arg12[%c0_76, %c0_77] : memref<256x16xbf16, #tpu.memory_space<vmem>>, vector<256x16xbf16>
    %cst_78 = arith.constant dense<0.000000e+00> : vector<4x16xf32>
    %184 = tpu.matmul %182, %183, %cst_78 {dimension_numbers = #tpu.dot_dimension_numbers<[1], [0], [0], [1], [0, 0, 1, 1], [], []>} : vector<4x256xbf16>, vector<256x16xbf16>, vector<4x16xf32> -> vector<4x16xf32>
    %185 = vector.extract_strided_slice %184 {offsets = [0, 0], sizes = [2, 16], strides = [1, 1]} : vector<4x16xf32> to vector<2x16xf32>
    %cst_79 = arith.constant 3.125000e-02 : f32
    %186 = vector.broadcast %cst_79 : f32 to vector<2x16xf32>
    %187 = arith.mulf %185, %186 : vector<2x16xf32>
    %188 = vector.extract_strided_slice %184 {offsets = [2, 0], sizes = [2, 16], strides = [1, 1]} : vector<4x16xf32> to vector<2x16xf32>
    %cst_80 = arith.constant 3.125000e-02 : f32
    %189 = vector.broadcast %cst_80 : f32 to vector<2x16xf32>
    %190 = arith.mulf %188, %189 : vector<2x16xf32>
    %191 = arith.mulf %187, %187 : vector<2x16xf32>
    %192 = arith.subf %190, %191 : vector<2x16xf32>
    %cst_81 = arith.constant 0.000000e+00 : f32
    %193 = vector.broadcast %cst_81 : f32 to vector<2x16xf32>
    %194 = arith.maximumf %192, %193 : vector<2x16xf32>
    %c0_82 = arith.constant 0 : index
    %c0_83 = arith.constant 0 : index
    %195 = vector.load %arg10[%c0_82, %c0_83] : memref<1x16xf32, #tpu.memory_space<vmem>>, vector<1x16xf32>
    %cst_84 = arith.constant 9.99999974E-6 : f32
    %196 = vector.broadcast %cst_84 : f32 to vector<2x16xf32>
    %197 = arith.addf %194, %196 : vector<2x16xf32>
    %198 = math.rsqrt %197 : vector<2x16xf32>
    %199 = vector.broadcast %195 : vector<1x16xf32> to vector<2x16xf32>
    %200 = arith.mulf %199, %198 : vector<2x16xf32>
    %c0_85 = arith.constant 0 : index
    %c0_86 = arith.constant 0 : index
    %201 = vector.load %arg11[%c0_85, %c0_86] : memref<1x16xf32, #tpu.memory_space<vmem>>, vector<1x16xf32>
    %202 = arith.mulf %187, %200 : vector<2x16xf32>
    %203 = vector.broadcast %201 : vector<1x16xf32> to vector<2x16xf32>
    %204 = arith.subf %203, %202 : vector<2x16xf32>
    %205 = vector.extract_strided_slice %200 {offsets = [0, 0], sizes = [1, 16], strides = [1, 1]} : vector<2x16xf32> to vector<1x16xf32>
    %206 = vector.extract_strided_slice %200 {offsets = [1, 0], sizes = [1, 16], strides = [1, 1]} : vector<2x16xf32> to vector<1x16xf32>
    %207 = vector.extract_strided_slice %204 {offsets = [0, 0], sizes = [1, 16], strides = [1, 1]} : vector<2x16xf32> to vector<1x16xf32>
    %208 = vector.extract_strided_slice %204 {offsets = [1, 0], sizes = [1, 16], strides = [1, 1]} : vector<2x16xf32> to vector<1x16xf32>
    %209 = tpu.iota {dimensions = array<i32: 0>} : vector<4x16xi32>
    %c0_i32_87 = arith.constant 0 : i32
    %210 = vector.broadcast %c0_i32_87 : i32 to vector<4x16xi32>
    %211 = arith.cmpi eq, %209, %210 : vector<4x16xi32>
    %c1_i32_88 = arith.constant 1 : i32
    %212 = vector.broadcast %c1_i32_88 : i32 to vector<4x16xi32>
    %213 = arith.cmpi eq, %209, %212 : vector<4x16xi32>
    %c2_i32_89 = arith.constant 2 : i32
    %214 = vector.broadcast %c2_i32_89 : i32 to vector<4x16xi32>
    %215 = arith.cmpi eq, %209, %214 : vector<4x16xi32>
    %216 = vector.shape_cast %207 : vector<1x16xf32> to vector<1x16xf32>
    %217 = vector.broadcast %216 : vector<1x16xf32> to vector<4x16xf32>
    %218 = vector.shape_cast %208 : vector<1x16xf32> to vector<1x16xf32>
    %219 = vector.broadcast %218 : vector<1x16xf32> to vector<4x16xf32>
    %220 = arith.select %215, %217, %219 : vector<4x16xi1>, vector<4x16xf32>
    %221 = vector.shape_cast %206 : vector<1x16xf32> to vector<1x16xf32>
    %222 = vector.broadcast %221 : vector<1x16xf32> to vector<4x16xf32>
    %223 = arith.select %213, %222, %220 : vector<4x16xi1>, vector<4x16xf32>
    %224 = vector.shape_cast %205 : vector<1x16xf32> to vector<1x16xf32>
    %225 = vector.broadcast %224 : vector<1x16xf32> to vector<4x16xf32>
    %226 = arith.select %211, %225, %223 : vector<4x16xi1>, vector<4x16xf32>
    %227 = arith.truncf %226 : vector<4x16xf32> to vector<4x16xbf16>
    %c0_90 = arith.constant 0 : index
    %c0_91 = arith.constant 0 : index
    %228 = vector.load %arg13[%c0_90, %c0_91] : memref<16x256xbf16, #tpu.memory_space<vmem>>, vector<16x256xbf16>
    %cst_92 = arith.constant dense<0.000000e+00> : vector<4x256xf32>
    %229 = tpu.matmul %227, %228, %cst_92 {dimension_numbers = #tpu.dot_dimension_numbers<[1], [0], [0], [1], [0, 0, 1, 1], [], []>} : vector<4x16xbf16>, vector<16x256xbf16>, vector<4x256xf32> -> vector<4x256xf32>
    %230 = tpu.iota {dimensions = array<i32: 0>} : vector<4x256xi32>
    %c2_i32_93 = arith.constant 2 : i32
    %231 = vector.broadcast %c2_i32_93 : i32 to vector<4x256xi32>
    %232 = arith.cmpi sge, %230, %231 : vector<4x256xi32>
    %233 = vector.extract_strided_slice %229 {offsets = [1, 0], sizes = [1, 256], strides = [1, 1]} : vector<4x256xf32> to vector<1x256xf32>
    %234 = vector.extract_strided_slice %229 {offsets = [0, 0], sizes = [1, 256], strides = [1, 1]} : vector<4x256xf32> to vector<1x256xf32>
    %235 = vector.shape_cast %233 : vector<1x256xf32> to vector<1x256xf32>
    %236 = vector.broadcast %235 : vector<1x256xf32> to vector<4x256xf32>
    %237 = vector.shape_cast %234 : vector<1x256xf32> to vector<1x256xf32>
    %238 = vector.broadcast %237 : vector<1x256xf32> to vector<4x256xf32>
    %239 = arith.select %232, %236, %238 : vector<4x256xi1>, vector<4x256xf32>
    %240 = vector.extract_strided_slice %229 {offsets = [3, 0], sizes = [1, 256], strides = [1, 1]} : vector<4x256xf32> to vector<1x256xf32>
    %241 = vector.extract_strided_slice %229 {offsets = [2, 0], sizes = [1, 256], strides = [1, 1]} : vector<4x256xf32> to vector<1x256xf32>
    %242 = vector.shape_cast %240 : vector<1x256xf32> to vector<1x256xf32>
    %243 = vector.broadcast %242 : vector<1x256xf32> to vector<4x256xf32>
    %244 = vector.shape_cast %241 : vector<1x256xf32> to vector<1x256xf32>
    %245 = vector.broadcast %244 : vector<1x256xf32> to vector<4x256xf32>
    %246 = arith.select %232, %243, %245 : vector<4x256xi1>, vector<4x256xf32>
    %247 = arith.mulf %151, %239 : vector<4x256xf32>
    %248 = arith.addf %247, %246 : vector<4x256xf32>
    %cst_94 = arith.constant 0.000000e+00 : f32
    %249 = vector.broadcast %cst_94 : f32 to vector<4x256xf32>
    %250 = arith.cmpf ogt, %248, %249 : vector<4x256xf32>
    %cst_95 = arith.constant 2.000000e-01 : f32
    %251 = vector.broadcast %cst_95 : f32 to vector<4x256xf32>
    %252 = arith.mulf %251, %248 : vector<4x256xf32>
    %253 = arith.select %250, %248, %252 : vector<4x256xi1>, vector<4x256xf32>
    %c3_i32_96 = arith.constant 3 : i32
    %254 = tpu.memref_slice %arg27[%c3_i32_96] : memref<4x!tpu.dma_semaphore, #tpu.memory_space<semaphore_mem>> -> memref<1x!tpu.dma_semaphore, #tpu.memory_space<semaphore_mem>>
    %255 = tpu.memref_squeeze %254 : memref<1x!tpu.dma_semaphore, #tpu.memory_space<semaphore_mem>> -> memref<!tpu.dma_semaphore, #tpu.memory_space<semaphore_mem>>
    tpu.wait_dma2 semaphore(%255 : memref<!tpu.dma_semaphore, #tpu.memory_space<semaphore_mem>>) src(%arg19 : memref<256x1xbf16, #tpu.memory_space<any>>) dst(%arg25 : memref<256x1xbf16, #tpu.memory_space<vmem>>)
    %256 = arith.truncf %253 : vector<4x256xf32> to vector<4x256xbf16>
    %c0_97 = arith.constant 0 : index
    %c0_98 = arith.constant 0 : index
    %257 = vector.load %arg25[%c0_97, %c0_98] : memref<256x1xbf16, #tpu.memory_space<vmem>>, vector<256x1xbf16>
    %cst_99 = arith.constant dense<0.000000e+00> : vector<4x1xf32>
    %258 = tpu.matmul %256, %257, %cst_99 {dimension_numbers = #tpu.dot_dimension_numbers<[1], [0], [0], [1], [0, 0, 1, 1], [], []>} : vector<4x256xbf16>, vector<256x1xbf16>, vector<4x1xf32> -> vector<4x1xf32>
    %cst_100 = arith.constant 0.000000e+00 : f32
    %259 = vector.broadcast %cst_100 : f32 to vector<4x1xf32>
    %260 = arith.subf %259, %258 : vector<4x1xf32>
    %cst_101 = arith.constant 0.000000e+00 : f32
    %261 = vector.broadcast %cst_101 : f32 to vector<4x1xf32>
    %262 = arith.maximumf %260, %261 : vector<4x1xf32>
    %263 = math.absf %260 : vector<4x1xf32>
    %cst_102 = arith.constant 0.000000e+00 : f32
    %264 = vector.broadcast %cst_102 : f32 to vector<4x1xf32>
    %265 = arith.subf %264, %263 : vector<4x1xf32>
    %266 = math.exp %265 : vector<4x1xf32>
    %cst_103 = arith.constant 1.000000e+00 : f32
    %267 = vector.broadcast %cst_103 : f32 to vector<4x1xf32>
    %268 = arith.addf %267, %266 : vector<4x1xf32>
    %269 = math.log %268 : vector<4x1xf32>
    %270 = arith.addf %262, %269 : vector<4x1xf32>
    %cst_104 = arith.constant 1.000000e+02 : f32
    %271 = vector.broadcast %cst_104 : f32 to vector<4x1xf32>
    %272 = arith.minimumf %270, %271 : vector<4x1xf32>
    %cst_105 = arith.constant 0.000000e+00 : f32
    %273 = vector.broadcast %cst_105 : f32 to vector<4x1xf32>
    %274 = arith.maximumf %258, %273 : vector<4x1xf32>
    %275 = math.absf %258 : vector<4x1xf32>
    %cst_106 = arith.constant 0.000000e+00 : f32
    %276 = vector.broadcast %cst_106 : f32 to vector<4x1xf32>
    %277 = arith.subf %276, %275 : vector<4x1xf32>
    %278 = math.exp %277 : vector<4x1xf32>
    %cst_107 = arith.constant 1.000000e+00 : f32
    %279 = vector.broadcast %cst_107 : f32 to vector<4x1xf32>
    %280 = arith.addf %279, %278 : vector<4x1xf32>
    %281 = math.log %280 : vector<4x1xf32>
    %282 = arith.addf %274, %281 : vector<4x1xf32>
    %cst_108 = arith.constant 1.000000e+02 : f32
    %283 = vector.broadcast %cst_108 : f32 to vector<4x1xf32>
    %284 = arith.minimumf %282, %283 : vector<4x1xf32>
    %285 = tpu.iota {dimensions = array<i32: 0>} : vector<4x1xi32>
    %c2_i32_109 = arith.constant 2 : i32
    %286 = vector.broadcast %c2_i32_109 : i32 to vector<4x1xi32>
    %287 = arith.cmpi slt, %285, %286 : vector<4x1xi32>
    %288 = arith.extui %287 : vector<4x1xi1> to vector<4x1xi32>
    %289 = arith.sitofp %288 : vector<4x1xi32> to vector<4x1xf32>
    %cst_110 = arith.constant 1.000000e+00 : f32
    %290 = vector.broadcast %cst_110 : f32 to vector<4x1xf32>
    %291 = arith.subf %290, %289 : vector<4x1xf32>
    %292 = arith.mulf %272, %289 : vector<4x1xf32>
    %cst_111 = arith.constant dense<0.000000e+00> : vector<1xf32>
    %293 = vector.multi_reduction <add>, %292, %cst_111 [0] : vector<4x1xf32> to vector<1xf32>
    %294 = vector.shape_cast %293 : vector<1xf32> to vector<1x1xf32>
    %cst_112 = arith.constant 5.000000e-01 : f32
    %295 = vector.broadcast %cst_112 : f32 to vector<1x1xf32>
    %296 = arith.mulf %294, %295 : vector<1x1xf32>
    %297 = arith.mulf %284, %291 : vector<4x1xf32>
    %cst_113 = arith.constant dense<0.000000e+00> : vector<1xf32>
    %298 = vector.multi_reduction <add>, %297, %cst_113 [0] : vector<4x1xf32> to vector<1xf32>
    %299 = vector.shape_cast %298 : vector<1xf32> to vector<1x1xf32>
    %cst_114 = arith.constant 5.000000e-01 : f32
    %300 = vector.broadcast %cst_114 : f32 to vector<1x1xf32>
    %301 = arith.mulf %299, %300 : vector<1x1xf32>
    %302 = arith.mulf %272, %291 : vector<4x1xf32>
    %cst_115 = arith.constant dense<0.000000e+00> : vector<1xf32>
    %303 = vector.multi_reduction <add>, %302, %cst_115 [0] : vector<4x1xf32> to vector<1xf32>
    %304 = vector.shape_cast %303 : vector<1xf32> to vector<1x1xf32>
    %cst_116 = arith.constant 5.000000e-01 : f32
    %305 = vector.broadcast %cst_116 : f32 to vector<1x1xf32>
    %306 = arith.mulf %304, %305 : vector<1x1xf32>
    %307 = arith.addf %296, %301 : vector<1x1xf32>
    %cst_117 = arith.constant 5.000000e-01 : f32
    %308 = vector.broadcast %cst_117 : f32 to vector<1x1xf32>
    %309 = arith.mulf %308, %307 : vector<1x1xf32>
    %c0_118 = arith.constant 0 : index
    %c0_119 = arith.constant 0 : index
    %310 = vector.load %arg20[%c0_118, %c0_119] : memref<1x1xf32, #tpu.memory_space<vmem>>, vector<1x1xf32>
    tpu.vector_store %arg20[%c0_118, %c0_119], %309 {strides = array<i32>} : memref<1x1xf32, #tpu.memory_space<vmem>>, vector<1x1xf32>,
    %c0_120 = arith.constant 0 : index
    %c0_121 = arith.constant 0 : index
    %311 = vector.load %arg21[%c0_120, %c0_121] : memref<1x1xf32, #tpu.memory_space<vmem>>, vector<1x1xf32>
    tpu.vector_store %arg21[%c0_120, %c0_121], %306 {strides = array<i32>} : memref<1x1xf32, #tpu.memory_space<vmem>>, vector<1x1xf32>,
    return
  }
}

</mosaic_0001>

<llo_original>
// kernel: dcgan_forward.1
$region0: #{dcgan_forward.1}
  #allocation0 [shape = 'u32[]', space=smem, size = 0x4, offset = 0x4, fixed_abs, tag = 'smem constant byte address 0x4 - core index']
  #allocation1 [shape = 'u32[144,128]{1,0:T(1,128)}', space=vmem, size = 0x12000, scoped, tag = 'internal scratch']
  #allocation2 [shape = 'bf16[512,768]{1,0:T(16,128)(2,1)}', space=vmem, size = 0xc0000, scoped, tag = 'scratch operand']
  #allocation3 [shape = 'bf16[768,512]{1,0:T(16,128)(2,1)}', space=vmem, size = 0xc0000, scoped, tag = 'scratch operand']
  #allocation4 [shape = 'bf16[512,256]{1,0:T(16,128)(2,1)}', space=vmem, size = 0x40000, scoped, tag = 'scratch operand']
  #allocation5 [shape = 'bf16[256,1]{1,0:T(16,128)(2,1)}', space=vmem, size = 0x10000, scoped, tag = 'scratch operand']
  #allocation6 [shape = 'f32[4,768]{1,0:T(4,128)}', space=vmem, size = 0x3000, scoped, tag = 'scratch operand']
  #allocation7 [shape = 's32[4]{0}', space=sflag, size = 0x10, scoped, tag = 'scratch operand']
  #allocation12 [shape = 's32[]', space=sflag, size = 0x4, offset = 0, fixed_abs, tag = 'sflag constant byte address 0x0 - dummy sync flag']
  #allocation14 [shape = 's32[]', space=sflag, size = 0x4, offset = 0, fixed_abs, tag = 'sflag constant byte address 0x0 - dummy sync flag']
  #allocation16 [shape = 's32[]', space=sflag, size = 0x4, offset = 0, fixed_abs, tag = 'sflag constant byte address 0x0 - dummy sync flag']
  #allocation18 [shape = 's32[]', space=sflag, size = 0x4, offset = 0, fixed_abs, tag = 'sflag constant byte address 0x0 - dummy sync flag']
  %s0 = inlined_call_operand.vmem [shape: f32[2,768], index: 0, kind: input, shape index: {}]
  %s1 = inlined_call_operand.vmem [shape: f32[2,16], index: 1, kind: input, shape index: {}]
  %s2 = inlined_call_operand.vmem [shape: bf16[16,256], index: 2, kind: input, shape index: {}]
  %s3 = inlined_call_operand.vmem [shape: f32[1,16], index: 3, kind: input, shape index: {}]
  %s4 = inlined_call_operand.vmem [shape: f32[1,16], index: 4, kind: input, shape index: {}]
  %s5 = inlined_call_operand.vmem [shape: bf16[256,512], index: 5, kind: input, shape index: {}]
  %s6 = inlined_call_operand.vmem [shape: f32[1,8], index: 6, kind: input, shape index: {}]
  %s7 = inlined_call_operand.vmem [shape: f32[1,8], index: 7, kind: input, shape index: {}]
  %s8 = inlined_call_operand.vmem [shape: f32[1,768], index: 8, kind: input, shape index: {}]
  %s9 = inlined_call_operand.vmem [shape: f32[1,512], index: 9, kind: input, shape index: {}]
  %s10 = inlined_call_operand.vmem [shape: f32[1,16], index: 10, kind: input, shape index: {}]
  %s11 = inlined_call_operand.vmem [shape: f32[1,16], index: 11, kind: input, shape index: {}]
  %s12 = inlined_call_operand.vmem [shape: bf16[256,16], index: 12, kind: input, shape index: {}]
  %s13 = inlined_call_operand.vmem [shape: bf16[16,256], index: 13, kind: input, shape index: {}]
  %s14 = inlined_call_operand.vmem [shape: bf16[512,8], index: 14, kind: input, shape index: {}]
  %s15 = inlined_call_operand.vmem [shape: bf16[8,512], index: 15, kind: input, shape index: {}]
  %s16 = inlined_call_operand.hbm [shape: bf16[512,768], index: 16, kind: input, shape index: {}]
  %s17 = inlined_call_operand.hbm [shape: bf16[768,512], index: 17, kind: input, shape index: {}]
  %s18 = inlined_call_operand.hbm [shape: bf16[512,256], index: 18, kind: input, shape index: {}]
  %s19 = inlined_call_operand.vmem [shape: bf16[256,1], index: 19, kind: input, shape index: {}]
  %s20 = inlined_call_operand.hbm [shape: f32[1,1], index: 20, kind: output, shape index: {0}]
  %s21 = inlined_call_operand.hbm [shape: f32[1,1], index: 21, kind: output, shape index: {1}]
  %22 = xla_tuple %s20, %s21
  %s23 = sld [smem:[#allocation0]]
  $region116: #{dcgan_forward.1} parent=0
    _
  %s25 = ssub.s32 1, %s23
  %s26 = scalar_select 0, %s25, %s23
  $region1: #{dcgan_forward.1} parent=0
    #allocation8 [shape = 'u8[512]{0}', space=vmem, size = 0x400, scoped, tag = 'output window, operand 0, single buffered']
    #allocation9 [shape = 's32[1]{0}', space=sflag, size = 0x4, scoped, tag = 'scoped memory for dcgan_forward.1']
    #allocation10 [shape = 'u8[512]{0}', space=vmem, size = 0x400, scoped, tag = 'output window, operand 1, single buffered']
    #allocation11 [shape = 's32[1]{0}', space=sflag, size = 0x4, scoped, tag = 'scoped memory for dcgan_forward.1']
    #allocation13 [shape = 'u32[9]{0}', space=smem, size = 0x24, scoped, tag = 'DMA stride descriptor']
    #allocation15 [shape = 'u32[9]{0}', space=smem, size = 0x24, scoped, tag = 'DMA stride descriptor']
    #allocation17 [shape = 'u32[9]{0}', space=smem, size = 0x24, scoped, tag = 'DMA stride descriptor']
    %27 = vsyncpa [#allocation9], 0
    %28 = vsyncpa [#allocation11], 0
    // Predicated region
    $region2: #{dcgan_forward.1} parent=1 // pred_check
      _
    $region3: #{dcgan_forward.1} parent=1 // pred_check_branch
      %30 = sbr.rel (0) target = $region5
    $region4: #{dcgan_forward.1} parent=1 // pred_region
      _
    $region5: #{dcgan_forward.1} parent=1 // pred_fallthru
      _
    // Predicated region
    $region6: #{dcgan_forward.1} parent=1 // pred_check
      _
    $region7: #{dcgan_forward.1} parent=1 // pred_check_branch
      %32 = sbr.rel (0) target = $region9
    $region8: #{dcgan_forward.1} parent=1 // pred_region
      _
    $region9: #{dcgan_forward.1} parent=1 // pred_fallthru
      _
    // Predicated region
    $region10: #{dcgan_forward.1} parent=1 // pred_check
      _
    $region11: #{dcgan_forward.1} parent=1 // pred_check_branch
      %34 = sbr.rel (0) target = $region13
    $region12: #{dcgan_forward.1} parent=1 // pred_region
      _
    $region13: #{dcgan_forward.1} parent=1 // pred_fallthru
      _
    // Predicated region
    $region14: #{dcgan_forward.1} parent=1 // pred_check
      _
    $region15: #{dcgan_forward.1} parent=1 // pred_check_branch
      %36 = sbr.rel (0) target = $region17
    $region16: #{dcgan_forward.1} parent=1 // pred_region
      _
    $region17: #{dcgan_forward.1} parent=1 // pred_fallthru
      _
    // Predicated region
    $region18: #{dcgan_forward.1} parent=1 // pred_check
      _
    $region19: #{dcgan_forward.1} parent=1 // pred_check_branch
      %38 = sbr.rel (0) target = $region21
    $region20: #{dcgan_forward.1} parent=1 // pred_region
      _
    $region21: #{dcgan_forward.1} parent=1 // pred_fallthru
      _
    // Predicated region
    $region22: #{dcgan_forward.1} parent=1 // pred_check
      _
    $region23: #{dcgan_forward.1} parent=1 // pred_check_branch
      %40 = sbr.rel (0) target = $region25
    $region24: #{dcgan_forward.1} parent=1 // pred_region
      _
    $region25: #{dcgan_forward.1} parent=1 // pred_fallthru
      _
    // Predicated region
    $region26: #{dcgan_forward.1} parent=1 // pred_check
      _
    $region27: #{dcgan_forward.1} parent=1 // pred_check_branch
      %42 = sbr.rel (0) target = $region29
    $region28: #{dcgan_forward.1} parent=1 // pred_region
      _
    $region29: #{dcgan_forward.1} parent=1 // pred_fallthru
      _
    // Predicated region
    $region30: #{dcgan_forward.1} parent=1 // pred_check
      _
    $region31: #{dcgan_forward.1} parent=1 // pred_check_branch
      %44 = sbr.rel (0) target = $region33
    $region32: #{dcgan_forward.1} parent=1 // pred_region
      _
    $region33: #{dcgan_forward.1} parent=1 // pred_fallthru
      _
    // Predicated region
    $region34: #{dcgan_forward.1} parent=1 // pred_check
      _
    $region35: #{dcgan_forward.1} parent=1 // pred_check_branch
      %46 = sbr.rel (0) target = $region37
    $region36: #{dcgan_forward.1} parent=1 // pred_region
      _
    $region37: #{dcgan_forward.1} parent=1 // pred_fallthru
      _
    // Predicated region
    $region38: #{dcgan_forward.1} parent=1 // pred_check
      _
    $region39: #{dcgan_forward.1} parent=1 // pred_check_branch
      %48 = sbr.rel (0) target = $region41
    $region40: #{dcgan_forward.1} parent=1 // pred_region
      _
    $region41: #{dcgan_forward.1} parent=1 // pred_fallthru
      _
    // Predicated region
    $region42: #{dcgan_forward.1} parent=1 // pred_check
      _
    $region43: #{dcgan_forward.1} parent=1 // pred_check_branch
      %50 = sbr.rel (0) target = $region45
    $region44: #{dcgan_forward.1} parent=1 // pred_region
      _
    $region45: #{dcgan_forward.1} parent=1 // pred_fallthru
      _
    // Predicated region
    $region46: #{dcgan_forward.1} parent=1 // pred_check
      _
    $region47: #{dcgan_forward.1} parent=1 // pred_check_branch
      %52 = sbr.rel (0) target = $region49
    $region48: #{dcgan_forward.1} parent=1 // pred_region
      _
    $region49: #{dcgan_forward.1} parent=1 // pred_fallthru
      _
    // Predicated region
    $region50: #{dcgan_forward.1} parent=1 // pred_check
      _
    $region51: #{dcgan_forward.1} parent=1 // pred_check_branch
      %54 = sbr.rel (0) target = $region53
    $region52: #{dcgan_forward.1} parent=1 // pred_region
      _
    $region53: #{dcgan_forward.1} parent=1 // pred_fallthru
      _
    // Predicated region
    $region54: #{dcgan_forward.1} parent=1 // pred_check
      _
    $region55: #{dcgan_forward.1} parent=1 // pred_check_branch
      %56 = sbr.rel (0) target = $region57
    $region56: #{dcgan_forward.1} parent=1 // pred_region
      _
    $region57: #{dcgan_forward.1} parent=1 // pred_fallthru
      _
    // Predicated region
    $region58: #{dcgan_forward.1} parent=1 // pred_check
      _
    $region59: #{dcgan_forward.1} parent=1 // pred_check_branch
      %58 = sbr.rel (0) target = $region61
    $region60: #{dcgan_forward.1} parent=1 // pred_region
      _
    $region61: #{dcgan_forward.1} parent=1 // pred_fallthru
      _
    // Predicated region
    $region62: #{dcgan_forward.1} parent=1 // pred_check
      _
    $region63: #{dcgan_forward.1} parent=1 // pred_check_branch
      %60 = sbr.rel (0) target = $region65
    $region64: #{dcgan_forward.1} parent=1 // pred_region
      _
    $region65: #{dcgan_forward.1} parent=1 // pred_fallthru
      _
    %s63 = sshll.u32 1, 14
    %s64 = sxor.u32 4294967295, %s63
    %s66 = sld [smem:[#allocation0]]
    %s67 = sadd.s32 2, %s66
    %s69 = sshll.u32 7, 26
    %s70 = sxor.u32 4294967295, %s69
    %s71 = sand.u32 0, %s70
    %s72 = sshll.u32 %s67, 26
    %s73 = sor.u32 %s71, %s72
    %s74 = sshll.u32 [#allocation2], 4
    %s75 = int_to_ptr.vmem [resolvable:$true] %s74
    %78 = sst [smem:[#allocation13]] 768
    %s79 = scalar_lea.smem [#allocation13], 1
    %80 = sst [smem:[%s79]] 768
    %s81 = scalar_lea.smem [#allocation13], 2
    %82 = sst [smem:[%s81]] 6
    %s83 = scalar_lea.smem [#allocation13], 3
    %84 = sst [smem:[%s83]] 64
    %s85 = scalar_lea.smem [#allocation13], 4
    %86 = sst [smem:[%s85]] 128
    %s87 = scalar_lea.smem [#allocation13], 5
    %88 = sst [smem:[%s87]] 2
    %s89 = scalar_lea.smem [#allocation13], 6
    %90 = sst [smem:[%s89]] 384
    %s91 = scalar_lea.smem [#allocation13], 7
    %92 = sst [smem:[%s91]] 64
    %s93 = scalar_lea.smem [#allocation13], 8
    %94 = sst [smem:[%s93]] 4
    %96 = dma.general %s16, 24576, %s75, [#allocation7], [#allocation12], [#allocation13], %s73, 0
    %s97 = scalar_lea.sflag [#allocation7], 1
    %s99 = sshll.u32 1, 14
    %s100 = sxor.u32 4294967295, %s99
    %s102 = sadd.s32 2, %s66
    %s104 = sshll.u32 7, 26
    %s105 = sxor.u32 4294967295, %s104
    %s106 = sand.u32 0, %s105
    %s107 = sshll.u32 %s102, 26
    %s108 = sor.u32 %s106, %s107
    %s109 = sshll.u32 [#allocation3], 4
    %s110 = int_to_ptr.vmem [resolvable:$true] %s109
    %113 = sst [smem:[#allocation15]] 512
    %s114 = scalar_lea.smem [#allocation15], 1
    %115 = sst [smem:[%s114]] 512
    %s116 = scalar_lea.smem [#allocation15], 2
    %117 = sst [smem:[%s116]] 4
    %s118 = scalar_lea.smem [#allocation15], 3
    %119 = sst [smem:[%s118]] 64
    %s120 = scalar_lea.smem [#allocation15], 4
    %121 = sst [smem:[%s120]] 128
    %s122 = scalar_lea.smem [#allocation15], 5
    %123 = sst [smem:[%s122]] 2
    %s124 = scalar_lea.smem [#allocation15], 6
    %125 = sst [smem:[%s124]] 256
    %s126 = scalar_lea.smem [#allocation15], 7
    %127 = sst [smem:[%s126]] 64
    %s128 = scalar_lea.smem [#allocation15], 8
    %129 = sst [smem:[%s128]] 4
    %131 = dma.general %s17, 24576, %s110, %s97, [#allocation14], [#allocation15], %s108, 0
    %s132 = scalar_lea.sflag [#allocation7], 2
    %s134 = sshll.u32 1, 14
    %s135 = sxor.u32 4294967295, %s134
    %s137 = sadd.s32 2, %s66
    %s139 = sshll.u32 7, 26
    %s140 = sxor.u32 4294967295, %s139
    %s141 = sand.u32 0, %s140
    %s142 = sshll.u32 %s137, 26
    %s143 = sor.u32 %s141, %s142
    %s144 = sshll.u32 [#allocation4], 4
    %s145 = int_to_ptr.vmem [resolvable:$true] %s144
    %148 = sst [smem:[#allocation17]] 256
    %s149 = scalar_lea.smem [#allocation17], 1
    %150 = sst [smem:[%s149]] 256
    %s151 = scalar_lea.smem [#allocation17], 2
    %152 = sst [smem:[%s151]] 2
    %s153 = scalar_lea.smem [#allocation17], 3
    %154 = sst [smem:[%s153]] 64
    %s155 = scalar_lea.smem [#allocation17], 4
    %156 = sst [smem:[%s155]] 128
    %s157 = scalar_lea.smem [#allocation17], 5
    %158 = sst [smem:[%s157]] 2
    %s159 = scalar_lea.smem [#allocation17], 6
    %160 = sst [smem:[%s159]] 128
    %s161 = scalar_lea.smem [#allocation17], 7
    %162 = sst [smem:[%s161]] 64
    %s163 = scalar_lea.smem [#allocation17], 8
    %164 = sst [smem:[%s163]] 4
    %166 = dma.general %s18, 8192, %s145, %s132, [#allocation16], [#allocation17], %s143, 0
    %s167 = scalar_lea.sflag [#allocation7], 3
    %p169 = scmp.lt.u32.totalorder 128, 8
    %p170 = pneg %p169
    // Predicated region
    $region66: #{dcgan_forward.1} parent=1 // pred_check
      _
    $region67: #{dcgan_forward.1} parent=1 // pred_check_branch
      %172 = sbr.rel (%p169) target = $region69
    $region68: #{dcgan_forward.1} parent=1 // pred_region
      %s187 = sand.u32 128, 7
      %p188 = scmp.eq.s32.totalorder %s187, 0
      // Predicated region
      $region81: #{dcgan_forward.1} parent=68 // pred_check
        %p189 = pneg %p188
      $region82: #{dcgan_forward.1} parent=68 // pred_check_branch
        %191 = sbr.rel (%p189) target = $region84
      $region83: #{dcgan_forward.1} parent=68 // pred_region
        loop: start=0, step=1, limit=1
        $region85: #{dcgan_forward.1} parent=83 // loop_pre_header
          _
        $region86: #{dcgan_forward.1} parent=83 // loop_header
          %s193 = sphi 0, %s197
          %p194 = scmp.ge.s32.totalorder %s193, 1
          %s198 = sphi %s19, %s19
          %s199 = sphi [#allocation5], [#allocation5]
        $region87: #{dcgan_forward.1} parent=83 // loop_header_branch
          %196 = sbr.rel (%p194) target = $region91
        $region88: #{dcgan_forward.1} parent=83 // loop_body
          %v200 = vld [vmem:[%s198] sm:$0xff]
          %201 = vst [vmem:[%s199] sm:$0xff] %v200
          %v202 = vld [vmem:[%s198 + $0x8] sm:$0xff]
          %203 = vst [vmem:[%s199 + $0x8] sm:$0xff] %v202
          %v204 = vld [vmem:[%s198 + $0x10] sm:$0xff]
          %205 = vst [vmem:[%s199 + $0x10] sm:$0xff] %v204
          %v206 = vld [vmem:[%s198 + $0x18] sm:$0xff]
          %207 = vst [vmem:[%s199 + $0x18] sm:$0xff] %v206
          %v208 = vld [vmem:[%s198 + $0x20] sm:$0xff]
          %209 = vst [vmem:[%s199 + $0x20] sm:$0xff] %v208
          %v210 = vld [vmem:[%s198 + $0x28] sm:$0xff]
          %211 = vst [vmem:[%s199 + $0x28] sm:$0xff] %v210
          %v212 = vld [vmem:[%s198 + $0x30] sm:$0xff]
          %213 = vst [vmem:[%s199 + $0x30] sm:$0xff] %v212
          %v214 = vld [vmem:[%s198 + $0x38] sm:$0xff]
          %215 = vst [vmem:[%s199 + $0x38] sm:$0xff] %v214
          %v216 = vld [vmem:[%s198 + $0x40] sm:$0xff]
          %217 = vst [vmem:[%s199 + $0x40] sm:$0xff] %v216
          %v218 = vld [vmem:[%s198 + $0x48] sm:$0xff]
          %219 = vst [vmem:[%s199 + $0x48] sm:$0xff] %v218
          %v220 = vld [vmem:[%s198 + $0x50] sm:$0xff]
          %221 = vst [vmem:[%s199 + $0x50] sm:$0xff] %v220
          %v222 = vld [vmem:[%s198 + $0x58] sm:$0xff]
          %223 = vst [vmem:[%s199 + $0x58] sm:$0xff] %v222
          %v224 = vld [vmem:[%s198 + $0x60] sm:$0xff]
          %225 = vst [vmem:[%s199 + $0x60] sm:$0xff] %v224
          %v226 = vld [vmem:[%s198 + $0x68] sm:$0xff]
          %227 = vst [vmem:[%s199 + $0x68] sm:$0xff] %v226
          %v228 = vld [vmem:[%s198 + $0x70] sm:$0xff]
          %229 = vst [vmem:[%s199 + $0x70] sm:$0xff] %v228
          %v230 = vld [vmem:[%s198 + $0x78] sm:$0xff]
          %231 = vst [vmem:[%s199 + $0x78] sm:$0xff] %v230
        $region89: #{dcgan_forward.1} parent=83 // loop_footer
          %s197 = sadd.s32 1, %s193
        $region90: #{dcgan_forward.1} parent=83 // loop_footer_branch
          %192 = sbr.rel target = $region86
        $region91: #{dcgan_forward.1} parent=83 // loop_exit
          _
      $region84: #{dcgan_forward.1} parent=68 // pred_fallthru
        _
      %p232 = pneg %p188
      // Predicated region
      $region92: #{dcgan_forward.1} parent=68 // pred_check
        _
      $region93: #{dcgan_forward.1} parent=68 // pred_check_branch
        %234 = sbr.rel (%p188) target = $region95
      $region94: #{dcgan_forward.1} parent=68 // pred_region
        %s235 = sand.u32 128, 7
      $region95: #{dcgan_forward.1} parent=68 // pred_fallthru
        _
    $region69: #{dcgan_forward.1} parent=1 // pred_fallthru
      _
    // Predicated region
    $region70: #{dcgan_forward.1} parent=1 // pred_check
      %p173 = pneg %p169
    $region71: #{dcgan_forward.1} parent=1 // pred_check_branch
      %175 = sbr.rel (%p173) target = $region73
    $region72: #{dcgan_forward.1} parent=1 // pred_region
      %s176 = sshllo.u32 0, 128
      loop: start=0, step=1, limit=1
      $region74: #{dcgan_forward.1} parent=72 // loop_pre_header
        _
      $region75: #{dcgan_forward.1} parent=72 // loop_header
        %s178 = sphi 0, %s182
        %p179 = scmp.ge.s32.totalorder %s178, 1
        %s183 = sphi %s19, %s19
        %s184 = sphi [#allocation5], [#allocation5]
      $region76: #{dcgan_forward.1} parent=72 // loop_header_branch
        %181 = sbr.rel (%p179) target = $region80
      $region77: #{dcgan_forward.1} parent=72 // loop_body
        %v185 = vld [vmem:[%s183] sm:%s176]
        %186 = vst [vmem:[%s184] sm:%s176] %v185
      $region78: #{dcgan_forward.1} parent=72 // loop_footer
        %s182 = sadd.s32 1, %s178
      $region79: #{dcgan_forward.1} parent=72 // loop_footer_branch
        %177 = sbr.rel target = $region75
      $region80: #{dcgan_forward.1} parent=72 // loop_exit
        _
    $region73: #{dcgan_forward.1} parent=1 // pred_fallthru
      _
    // Predicated region
    $region96: #{dcgan_forward.1} parent=1 // pred_check
      _
    $region97: #{dcgan_forward.1} parent=1 // pred_check_branch
      %238 = sbr.rel (0) target = $region99
    $region98: #{dcgan_forward.1} parent=1 // pred_region
      %239 = vsyncadd %s167, 2048
    $region99: #{dcgan_forward.1} parent=1 // pred_fallthru
      _
    %v240 = vld [vmem:[%s1] sm:$0x3]
    %v241 = vpack.c.bf16 %v240, %v240
    %v242 = vld [vmem:[%s2] sm:$0xff]
    %v243 = vld [vmem:[%s2 + $0x8] sm:$0xff]
    %v246 = vunpack.c.l.b16 %v242
    %v247 = vunpack.c.h.b16 %v242
    %v248 = vunpack.c.l.b16 %v243
    %v249 = vunpack.c.h.b16 %v243
    %v250 = vpack.c.b16 %v248, %v246
    %v251 = vpack.c.b16 %v249, %v247
    %vm254 = vcmask 130048
    %v256 = vsel %vm254, %v241, 0
    %258 = vmatprep.subr.bf16.mxu0 %v251
    %259 = vmatpush1.bf16.msra.mxu0 %v250
    %260 = vmatprep.subr.bf16.mxu0 0
    %261 = vmatpush1.bf16.msra.mxu0 0
    %262 = vmatprep.subr.bf16.mxu0 0
    %263 = vmatpush1.bf16.msra.mxu0 0
    %264 = vmatprep.subr.bf16.mxu0 0
    %265 = vmatpush1.bf16.msra.mxu0 0
    %266 = vmatprep.subr.bf16.mxu0 0
    %267 = vmatpush1.bf16.msra.mxu0 0
    %268 = vmatprep.subr.bf16.mxu0 0
    %269 = vmatpush1.bf16.msra.mxu0 0
    %270 = vmatprep.subr.bf16.mxu0 0
    %271 = vmatpush1.bf16.msra.mxu0 0
    %272 = vmatprep.subr.bf16.mxu0 0
    %273 = vmatpush1.bf16.msra.mxu0 0
    %274 = vmatprep.subr.bf16.mxu0 0
    %275 = vmatpush1.bf16.msra.mxu0 0
    %276 = vmatprep.subr.bf16.mxu0 0
    %277 = vmatpush1.bf16.msra.mxu0 0
    %278 = vmatprep.subr.bf16.mxu0 0
    %279 = vmatpush1.bf16.msra.mxu0 0
    %280 = vmatprep.subr.bf16.mxu0 0
    %281 = vmatpush1.bf16.msra.mxu0 0
    %282 = vmatprep.subr.bf16.mxu0 0
    %283 = vmatpush1.bf16.msra.mxu0 0
    %284 = vmatprep.subr.bf16.mxu0 0
    %285 = vmatpush1.bf16.msra.mxu0 0
    %286 = vmatprep.subr.bf16.mxu0 0
    %287 = vmatpush1.bf16.msra.mxu0 0
    %288 = vmatprep.subr.bf16.mxu0 0
    %289 = vmatpush1.bf16.msra.mxu0 0
    %290 = vmatprep.mubr.bf16.mxu0 0
    %291 = vmatmul.mubr.bf16.gmra.mrb[0].mxu0 %v256
    %v292 = vpop.f32.mrb[0].mxu0
    %v293 = vadd.f32 0.0, %v292
    %v294 = vpop.f32.mrb[0].mxu0
    %v295 = vadd.f32 0.0, %v294
    %v296 = vpop.f32.mrb[0].mxu0
    %v297 = vpop.f32.mrb[0].mxu0
    %298 = vdwg.mxu0
    %vm299 = vcmask 1041408
    %v300 = vsel %vm299, %v293, 0.0
    %v301 = vrot.slane %v300, 4
    %v302 = vadd.f32 %v300, %v301
    %v303 = vrot.slane %v302, 2
    %v304 = vadd.f32 %v302, %v303
    %v305 = vrot.slane %v304, 1
    %v306 = vadd.f32 %v304, %v305
    %v307 = vsel %vm299, %v295, 0.0
    %v308 = vrot.slane %v307, 4
    %v309 = vadd.f32 %v307, %v308
    %v310 = vrot.slane %v309, 2
    %v311 = vadd.f32 %v309, %v310
    %v312 = vrot.slane %v311, 1
    %v313 = vadd.f32 %v311, %v312
    %v314 = vmul.f32 %v293, %v293
    %v315 = vmul.f32 %v295, %v295
    %v316 = vsel %vm299, %v314, 0.0
    %v317 = vrot.slane %v316, 4
    %v318 = vadd.f32 %v316, %v317
    %v319 = vrot.slane %v318, 2
    %v320 = vadd.f32 %v318, %v319
    %v321 = vrot.slane %v320, 1
    %v322 = vadd.f32 %v320, %v321
    %v323 = vsel %vm299, %v315, 0.0
    %v324 = vrot.slane %v323, 4
    %v325 = vadd.f32 %v323, %v324
    %v326 = vrot.slane %v325, 2
    %v327 = vadd.f32 %v325, %v326
    %v328 = vrot.slane %v327, 1
    %v329 = vadd.f32 %v327, %v328
    %v330 = vlaneseq
    %v331 = vshrl.u32 %v330, 7
    %vm332 = vcmp.eq.s32.totalorder %v331, 0
    %v333 = vsel %vm332, %v306, %v322
    %v334 = vsel %vm332, %v313, %v329
    %v335 = vpack.c.bf16 %v333, %v333
    %v336 = vpack.c.bf16 %v334, %v334
    %v337 = vld [vmem:[%s12] sm:$0xf]
    %v338 = vld [vmem:[%s12 + $0x4] sm:$0xf]
    %v339 = vld [vmem:[%s12 + $0x8] sm:$0xf]
    %v340 = vld [vmem:[%s12 + $0xc] sm:$0xf]
    %v341 = vld [vmem:[%s12 + $0x10] sm:$0xf]
    %v342 = vld [vmem:[%s12 + $0x14] sm:$0xf]
    %v343 = vld [vmem:[%s12 + $0x18] sm:$0xf]
    %v344 = vld [vmem:[%s12 + $0x1c] sm:$0xf]
    %v345 = vld [vmem:[%s12 + $0x20] sm:$0xf]
    %v346 = vld [vmem:[%s12 + $0x24] sm:$0xf]
    %v347 = vld [vmem:[%s12 + $0x28] sm:$0xf]
    %v348 = vld [vmem:[%s12 + $0x2c] sm:$0xf]
    %v349 = vld [vmem:[%s12 + $0x30] sm:$0xf]
    %v350 = vld [vmem:[%s12 + $0x34] sm:$0xf]
    %v351 = vld [vmem:[%s12 + $0x38] sm:$0xf]
    %v352 = vld [vmem:[%s12 + $0x3c] sm:$0xf]
    %v353 = vld [vmem:[%s12 + $0x40] sm:$0xf]
    %v354 = vld [vmem:[%s12 + $0x44] sm:$0xf]
    %v355 = vld [vmem:[%s12 + $0x48] sm:$0xf]
    %v356 = vld [vmem:[%s12 + $0x4c] sm:$0xf]
    %v357 = vld [vmem:[%s12 + $0x50] sm:$0xf]
    %v358 = vld [vmem:[%s12 + $0x54] sm:$0xf]
    %v359 = vld [vmem:[%s12 + $0x58] sm:$0xf]
    %v360 = vld [vmem:[%s12 + $0x5c] sm:$0xf]
    %v361 = vld [vmem:[%s12 + $0x60] sm:$0xf]
    %v362 = vld [vmem:[%s12 + $0x64] sm:$0xf]
    %v363 = vld [vmem:[%s12 + $0x68] sm:$0xf]
    %v364 = vld [vmem:[%s12 + $0x6c] sm:$0xf]
    %v365 = vld [vmem:[%s12 + $0x70] sm:$0xf]
    %v366 = vld [vmem:[%s12 + $0x74] sm:$0xf]
    %v367 = vld [vmem:[%s12 + $0x78] sm:$0xf]
    %v368 = vld [vmem:[%s12 + $0x7c] sm:$0xf]
    %v401 = vunpack.c.l.b16 %v337
    %v402 = vunpack.c.l.b16 %v338
    %v403 = vunpack.c.l.b16 %v339
    %v404 = vunpack.c.l.b16 %v340
    %v405 = vunpack.c.l.b16 %v341
    %v406 = vunpack.c.l.b16 %v342
    %v407 = vunpack.c.l.b16 %v343
    %v408 = vunpack.c.l.b16 %v344
    %v409 = vunpack.c.l.b16 %v345
    %v410 = vunpack.c.l.b16 %v346
    %v411 = vunpack.c.l.b16 %v347
    %v412 = vunpack.c.l.b16 %v348
    %v413 = vunpack.c.l.b16 %v349
    %v414 = vunpack.c.l.b16 %v350
    %v415 = vunpack.c.l.b16 %v351
    %v416 = vunpack.c.l.b16 %v352
    %v417 = vunpack.c.l.b16 %v353
    %v418 = vunpack.c.l.b16 %v354
    %v419 = vunpack.c.l.b16 %v355
    %v420 = vunpack.c.l.b16 %v356
    %v421 = vunpack.c.l.b16 %v357
    %v422 = vunpack.c.l.b16 %v358
    %v423 = vunpack.c.l.b16 %v359
    %v424 = vunpack.c.l.b16 %v360
    %v425 = vunpack.c.l.b16 %v361
    %v426 = vunpack.c.l.b16 %v362
    %v427 = vunpack.c.l.b16 %v363
    %v428 = vunpack.c.l.b16 %v364
    %v429 = vunpack.c.l.b16 %v365
    %v430 = vunpack.c.l.b16 %v366
    %v431 = vunpack.c.l.b16 %v367
    %v432 = vunpack.c.l.b16 %v368
    %v433 = vpack.c.b16 %v402, %v401
    %v434 = vpack.c.b16 %v404, %v403
    %v435 = vpack.c.b16 %v406, %v405
    %v436 = vpack.c.b16 %v408, %v407
    %v437 = vpack.c.b16 %v410, %v409
    %v438 = vpack.c.b16 %v412, %v411
    %v439 = vpack.c.b16 %v414, %v413
    %v440 = vpack.c.b16 %v416, %v415
    %v441 = vpack.c.b16 %v418, %v417
    %v442 = vpack.c.b16 %v420, %v419
    %v443 = vpack.c.b16 %v422, %v421
    %v444 = vpack.c.b16 %v424, %v423
    %v445 = vpack.c.b16 %v426, %v425
    %v446 = vpack.c.b16 %v428, %v427
    %v447 = vpack.c.b16 %v430, %v429
    %v448 = vpack.c.b16 %v432, %v431
    %465 = vmatprep.subr.bf16.mxu0 0
    %466 = vmatpush1.bf16.msra.mxu0 %v433
    %467 = vmatprep.subr.bf16.mxu0 0
    %468 = vmatpush1.bf16.msra.mxu0 %v434
    %469 = vmatprep.subr.bf16.mxu0 0
    %470 = vmatpush1.bf16.msra.mxu0 %v435
    %471 = vmatprep.subr.bf16.mxu0 0
    %472 = vmatpush1.bf16.msra.mxu0 %v436
    %473 = vmatprep.subr.bf16.mxu0 0
    %474 = vmatpush1.bf16.msra.mxu0 %v437
    %475 = vmatprep.subr.bf16.mxu0 0
    %476 = vmatpush1.bf16.msra.mxu0 %v438
    %477 = vmatprep.subr.bf16.mxu0 0
    %478 = vmatpush1.bf16.msra.mxu0 %v439
    %479 = vmatprep.subr.bf16.mxu0 0
    %480 = vmatpush1.bf16.msra.mxu0 %v440
    %481 = vmatprep.subr.bf16.mxu0 0
    %482 = vmatpush1.bf16.msra.mxu0 %v441
    %483 = vmatprep.subr.bf16.mxu0 0
    %484 = vmatpush1.bf16.msra.mxu0 %v442
    %485 = vmatprep.subr.bf16.mxu0 0
    %486 = vmatpush1.bf16.msra.mxu0 %v443
    %487 = vmatprep.subr.bf16.mxu0 0
    %488 = vmatpush1.bf16.msra.mxu0 %v444
    %489 = vmatprep.subr.bf16.mxu0 0
    %490 = vmatpush1.bf16.msra.mxu0 %v445
    %491 = vmatprep.subr.bf16.mxu0 0
    %492 = vmatpush1.bf16.msra.mxu0 %v446
    %493 = vmatprep.subr.bf16.mxu0 0
    %494 = vmatpush1.bf16.msra.mxu0 %v447
    %495 = vmatprep.subr.bf16.mxu0 0
    %496 = vmatpush1.bf16.msra.mxu0 %v448
    %497 = vmatprep.mubr.bf16.mxu0 %v336
    %498 = vmatmul.mubr.bf16.gmra.mrb[0].mxu0 %v335
    %v499 = vpop.f32.mrb[0].mxu0
    %v500 = vadd.f32 0.0, %v499
    %v501 = vpop.f32.mrb[0].mxu0
    %v502 = vpop.f32.mrb[0].mxu0
    %v503 = vpop.f32.mrb[0].mxu0
    %504 = vdwg.mxu0
    %v505 = vmul.f32 %v500, 0.03125
    %v506 = vmul.f32 %v505, %v505
    %v508 = vrot.slane %v506, 7
    %v510 = vsub.f32 %v505, %v508
    %v511 = vmax.f32 %v510, 0.0
    %v512 = vld [vmem:[%s3] sm:$0x1]
    %v513 = vadd.f32 %v511, 1e-05
    %v514 = vrsqrt.pop %v513
    %v517 = vunpack.c.l.s4 1966171168
    %v518 = vunpack.c.0.s8 %v517
    %v519 = vlaneseq
    %v520 = vshrl.u32 %v519, 7
    %v521 = vsub.s32 %v518, %v520
    %v522 = vrot.slane %v514, %v521
    %v523 = vcombine.high %v522, %v522
    %v525 = vunpack.c.l.s4 1966171168
    %v526 = vunpack.c.0.s8 %v525
    %v527 = vlaneseq
    %v528 = vshrl.u32 %v527, 7
    %v529 = vsub.s32 %v526, %v528
    %v530 = vrot.slane %v523, %v529
    %v532 = vmul.f32 %v512, %v530
    %v533 = vld [vmem:[%s4] sm:$0x1]
    %v534 = vmul.f32 %v505, %v532
    %v535 = vsub.f32 %v533, %v534
    %v537 = vlaneseq
    %v538 = vshrl.u32 %v537, 7
    %v539 = vsub.s32 0, %v538
    %v540 = vrot.slane %v532, %v539
    %v543 = vlaneseq
    %v544 = vshrl.u32 %v543, 7
    %v545 = vsub.s32 0, %v544
    %v546 = vrot.slane %v535, %v545
    %v548 = vsel %vm332, %v540, %v546
    %v549 = vpack.c.bf16 %v548, %v548
    %v550 = vld [vmem:[%s13] sm:$0xff]
    %v551 = vld [vmem:[%s13 + $0x8] sm:$0xff]
    %v554 = vunpack.c.l.b16 %v550
    %v555 = vunpack.c.h.b16 %v550
    %v556 = vunpack.c.l.b16 %v551
    %v557 = vunpack.c.h.b16 %v551
    %v558 = vpack.c.b16 %v556, %v554
    %v559 = vpack.c.b16 %v557, %v555
    %v563 = vsel %vm254, %v549, 0
    %565 = vmatprep.subr.bf16.mxu0 %v559
    %566 = vmatpush1.bf16.msra.mxu0 %v558
    %567 = vmatprep.subr.bf16.mxu0 0
    %568 = vmatpush1.bf16.msra.mxu0 0
    %569 = vmatprep.subr.bf16.mxu0 0
    %570 = vmatpush1.bf16.msra.mxu0 0
    %571 = vmatprep.subr.bf16.mxu0 0
    %572 = vmatpush1.bf16.msra.mxu0 0
    %573 = vmatprep.subr.bf16.mxu0 0
    %574 = vmatpush1.bf16.msra.mxu0 0
    %575 = vmatprep.subr.bf16.mxu0 0
    %576 = vmatpush1.bf16.msra.mxu0 0
    %577 = vmatprep.subr.bf16.mxu0 0
    %578 = vmatpush1.bf16.msra.mxu0 0
    %579 = vmatprep.subr.bf16.mxu0 0
    %580 = vmatpush1.bf16.msra.mxu0 0
    %581 = vmatprep.subr.bf16.mxu0 0
    %582 = vmatpush1.bf16.msra.mxu0 0
    %583 = vmatprep.subr.bf16.mxu0 0
    %584 = vmatpush1.bf16.msra.mxu0 0
    %585 = vmatprep.subr.bf16.mxu0 0
    %586 = vmatpush1.bf16.msra.mxu0 0
    %587 = vmatprep.subr.bf16.mxu0 0
    %588 = vmatpush1.bf16.msra.mxu0 0
    %589 = vmatprep.subr.bf16.mxu0 0
    %590 = vmatpush1.bf16.msra.mxu0 0
    %591 = vmatprep.subr.bf16.mxu0 0
    %592 = vmatpush1.bf16.msra.mxu0 0
    %593 = vmatprep.subr.bf16.mxu0 0
    %594 = vmatpush1.bf16.msra.mxu0 0
    %595 = vmatprep.subr.bf16.mxu0 0
    %596 = vmatpush1.bf16.msra.mxu0 0
    %597 = vmatprep.mubr.bf16.mxu0 0
    %598 = vmatmul.mubr.bf16.gmra.mrb[0].mxu0 %v563
    %v599 = vpop.f32.mrb[0].mxu0
    %v600 = vadd.f32 0.0, %v599
    %v601 = vpop.f32.mrb[0].mxu0
    %v602 = vadd.f32 0.0, %v601
    %v603 = vpop.f32.mrb[0].mxu0
    %v604 = vpop.f32.mrb[0].mxu0
    %605 = vdwg.mxu0
    %v606 = vlaneseq
    %v607 = vshrl.u32 %v606, 7
    %v608 = vsub.s32 0, %v607
    %v609 = vrot.slane %v600, %v608
    %v610 = vlaneseq
    %v611 = vshrl.u32 %v610, 7
    %v612 = vsub.s32 0, %v611
    %v613 = vrot.slane %v602, %v612
    %v614 = vmul.f32 %v293, %v609
    %v615 = vmul.f32 %v295, %v613
    %v616 = vlaneseq
    %v617 = vshrl.u32 %v616, 7
    %v618 = vsub.s32 1, %v617
    %v619 = vrot.slane %v600, %v618
    %v620 = vlaneseq
    %v621 = vshrl.u32 %v620, 7
    %v622 = vsub.s32 1, %v621
    %v623 = vrot.slane %v602, %v622
    %v624 = vadd.f32 %v614, %v619
    %v625 = vadd.f32 %v615, %v623
    %v626 = vmax.f32 %v624, 0.0
    %v627 = vmax.f32 %v625, 0.0
    %v628 = vpack.c.bf16 %v626, %v626
    %v629 = vpack.c.bf16 %v627, %v627
    %v630 = vld [vmem:[%s5] sm:$0xff]
    %v631 = vld [vmem:[%s5 + $0x8] sm:$0xff]
    %v632 = vld [vmem:[%s5 + $0x10] sm:$0xff]
    %v633 = vld [vmem:[%s5 + $0x18] sm:$0xff]
    %v634 = vld [vmem:[%s5 + $0x20] sm:$0xff]
    %v635 = vld [vmem:[%s5 + $0x28] sm:$0xff]
    %v636 = vld [vmem:[%s5 + $0x30] sm:$0xff]
    %v637 = vld [vmem:[%s5 + $0x38] sm:$0xff]
    %v638 = vld [vmem:[%s5 + $0x40] sm:$0xff]
    %v639 = vld [vmem:[%s5 + $0x48] sm:$0xff]
    %v640 = vld [vmem:[%s5 + $0x50] sm:$0xff]
    %v641 = vld [vmem:[%s5 + $0x58] sm:$0xff]
    %v642 = vld [vmem:[%s5 + $0x60] sm:$0xff]
    %v643 = vld [vmem:[%s5 + $0x68] sm:$0xff]
    %v644 = vld [vmem:[%s5 + $0x70] sm:$0xff]
    %v645 = vld [vmem:[%s5 + $0x78] sm:$0xff]
    %v646 = vld [vmem:[%s5 + $0x80] sm:$0xff]
    %v647 = vld [vmem:[%s5 + $0x88] sm:$0xff]
    %v648 = vld [vmem:[%s5 + $0x90] sm:$0xff]
    %v649 = vld [vmem:[%s5 + $0x98] sm:$0xff]
    %v650 = vld [vmem:[%s5 + $0xa0] sm:$0xff]
    %v651 = vld [vmem:[%s5 + $0xa8] sm:$0xff]
    %v652 = vld [vmem:[%s5 + $0xb0] sm:$0xff]
    %v653 = vld [vmem:[%s5 + $0xb8] sm:$0xff]
    %v654 = vld [vmem:[%s5 + $0xc0] sm:$0xff]
    %v655 = vld [vmem:[%s5 + $0xc8] sm:$0xff]
    %v656 = vld [vmem:[%s5 + $0xd0] sm:$0xff]
    %v657 = vld [vmem:[%s5 + $0xd8] sm:$0xff]
    %v658 = vld [vmem:[%s5 + $0xe0] sm:$0xff]
    %v659 = vld [vmem:[%s5 + $0xe8] sm:$0xff]
    %v660 = vld [vmem:[%s5 + $0xf0] sm:$0xff]
    %v661 = vld [vmem:[%s5 + $0xf8] sm:$0xff]
    %v662 = vld [vmem:[%s5 + $0x100] sm:$0xff]
    %v663 = vld [vmem:[%s5 + $0x108] sm:$0xff]
    %v664 = vld [vmem:[%s5 + $0x110] sm:$0xff]
    %v665 = vld [vmem:[%s5 + $0x118] sm:$0xff]
    %v666 = vld [vmem:[%s5 + $0x120] sm:$0xff]
    %v667 = vld [vmem:[%s5 + $0x128] sm:$0xff]
    %v668 = vld [vmem:[%s5 + $0x130] sm:$0xff]
    %v669 = vld [vmem:[%s5 + $0x138] sm:$0xff]
    %v670 = vld [vmem:[%s5 + $0x140] sm:$0xff]
    %v671 = vld [vmem:[%s5 + $0x148] sm:$0xff]
    %v672 = vld [vmem:[%s5 + $0x150] sm:$0xff]
    %v673 = vld [vmem:[%s5 + $0x158] sm:$0xff]
    %v674 = vld [vmem:[%s5 + $0x160] sm:$0xff]
    %v675 = vld [vmem:[%s5 + $0x168] sm:$0xff]
    %v676 = vld [vmem:[%s5 + $0x170] sm:$0xff]
    %v677 = vld [vmem:[%s5 + $0x178] sm:$0xff]
    %v678 = vld [vmem:[%s5 + $0x180] sm:$0xff]
    %v679 = vld [vmem:[%s5 + $0x188] sm:$0xff]
    %v680 = vld [vmem:[%s5 + $0x190] sm:$0xff]
    %v681 = vld [vmem:[%s5 + $0x198] sm:$0xff]
    %v682 = vld [vmem:[%s5 + $0x1a0] sm:$0xff]
    %v683 = vld [vmem:[%s5 + $0x1a8] sm:$0xff]
    %v684 = vld [vmem:[%s5 + $0x1b0] sm:$0xff]
    %v685 = vld [vmem:[%s5 + $0x1b8] sm:$0xff]
    %v686 = vld [vmem:[%s5 + $0x1c0] sm:$0xff]
    %v687 = vld [vmem:[%s5 + $0x1c8] sm:$0xff]
    %v688 = vld [vmem:[%s5 + $0x1d0] sm:$0xff]
    %v689 = vld [vmem:[%s5 + $0x1d8] sm:$0xff]
    %v690 = vld [vmem:[%s5 + $0x1e0] sm:$0xff]
    %v691 = vld [vmem:[%s5 + $0x1e8] sm:$0xff]
    %v692 = vld [vmem:[%s5 + $0x1f0] sm:$0xff]
    %v693 = vld [vmem:[%s5 + $0x1f8] sm:$0xff]
    %v758 = vunpack.c.l.b16 %v630
    %v759 = vunpack.c.h.b16 %v630
    %v760 = vunpack.c.l.b16 %v631
    %v761 = vunpack.c.h.b16 %v631
    %v762 = vunpack.c.l.b16 %v632
    %v763 = vunpack.c.h.b16 %v632
    %v764 = vunpack.c.l.b16 %v633
    %v765 = vunpack.c.h.b16 %v633
    %v766 = vunpack.c.l.b16 %v634
    %v767 = vunpack.c.h.b16 %v634
    %v768 = vunpack.c.l.b16 %v635
    %v769 = vunpack.c.h.b16 %v635
    %v770 = vunpack.c.l.b16 %v636
    %v771 = vunpack.c.h.b16 %v636
    %v772 = vunpack.c.l.b16 %v637
    %v773 = vunpack.c.h.b16 %v637
    %v774 = vunpack.c.l.b16 %v638
    %v775 = vunpack.c.h.b16 %v638
    %v776 = vunpack.c.l.b16 %v639
    %v777 = vunpack.c.h.b16 %v639
    %v778 = vunpack.c.l.b16 %v640
    %v779 = vunpack.c.h.b16 %v640
    %v780 = vunpack.c.l.b16 %v641
    %v781 = vunpack.c.h.b16 %v641
    %v782 = vunpack.c.l.b16 %v642
    %v783 = vunpack.c.h.b16 %v642
    %v784 = vunpack.c.l.b16 %v643
    %v785 = vunpack.c.h.b16 %v643
    %v786 = vunpack.c.l.b16 %v644
    %v787 = vunpack.c.h.b16 %v644
    %v788 = vunpack.c.l.b16 %v645
    %v789 = vunpack.c.h.b16 %v645
    %v790 = vunpack.c.l.b16 %v646
    %v791 = vunpack.c.h.b16 %v646
    %v792 = vunpack.c.l.b16 %v647
    %v793 = vunpack.c.h.b16 %v647
    %v794 = vunpack.c.l.b16 %v648
    %v795 = vunpack.c.h.b16 %v648
    %v796 = vunpack.c.l.b16 %v649
    %v797 = vunpack.c.h.b16 %v649
    %v798 = vunpack.c.l.b16 %v650
    %v799 = vunpack.c.h.b16 %v650
    %v800 = vunpack.c.l.b16 %v651
    %v801 = vunpack.c.h.b16 %v651
    %v802 = vunpack.c.l.b16 %v652
    %v803 = vunpack.c.h.b16 %v652
    %v804 = vunpack.c.l.b16 %v653
    %v805 = vunpack.c.h.b16 %v653
    %v806 = vunpack.c.l.b16 %v654
    %v807 = vunpack.c.h.b16 %v654
    %v808 = vunpack.c.l.b16 %v655
    %v809 = vunpack.c.h.b16 %v655
    %v810 = vunpack.c.l.b16 %v656
    %v811 = vunpack.c.h.b16 %v656
    %v812 = vunpack.c.l.b16 %v657
    %v813 = vunpack.c.h.b16 %v657
    %v814 = vunpack.c.l.b16 %v658
    %v815 = vunpack.c.h.b16 %v658
    %v816 = vunpack.c.l.b16 %v659
    %v817 = vunpack.c.h.b16 %v659
    %v818 = vunpack.c.l.b16 %v660
    %v819 = vunpack.c.h.b16 %v660
    %v820 = vunpack.c.l.b16 %v661
    %v821 = vunpack.c.h.b16 %v661
    %v822 = vunpack.c.l.b16 %v662
    %v823 = vunpack.c.h.b16 %v662
    %v824 = vunpack.c.l.b16 %v663
    %v825 = vunpack.c.h.b16 %v663
    %v826 = vunpack.c.l.b16 %v664
    %v827 = vunpack.c.h.b16 %v664
    %v828 = vunpack.c.l.b16 %v665
    %v829 = vunpack.c.h.b16 %v665
    %v830 = vunpack.c.l.b16 %v666
    %v831 = vunpack.c.h.b16 %v666
    %v832 = vunpack.c.l.b16 %v667
    %v833 = vunpack.c.h.b16 %v667
    %v834 = vunpack.c.l.b16 %v668
    %v835 = vunpack.c.h.b16 %v668
    %v836 = vunpack.c.l.b16 %v669
    %v837 = vunpack.c.h.b16 %v669
    %v838 = vunpack.c.l.b16 %v670
    %v839 = vunpack.c.h.b16 %v670
    %v840 = vunpack.c.l.b16 %v671
    %v841 = vunpack.c.h.b16 %v671
    %v842 = vunpack.c.l.b16 %v672
    %v843 = vunpack.c.h.b16 %v672
    %v844 = vunpack.c.l.b16 %v673
    %v845 = vunpack.c.h.b16 %v673
    %v846 = vunpack.c.l.b16 %v674
    %v847 = vunpack.c.h.b16 %v674
    %v848 = vunpack.c.l.b16 %v675
    %v849 = vunpack.c.h.b16 %v675
    %v850 = vunpack.c.l.b16 %v676
    %v851 = vunpack.c.h.b16 %v676
    %v852 = vunpack.c.l.b16 %v677
    %v853 = vunpack.c.h.b16 %v677
    %v854 = vunpack.c.l.b16 %v678
    %v855 = vunpack.c.h.b16 %v678
    %v856 = vunpack.c.l.b16 %v679
    %v857 = vunpack.c.h.b16 %v679
    %v858 = vunpack.c.l.b16 %v680
    %v859 = vunpack.c.h.b16 %v680
    %v860 = vunpack.c.l.b16 %v681
    %v861 = vunpack.c.h.b16 %v681
    %v862 = vunpack.c.l.b16 %v682
    %v863 = vunpack.c.h.b16 %v682
    %v864 = vunpack.c.l.b16 %v683
    %v865 = vunpack.c.h.b16 %v683
    %v866 = vunpack.c.l.b16 %v684
    %v867 = vunpack.c.h.b16 %v684
    %v868 = vunpack.c.l.b16 %v685
    %v869 = vunpack.c.h.b16 %v685
    %v870 = vunpack.c.l.b16 %v686
    %v871 = vunpack.c.h.b16 %v686
    %v872 = vunpack.c.l.b16 %v687
    %v873 = vunpack.c.h.b16 %v687
    %v874 = vunpack.c.l.b16 %v688
    %v875 = vunpack.c.h.b16 %v688
    %v876 = vunpack.c.l.b16 %v689
    %v877 = vunpack.c.h.b16 %v689
    %v878 = vunpack.c.l.b16 %v690
    %v879 = vunpack.c.h.b16 %v690
    %v880 = vunpack.c.l.b16 %v691
    %v881 = vunpack.c.h.b16 %v691
    %v882 = vunpack.c.l.b16 %v692
    %v883 = vunpack.c.h.b16 %v692
    %v884 = vunpack.c.l.b16 %v693
    %v885 = vunpack.c.h.b16 %v693
    %v886 = vpack.c.b16 %v762, %v758
    %v887 = vpack.c.b16 %v763, %v759
    %v888 = vpack.c.b16 %v764, %v760
    %v889 = vpack.c.b16 %v765, %v761
    %v890 = vpack.c.b16 %v770, %v766
    %v891 = vpack.c.b16 %v771, %v767
    %v892 = vpack.c.b16 %v772, %v768
    %v893 = vpack.c.b16 %v773, %v769
    %v894 = vpack.c.b16 %v778, %v774
    %v895 = vpack.c.b16 %v779, %v775
    %v896 = vpack.c.b16 %v780, %v776
    %v897 = vpack.c.b16 %v781, %v777
    %v898 = vpack.c.b16 %v786, %v782
    %v899 = vpack.c.b16 %v787, %v783
    %v900 = vpack.c.b16 %v788, %v784
    %v901 = vpack.c.b16 %v789, %v785
    %v902 = vpack.c.b16 %v794, %v790
    %v903 = vpack.c.b16 %v795, %v791
    %v904 = vpack.c.b16 %v796, %v792
    %v905 = vpack.c.b16 %v797, %v793
    %v906 = vpack.c.b16 %v802, %v798
    %v907 = vpack.c.b16 %v803, %v799
    %v908 = vpack.c.b16 %v804, %v800
    %v909 = vpack.c.b16 %v805, %v801
    %v910 = vpack.c.b16 %v810, %v806
    %v911 = vpack.c.b16 %v811, %v807
    %v912 = vpack.c.b16 %v812, %v808
    %v913 = vpack.c.b16 %v813, %v809
    %v914 = vpack.c.b16 %v818, %v814
    %v915 = vpack.c.b16 %v819, %v815
    %v916 = vpack.c.b16 %v820, %v816
    %v917 = vpack.c.b16 %v821, %v817
    %v918 = vpack.c.b16 %v826, %v822
    %v919 = vpack.c.b16 %v827, %v823
    %v920 = vpack.c.b16 %v828, %v824
    %v921 = vpack.c.b16 %v829, %v825
    %v922 = vpack.c.b16 %v834, %v830
    %v923 = vpack.c.b16 %v835, %v831
    %v924 = vpack.c.b16 %v836, %v832
    %v925 = vpack.c.b16 %v837, %v833
    %v926 = vpack.c.b16 %v842, %v838
    %v927 = vpack.c.b16 %v843, %v839
    %v928 = vpack.c.b16 %v844, %v840
    %v929 = vpack.c.b16 %v845, %v841
    %v930 = vpack.c.b16 %v850, %v846
    %v931 = vpack.c.b16 %v851, %v847
    %v932 = vpack.c.b16 %v852, %v848
    %v933 = vpack.c.b16 %v853, %v849
    %v934 = vpack.c.b16 %v858, %v854
    %v935 = vpack.c.b16 %v859, %v855
    %v936 = vpack.c.b16 %v860, %v856
    %v937 = vpack.c.b16 %v861, %v857
    %v938 = vpack.c.b16 %v866, %v862
    %v939 = vpack.c.b16 %v867, %v863
    %v940 = vpack.c.b16 %v868, %v864
    %v941 = vpack.c.b16 %v869, %v865
    %v942 = vpack.c.b16 %v874, %v870
    %v943 = vpack.c.b16 %v875, %v871
    %v944 = vpack.c.b16 %v876, %v872
    %v945 = vpack.c.b16 %v877, %v873
    %v946 = vpack.c.b16 %v882, %v878
    %v947 = vpack.c.b16 %v883, %v879
    %v948 = vpack.c.b16 %v884, %v880
    %v949 = vpack.c.b16 %v885, %v881
    %1014 = vmatprep.subr.bf16.mxu0 %v887
    %1015 = vmatpush1.bf16.msra.mxu0 %v886
    %1016 = vmatprep.subr.bf16.mxu0 %v891
    %1017 = vmatpush1.bf16.msra.mxu0 %v890
    %1018 = vmatprep.subr.bf16.mxu0 %v895
    %1019 = vmatpush1.bf16.msra.mxu0 %v894
    %1020 = vmatprep.subr.bf16.mxu0 %v899
    %1021 = vmatpush1.bf16.msra.mxu0 %v898
    %1022 = vmatprep.subr.bf16.mxu0 %v903
    %1023 = vmatpush1.bf16.msra.mxu0 %v902
    %1024 = vmatprep.subr.bf16.mxu0 %v907
    %1025 = vmatpush1.bf16.msra.mxu0 %v906
    %1026 = vmatprep.subr.bf16.mxu0 %v911
    %1027 = vmatpush1.bf16.msra.mxu0 %v910
    %1028 = vmatprep.subr.bf16.mxu0 %v915
    %1029 = vmatpush1.bf16.msra.mxu0 %v914
    %1030 = vmatprep.subr.bf16.mxu0 %v919
    %1031 = vmatpush1.bf16.msra.mxu0 %v918
    %1032 = vmatprep.subr.bf16.mxu0 %v923
    %1033 = vmatpush1.bf16.msra.mxu0 %v922
    %1034 = vmatprep.subr.bf16.mxu0 %v927
    %1035 = vmatpush1.bf16.msra.mxu0 %v926
    %1036 = vmatprep.subr.bf16.mxu0 %v931
    %1037 = vmatpush1.bf16.msra.mxu0 %v930
    %1038 = vmatprep.subr.bf16.mxu0 %v935
    %1039 = vmatpush1.bf16.msra.mxu0 %v934
    %1040 = vmatprep.subr.bf16.mxu0 %v939
    %1041 = vmatpush1.bf16.msra.mxu0 %v938
    %1042 = vmatprep.subr.bf16.mxu0 %v943
    %1043 = vmatpush1.bf16.msra.mxu0 %v942
    %1044 = vmatprep.subr.bf16.mxu0 %v947
    %1045 = vmatpush1.bf16.msra.mxu0 %v946
    %1046 = vmatprep.mubr.bf16.mxu0 %v629
    %1047 = vmatmul.mubr.bf16.gmra.mrb[0].mxu0 %v628
    %v1048 = vpop.f32.mrb[0].mxu0
    %v1049 = vadd.f32 0.0, %v1048
    %v1050 = vpop.f32.mrb[0].mxu0
    %v1051 = vadd.f32 0.0, %v1050
    %v1052 = vpop.f32.mrb[0].mxu0
    %v1053 = vpop.f32.mrb[0].mxu0
    %1054 = vdwg.mxu0
    %1055 = vmatprep.subr.bf16.mxu0 %v889
    %1056 = vmatpush1.bf16.msra.mxu0 %v888
    %1057 = vmatprep.subr.bf16.mxu0 %v893
    %1058 = vmatpush1.bf16.msra.mxu0 %v892
    %1059 = vmatprep.subr.bf16.mxu0 %v897
    %1060 = vmatpush1.bf16.msra.mxu0 %v896
    %1061 = vmatprep.subr.bf16.mxu0 %v901
    %1062 = vmatpush1.bf16.msra.mxu0 %v900
    %1063 = vmatprep.subr.bf16.mxu0 %v905
    %1064 = vmatpush1.bf16.msra.mxu0 %v904
    %1065 = vmatprep.subr.bf16.mxu0 %v909
    %1066 = vmatpush1.bf16.msra.mxu0 %v908
    %1067 = vmatprep.subr.bf16.mxu0 %v913
    %1068 = vmatpush1.bf16.msra.mxu0 %v912
    %1069 = vmatprep.subr.bf16.mxu0 %v917
    %1070 = vmatpush1.bf16.msra.mxu0 %v916
    %1071 = vmatprep.subr.bf16.mxu0 %v921
    %1072 = vmatpush1.bf16.msra.mxu0 %v920
    %1073 = vmatprep.subr.bf16.mxu0 %v925
    %1074 = vmatpush1.bf16.msra.mxu0 %v924
    %1075 = vmatprep.subr.bf16.mxu0 %v929
    %1076 = vmatpush1.bf16.msra.mxu0 %v928
    %1077 = vmatprep.subr.bf16.mxu0 %v933
    %1078 = vmatpush1.bf16.msra.mxu0 %v932
    %1079 = vmatprep.subr.bf16.mxu0 %v937
    %1080 = vmatpush1.bf16.msra.mxu0 %v936
    %1081 = vmatprep.subr.bf16.mxu0 %v941
    %1082 = vmatpush1.bf16.msra.mxu0 %v940
    %1083 = vmatprep.subr.bf16.mxu0 %v945
    %1084 = vmatpush1.bf16.msra.mxu0 %v944
    %1085 = vmatprep.subr.bf16.mxu0 %v949
    %1086 = vmatpush1.bf16.msra.mxu0 %v948
    %1087 = vmatprep.mubr.bf16.mxu0 %v629
    %1088 = vmatmul.mubr.bf16.gmra.mrb[0].mxu0 %v628
    %v1089 = vpop.f32.mrb[0].mxu0
    %v1090 = vadd.f32 0.0, %v1089
    %v1091 = vpop.f32.mrb[0].mxu0
    %v1092 = vadd.f32 0.0, %v1091
    %v1093 = vpop.f32.mrb[0].mxu0
    %v1094 = vpop.f32.mrb[0].mxu0
    %1095 = vdwg.mxu0
    %v1096 = vsel %vm299, %v1049, 0.0
    %v1097 = vrot.slane %v1096, 4
    %v1098 = vadd.f32 %v1096, %v1097
    %v1099 = vrot.slane %v1098, 2
    %v1100 = vadd.f32 %v1098, %v1099
    %v1101 = vrot.slane %v1100, 1
    %v1102 = vadd.f32 %v1100, %v1101
    %v1103 = vsel %vm299, %v1051, 0.0
    %v1104 = vrot.slane %v1103, 4
    %v1105 = vadd.f32 %v1103, %v1104
    %v1106 = vrot.slane %v1105, 2
    %v1107 = vadd.f32 %v1105, %v1106
    %v1108 = vrot.slane %v1107, 1
    %v1109 = vadd.f32 %v1107, %v1108
    %v1110 = vsel %vm299, %v1090, 0.0
    %v1111 = vrot.slane %v1110, 4
    %v1112 = vadd.f32 %v1110, %v1111
    %v1113 = vrot.slane %v1112, 2
    %v1114 = vadd.f32 %v1112, %v1113
    %v1115 = vrot.slane %v1114, 1
    %v1116 = vadd.f32 %v1114, %v1115
    %v1117 = vsel %vm299, %v1092, 0.0
    %v1118 = vrot.slane %v1117, 4
    %v1119 = vadd.f32 %v1117, %v1118
    %v1120 = vrot.slane %v1119, 2
    %v1121 = vadd.f32 %v1119, %v1120
    %v1122 = vrot.slane %v1121, 1
    %v1123 = vadd.f32 %v1121, %v1122
    %v1124 = vmul.f32 %v1049, %v1049
    %v1125 = vmul.f32 %v1051, %v1051
    %v1126 = vmul.f32 %v1090, %v1090
    %v1127 = vmul.f32 %v1092, %v1092
    %v1128 = vsel %vm299, %v1124, 0.0
    %v1129 = vrot.slane %v1128, 4
    %v1130 = vadd.f32 %v1128, %v1129
    %v1131 = vrot.slane %v1130, 2
    %v1132 = vadd.f32 %v1130, %v1131
    %v1133 = vrot.slane %v1132, 1
    %v1134 = vadd.f32 %v1132, %v1133
    %v1135 = vsel %vm299, %v1125, 0.0
    %v1136 = vrot.slane %v1135, 4
    %v1137 = vadd.f32 %v1135, %v1136
    %v1138 = vrot.slane %v1137, 2
    %v1139 = vadd.f32 %v1137, %v1138
    %v1140 = vrot.slane %v1139, 1
    %v1141 = vadd.f32 %v1139, %v1140
    %v1142 = vsel %vm299, %v1126, 0.0
    %v1143 = vrot.slane %v1142, 4
    %v1144 = vadd.f32 %v1142, %v1143
    %v1145 = vrot.slane %v1144, 2
    %v1146 = vadd.f32 %v1144, %v1145
    %v1147 = vrot.slane %v1146, 1
    %v1148 = vadd.f32 %v1146, %v1147
    %v1149 = vsel %vm299, %v1127, 0.0
    %v1150 = vrot.slane %v1149, 4
    %v1151 = vadd.f32 %v1149, %v1150
    %v1152 = vrot.slane %v1151, 2
    %v1153 = vadd.f32 %v1151, %v1152
    %v1154 = vrot.slane %v1153, 1
    %v1155 = vadd.f32 %v1153, %v1154
    %v1156 = vsel %vm332, %v1102, %v1134
    %v1157 = vsel %vm332, %v1109, %v1141
    %v1158 = vsel %vm332, %v1116, %v1148
    %v1159 = vsel %vm332, %v1123, %v1155
    %v1160 = vpack.c.bf16 %v1156, %v1156
    %v1161 = vpack.c.bf16 %v1157, %v1157
    %v1162 = vpack.c.bf16 %v1158, %v1158
    %v1163 = vpack.c.bf16 %v1159, %v1159
    %v1164 = vld [vmem:[%s14] sm:$0xf]
    %v1165 = vld [vmem:[%s14 + $0x4] sm:$0xf]
    %v1166 = vld [vmem:[%s14 + $0x8] sm:$0xf]
    %v1167 = vld [vmem:[%s14 + $0xc] sm:$0xf]
    %v1168 = vld [vmem:[%s14 + $0x10] sm:$0xf]
    %v1169 = vld [vmem:[%s14 + $0x14] sm:$0xf]
    %v1170 = vld [vmem:[%s14 + $0x18] sm:$0xf]
    %v1171 = vld [vmem:[%s14 + $0x1c] sm:$0xf]
    %v1172 = vld [vmem:[%s14 + $0x20] sm:$0xf]
    %v1173 = vld [vmem:[%s14 + $0x24] sm:$0xf]
    %v1174 = vld [vmem:[%s14 + $0x28] sm:$0xf]
    %v1175 = vld [vmem:[%s14 + $0x2c] sm:$0xf]
    %v1176 = vld [vmem:[%s14 + $0x30] sm:$0xf]
    %v1177 = vld [vmem:[%s14 + $0x34] sm:$0xf]
    %v1178 = vld [vmem:[%s14 + $0x38] sm:$0xf]
    %v1179 = vld [vmem:[%s14 + $0x3c] sm:$0xf]
    %v1180 = vld [vmem:[%s14 + $0x40] sm:$0xf]
    %v1181 = vld [vmem:[%s14 + $0x44] sm:$0xf]
    %v1182 = vld [vmem:[%s14 + $0x48] sm:$0xf]
    %v1183 = vld [vmem:[%s14 + $0x4c] sm:$0xf]
    %v1184 = vld [vmem:[%s14 + $0x50] sm:$0xf]
    %v1185 = vld [vmem:[%s14 + $0x54] sm:$0xf]
    %v1186 = vld [vmem:[%s14 + $0x58] sm:$0xf]
    %v1187 = vld [vmem:[%s14 + $0x5c] sm:$0xf]
    %v1188 = vld [vmem:[%s14 + $0x60] sm:$0xf]
    %v1189 = vld [vmem:[%s14 + $0x64] sm:$0xf]
    %v1190 = vld [vmem:[%s14 + $0x68] sm:$0xf]
    %v1191 = vld [vmem:[%s14 + $0x6c] sm:$0xf]
    %v1192 = vld [vmem:[%s14 + $0x70] sm:$0xf]
    %v1193 = vld [vmem:[%s14 + $0x74] sm:$0xf]
    %v1194 = vld [vmem:[%s14 + $0x78] sm:$0xf]
    %v1195 = vld [vmem:[%s14 + $0x7c] sm:$0xf]
    %v1196 = vld [vmem:[%s14 + $0x80] sm:$0xf]
    %v1197 = vld [vmem:[%s14 + $0x84] sm:$0xf]
    %v1198 = vld [vmem:[%s14 + $0x88] sm:$0xf]
    %v1199 = vld [vmem:[%s14 + $0x8c] sm:$0xf]
    %v1200 = vld [vmem:[%s14 + $0x90] sm:$0xf]
    %v1201 = vld [vmem:[%s14 + $0x94] sm:$0xf]
    %v1202 = vld [vmem:[%s14 + $0x98] sm:$0xf]
    %v1203 = vld [vmem:[%s14 + $0x9c] sm:$0xf]
    %v1204 = vld [vmem:[%s14 + $0xa0] sm:$0xf]
    %v1205 = vld [vmem:[%s14 + $0xa4] sm:$0xf]
    %v1206 = vld [vmem:[%s14 + $0xa8] sm:$0xf]
    %v1207 = vld [vmem:[%s14 + $0xac] sm:$0xf]
    %v1208 = vld [vmem:[%s14 + $0xb0] sm:$0xf]
    %v1209 = vld [vmem:[%s14 + $0xb4] sm:$0xf]
    %v1210 = vld [vmem:[%s14 + $0xb8] sm:$0xf]
    %v1211 = vld [vmem:[%s14 + $0xbc] sm:$0xf]
    %v1212 = vld [vmem:[%s14 + $0xc0] sm:$0xf]
    %v1213 = vld [vmem:[%s14 + $0xc4] sm:$0xf]
    %v1214 = vld [vmem:[%s14 + $0xc8] sm:$0xf]
    %v1215 = vld [vmem:[%s14 + $0xcc] sm:$0xf]
    %v1216 = vld [vmem:[%s14 + $0xd0] sm:$0xf]
    %v1217 = vld [vmem:[%s14 + $0xd4] sm:$0xf]
    %v1218 = vld [vmem:[%s14 + $0xd8] sm:$0xf]
    %v1219 = vld [vmem:[%s14 + $0xdc] sm:$0xf]
    %v1220 = vld [vmem:[%s14 + $0xe0] sm:$0xf]
    %v1221 = vld [vmem:[%s14 + $0xe4] sm:$0xf]
    %v1222 = vld [vmem:[%s14 + $0xe8] sm:$0xf]
    %v1223 = vld [vmem:[%s14 + $0xec] sm:$0xf]
    %v1224 = vld [vmem:[%s14 + $0xf0] sm:$0xf]
    %v1225 = vld [vmem:[%s14 + $0xf4] sm:$0xf]
    %v1226 = vld [vmem:[%s14 + $0xf8] sm:$0xf]
    %v1227 = vld [vmem:[%s14 + $0xfc] sm:$0xf]
    %v1292 = vunpack.c.l.b16 %v1164
    %v1293 = vunpack.c.l.b16 %v1165
    %v1294 = vunpack.c.l.b16 %v1166
    %v1295 = vunpack.c.l.b16 %v1167
    %v1296 = vunpack.c.l.b16 %v1168
    %v1297 = vunpack.c.l.b16 %v1169
    %v1298 = vunpack.c.l.b16 %v1170
    %v1299 = vunpack.c.l.b16 %v1171
    %v1300 = vunpack.c.l.b16 %v1172
    %v1301 = vunpack.c.l.b16 %v1173
    %v1302 = vunpack.c.l.b16 %v1174
    %v1303 = vunpack.c.l.b16 %v1175
    %v1304 = vunpack.c.l.b16 %v1176
    %v1305 = vunpack.c.l.b16 %v1177
    %v1306 = vunpack.c.l.b16 %v1178
    %v1307 = vunpack.c.l.b16 %v1179
    %v1308 = vunpack.c.l.b16 %v1180
    %v1309 = vunpack.c.l.b16 %v1181
    %v1310 = vunpack.c.l.b16 %v1182
    %v1311 = vunpack.c.l.b16 %v1183
    %v1312 = vunpack.c.l.b16 %v1184
    %v1313 = vunpack.c.l.b16 %v1185
    %v1314 = vunpack.c.l.b16 %v1186
    %v1315 = vunpack.c.l.b16 %v1187
    %v1316 = vunpack.c.l.b16 %v1188
    %v1317 = vunpack.c.l.b16 %v1189
    %v1318 = vunpack.c.l.b16 %v1190
    %v1319 = vunpack.c.l.b16 %v1191
    %v1320 = vunpack.c.l.b16 %v1192
    %v1321 = vunpack.c.l.b16 %v1193
    %v1322 = vunpack.c.l.b16 %v1194
    %v1323 = vunpack.c.l.b16 %v1195
    %v1324 = vunpack.c.l.b16 %v1196
    %v1325 = vunpack.c.l.b16 %v1197
    %v1326 = vunpack.c.l.b16 %v1198
    %v1327 = vunpack.c.l.b16 %v1199
    %v1328 = vunpack.c.l.b16 %v1200
    %v1329 = vunpack.c.l.b16 %v1201
    %v1330 = vunpack.c.l.b16 %v1202
    %v1331 = vunpack.c.l.b16 %v1203
    %v1332 = vunpack.c.l.b16 %v1204
    %v1333 = vunpack.c.l.b16 %v1205
    %v1334 = vunpack.c.l.b16 %v1206
    %v1335 = vunpack.c.l.b16 %v1207
    %v1336 = vunpack.c.l.b16 %v1208
    %v1337 = vunpack.c.l.b16 %v1209
    %v1338 = vunpack.c.l.b16 %v1210
    %v1339 = vunpack.c.l.b16 %v1211
    %v1340 = vunpack.c.l.b16 %v1212
    %v1341 = vunpack.c.l.b16 %v1213
    %v1342 = vunpack.c.l.b16 %v1214
    %v1343 = vunpack.c.l.b16 %v1215
    %v1344 = vunpack.c.l.b16 %v1216
    %v1345 = vunpack.c.l.b16 %v1217
    %v1346 = vunpack.c.l.b16 %v1218
    %v1347 = vunpack.c.l.b16 %v1219
    %v1348 = vunpack.c.l.b16 %v1220
    %v1349 = vunpack.c.l.b16 %v1221
    %v1350 = vunpack.c.l.b16 %v1222
    %v1351 = vunpack.c.l.b16 %v1223
    %v1352 = vunpack.c.l.b16 %v1224
    %v1353 = vunpack.c.l.b16 %v1225
    %v1354 = vunpack.c.l.b16 %v1226
    %v1355 = vunpack.c.l.b16 %v1227
    %v1356 = vpack.c.b16 %v1293, %v1292
    %v1357 = vpack.c.b16 %v1295, %v1294
    %v1358 = vpack.c.b16 %v1297, %v1296
    %v1359 = vpack.c.b16 %v1299, %v1298
    %v1360 = vpack.c.b16 %v1301, %v1300
    %v1361 = vpack.c.b16 %v1303, %v1302
    %v1362 = vpack.c.b16 %v1305, %v1304
    %v1363 = vpack.c.b16 %v1307, %v1306
    %v1364 = vpack.c.b16 %v1309, %v1308
    %v1365 = vpack.c.b16 %v1311, %v1310
    %v1366 = vpack.c.b16 %v1313, %v1312
    %v1367 = vpack.c.b16 %v1315, %v1314
    %v1368 = vpack.c.b16 %v1317, %v1316
    %v1369 = vpack.c.b16 %v1319, %v1318
    %v1370 = vpack.c.b16 %v1321, %v1320
    %v1371 = vpack.c.b16 %v1323, %v1322
    %v1372 = vpack.c.b16 %v1325, %v1324
    %v1373 = vpack.c.b16 %v1327, %v1326
    %v1374 = vpack.c.b16 %v1329, %v1328
    %v1375 = vpack.c.b16 %v1331, %v1330
    %v1376 = vpack.c.b16 %v1333, %v1332
    %v1377 = vpack.c.b16 %v1335, %v1334
    %v1378 = vpack.c.b16 %v1337, %v1336
    %v1379 = vpack.c.b16 %v1339, %v1338
    %v1380 = vpack.c.b16 %v1341, %v1340
    %v1381 = vpack.c.b16 %v1343, %v1342
    %v1382 = vpack.c.b16 %v1345, %v1344
    %v1383 = vpack.c.b16 %v1347, %v1346
    %v1384 = vpack.c.b16 %v1349, %v1348
    %v1385 = vpack.c.b16 %v1351, %v1350
    %v1386 = vpack.c.b16 %v1353, %v1352
    %v1387 = vpack.c.b16 %v1355, %v1354
    %1420 = vmatprep.subr.bf16.mxu0 0
    %1421 = vmatpush1.bf16.msra.mxu0 %v1356
    %1422 = vmatprep.subr.bf16.mxu0 0
    %1423 = vmatpush1.bf16.msra.mxu0 %v1357
    %1424 = vmatprep.subr.bf16.mxu0 0
    %1425 = vmatpush1.bf16.msra.mxu0 %v1358
    %1426 = vmatprep.subr.bf16.mxu0 0
    %1427 = vmatpush1.bf16.msra.mxu0 %v1359
    %1428 = vmatprep.subr.bf16.mxu0 0
    %1429 = vmatpush1.bf16.msra.mxu0 %v1360
    %1430 = vmatprep.subr.bf16.mxu0 0
    %1431 = vmatpush1.bf16.msra.mxu0 %v1361
    %1432 = vmatprep.subr.bf16.mxu0 0
    %1433 = vmatpush1.bf16.msra.mxu0 %v1362
    %1434 = vmatprep.subr.bf16.mxu0 0
    %1435 = vmatpush1.bf16.msra.mxu0 %v1363
    %1436 = vmatprep.subr.bf16.mxu0 0
    %1437 = vmatpush1.bf16.msra.mxu0 %v1364
    %1438 = vmatprep.subr.bf16.mxu0 0
    %1439 = vmatpush1.bf16.msra.mxu0 %v1365
    %1440 = vmatprep.subr.bf16.mxu0 0
    %1441 = vmatpush1.bf16.msra.mxu0 %v1366
    %1442 = vmatprep.subr.bf16.mxu0 0
    %1443 = vmatpush1.bf16.msra.mxu0 %v1367
    %1444 = vmatprep.subr.bf16.mxu0 0
    %1445 = vmatpush1.bf16.msra.mxu0 %v1368
    %1446 = vmatprep.subr.bf16.mxu0 0
    %1447 = vmatpush1.bf16.msra.mxu0 %v1369
    %1448 = vmatprep.subr.bf16.mxu0 0
    %1449 = vmatpush1.bf16.msra.mxu0 %v1370
    %1450 = vmatprep.subr.bf16.mxu0 0
    %1451 = vmatpush1.bf16.msra.mxu0 %v1371
    %1452 = vmatprep.mubr.bf16.mxu0 %v1161
    %1453 = vmatmul.mubr.bf16.gmra.mrb[0].mxu0 %v1160
    %v1454 = vpop.f32.mrb[0].mxu0
    %v1455 = vadd.f32 0.0, %v1454
    %v1456 = vpop.f32.mrb[0].mxu0
    %v1457 = vpop.f32.mrb[0].mxu0
    %v1458 = vpop.f32.mrb[0].mxu0
    %1459 = vdwg.mxu0
    %1460 = vmatprep.subr.bf16.mxu0 0
    %1461 = vmatpush1.bf16.msra.mxu0 %v1372
    %1462 = vmatprep.subr.bf16.mxu0 0
    %1463 = vmatpush1.bf16.msra.mxu0 %v1373
    %1464 = vmatprep.subr.bf16.mxu0 0
    %1465 = vmatpush1.bf16.msra.mxu0 %v1374
    %1466 = vmatprep.subr.bf16.mxu0 0
    %1467 = vmatpush1.bf16.msra.mxu0 %v1375
    %1468 = vmatprep.subr.bf16.mxu0 0
    %1469 = vmatpush1.bf16.msra.mxu0 %v1376
    %1470 = vmatprep.subr.bf16.mxu0 0
    %1471 = vmatpush1.bf16.msra.mxu0 %v1377
    %1472 = vmatprep.subr.bf16.mxu0 0
    %1473 = vmatpush1.bf16.msra.mxu0 %v1378
    %1474 = vmatprep.subr.bf16.mxu0 0
    %1475 = vmatpush1.bf16.msra.mxu0 %v1379
    %1476 = vmatprep.subr.bf16.mxu0 0
    %1477 = vmatpush1.bf16.msra.mxu0 %v1380
    %1478 = vmatprep.subr.bf16.mxu0 0
    %1479 = vmatpush1.bf16.msra.mxu0 %v1381
    %1480 = vmatprep.subr.bf16.mxu0 0
    %1481 = vmatpush1.bf16.msra.mxu0 %v1382
    %1482 = vmatprep.subr.bf16.mxu0 0
    %1483 = vmatpush1.bf16.msra.mxu0 %v1383
    %1484 = vmatprep.subr.bf16.mxu0 0
    %1485 = vmatpush1.bf16.msra.mxu0 %v1384
    %1486 = vmatprep.subr.bf16.mxu0 0
    %1487 = vmatpush1.bf16.msra.mxu0 %v1385
    %1488 = vmatprep.subr.bf16.mxu0 0
    %1489 = vmatpush1.bf16.msra.mxu0 %v1386
    %1490 = vmatprep.subr.bf16.mxu0 0
    %1491 = vmatpush1.bf16.msra.mxu0 %v1387
    %1492 = vmatprep.mubr.bf16.mxu0 %v1163
    %1493 = vmatmul.mubr.bf16.gmra.mrb[0].mxu0 %v1162
    %v1494 = vpop.f32.mrb[0].mxu0
    %v1495 = vadd.f32 %v1455, %v1494
    %v1496 = vpop.f32.mrb[0].mxu0
    %v1497 = vpop.f32.mrb[0].mxu0
    %v1498 = vpop.f32.mrb[0].mxu0
    %1499 = vdwg.mxu0
    %v1500 = vmul.f32 %v1495, 0.0078125
    %v1501 = vmul.f32 %v1500, %v1500
    %v1503 = vrot.slane %v1501, 7
    %v1505 = vsub.f32 %v1500, %v1503
    %v1506 = vmax.f32 %v1505, 0.0
    %v1507 = vld [vmem:[%s6] sm:$0x1]
    %v1508 = vadd.f32 %v1506, 1e-05
    %v1509 = vrsqrt.pop %v1508
    %v1512 = vunpack.c.l.s4 1966171168
    %v1513 = vunpack.c.0.s8 %v1512
    %v1514 = vlaneseq
    %v1515 = vshrl.u32 %v1514, 7
    %v1516 = vsub.s32 %v1513, %v1515
    %v1517 = vrot.slane %v1509, %v1516
    %v1518 = vcombine.high %v1517, %v1517
    %v1520 = vunpack.c.l.s4 1966171168
    %v1521 = vunpack.c.0.s8 %v1520
    %v1522 = vlaneseq
    %v1523 = vshrl.u32 %v1522, 7
    %v1524 = vsub.s32 %v1521, %v1523
    %v1525 = vrot.slane %v1518, %v1524
    %v1527 = vmul.f32 %v1507, %v1525
    %v1528 = vld [vmem:[%s7] sm:$0x1]
    %v1529 = vmul.f32 %v1500, %v1527
    %v1530 = vsub.f32 %v1528, %v1529
    %v1532 = vlaneseq
    %v1533 = vshrl.u32 %v1532, 7
    %v1534 = vsub.s32 0, %v1533
    %v1535 = vrot.slane %v1527, %v1534
    %v1538 = vlaneseq
    %v1539 = vshrl.u32 %v1538, 7
    %v1540 = vsub.s32 0, %v1539
    %v1541 = vrot.slane %v1530, %v1540
    %v1543 = vsel %vm332, %v1535, %v1541
    %v1544 = vpack.c.bf16 %v1543, %v1543
    %v1545 = vld [vmem:[%s15] sm:$0xff]
    %v1546 = vld [vmem:[%s15 + $0x8] sm:$0xff]
    %v1549 = vunpack.c.l.b16 %v1545
    %v1550 = vunpack.c.h.b16 %v1545
    %v1551 = vunpack.c.l.b16 %v1546
    %v1552 = vunpack.c.h.b16 %v1546
    %v1553 = vpack.c.b16 %v1549, %v1549
    %v1554 = vpack.c.b16 %v1550, %v1550
    %v1555 = vpack.c.b16 %v1551, %v1551
    %v1556 = vpack.c.b16 %v1552, %v1552
    %vm1557 = vcmask 64512
    %v1559 = vsel %vm1557, %v1544, 0
    %vm1561 = vcmask 1043456
    %v1563 = vsel %vm1561, %v1553, 0
    %v1566 = vsel %vm1561, %v1554, 0
    %v1569 = vsel %vm1561, %v1555, 0
    %v1572 = vsel %vm1561, %v1556, 0
    %1574 = vmatprep.subr.bf16.mxu0 %v1566
    %1575 = vmatpush1.bf16.msra.mxu0 %v1563
    %1576 = vmatprep.subr.bf16.mxu0 0
    %1577 = vmatpush1.bf16.msra.mxu0 0
    %1578 = vmatprep.subr.bf16.mxu0 0
    %1579 = vmatpush1.bf16.msra.mxu0 0
    %1580 = vmatprep.subr.bf16.mxu0 0
    %1581 = vmatpush1.bf16.msra.mxu0 0
    %1582 = vmatprep.subr.bf16.mxu0 0
    %1583 = vmatpush1.bf16.msra.mxu0 0
    %1584 = vmatprep.subr.bf16.mxu0 0
    %1585 = vmatpush1.bf16.msra.mxu0 0
    %1586 = vmatprep.subr.bf16.mxu0 0
    %1587 = vmatpush1.bf16.msra.mxu0 0
    %1588 = vmatprep.subr.bf16.mxu0 0
    %1589 = vmatpush1.bf16.msra.mxu0 0
    %1590 = vmatprep.subr.bf16.mxu0 0
    %1591 = vmatpush1.bf16.msra.mxu0 0
    %1592 = vmatprep.subr.bf16.mxu0 0
    %1593 = vmatpush1.bf16.msra.mxu0 0
    %1594 = vmatprep.subr.bf16.mxu0 0
    %1595 = vmatpush1.bf16.msra.mxu0 0
    %1596 = vmatprep.subr.bf16.mxu0 0
    %1597 = vmatpush1.bf16.msra.mxu0 0
    %1598 = vmatprep.subr.bf16.mxu0 0
    %1599 = vmatpush1.bf16.msra.mxu0 0
    %1600 = vmatprep.subr.bf16.mxu0 0
    %1601 = vmatpush1.bf16.msra.mxu0 0
    %1602 = vmatprep.subr.bf16.mxu0 0
    %1603 = vmatpush1.bf16.msra.mxu0 0
    %1604 = vmatprep.subr.bf16.mxu0 0
    %1605 = vmatpush1.bf16.msra.mxu0 0
    %1606 = vmatprep.mubr.bf16.mxu0 0
    %1607 = vmatmul.mubr.bf16.gmra.mrb[0].mxu0 %v1559
    %v1608 = vpop.f32.mrb[0].mxu0
    %v1609 = vadd.f32 0.0, %v1608
    %v1610 = vpop.f32.mrb[0].mxu0
    %v1611 = vadd.f32 0.0, %v1610
    %v1612 = vpop.f32.mrb[0].mxu0
    %v1613 = vpop.f32.mrb[0].mxu0
    %1614 = vdwg.mxu0
    %1615 = vmatprep.subr.bf16.mxu0 %v1572
    %1616 = vmatpush1.bf16.msra.mxu0 %v1569
    %1617 = vmatprep.subr.bf16.mxu0 0
    %1618 = vmatpush1.bf16.msra.mxu0 0
    %1619 = vmatprep.subr.bf16.mxu0 0
    %1620 = vmatpush1.bf16.msra.mxu0 0
    %1621 = vmatprep.subr.bf16.mxu0 0
    %1622 = vmatpush1.bf16.msra.mxu0 0
    %1623 = vmatprep.subr.bf16.mxu0 0
    %1624 = vmatpush1.bf16.msra.mxu0 0
    %1625 = vmatprep.subr.bf16.mxu0 0
    %1626 = vmatpush1.bf16.msra.mxu0 0
    %1627 = vmatprep.subr.bf16.mxu0 0
    %1628 = vmatpush1.bf16.msra.mxu0 0
    %1629 = vmatprep.subr.bf16.mxu0 0
    %1630 = vmatpush1.bf16.msra.mxu0 0
    %1631 = vmatprep.subr.bf16.mxu0 0
    %1632 = vmatpush1.bf16.msra.mxu0 0
    %1633 = vmatprep.subr.bf16.mxu0 0
    %1634 = vmatpush1.bf16.msra.mxu0 0
    %1635 = vmatprep.subr.bf16.mxu0 0
    %1636 = vmatpush1.bf16.msra.mxu0 0
    %1637 = vmatprep.subr.bf16.mxu0 0
    %1638 = vmatpush1.bf16.msra.mxu0 0
    %1639 = vmatprep.subr.bf16.mxu0 0
    %1640 = vmatpush1.bf16.msra.mxu0 0
    %1641 = vmatprep.subr.bf16.mxu0 0
    %1642 = vmatpush1.bf16.msra.mxu0 0
    %1643 = vmatprep.subr.bf16.mxu0 0
    %1644 = vmatpush1.bf16.msra.mxu0 0
    %1645 = vmatprep.subr.bf16.mxu0 0
    %1646 = vmatpush1.bf16.msra.mxu0 0
    %1647 = vmatprep.mubr.bf16.mxu0 0
    %1648 = vmatmul.mubr.bf16.gmra.mrb[0].mxu0 %v1559
    %v1649 = vpop.f32.mrb[0].mxu0
    %v1650 = vadd.f32 0.0, %v1649
    %v1651 = vpop.f32.mrb[0].mxu0
    %v1652 = vadd.f32 0.0, %v1651
    %v1653 = vpop.f32.mrb[0].mxu0
    %v1654 = vpop.f32.mrb[0].mxu0
    %1655 = vdwg.mxu0
    %v1656 = vlaneseq
    %v1657 = vshrl.u32 %v1656, 7
    %v1658 = vsub.s32 0, %v1657
    %v1659 = vrot.slane %v1609, %v1658
    %v1660 = vlaneseq
    %v1661 = vshrl.u32 %v1660, 7
    %v1662 = vsub.s32 0, %v1661
    %v1663 = vrot.slane %v1611, %v1662
    %v1664 = vlaneseq
    %v1665 = vshrl.u32 %v1664, 7
    %v1666 = vsub.s32 0, %v1665
    %v1667 = vrot.slane %v1650, %v1666
    %v1668 = vlaneseq
    %v1669 = vshrl.u32 %v1668, 7
    %v1670 = vsub.s32 0, %v1669
    %v1671 = vrot.slane %v1652, %v1670
    %v1672 = vmul.f32 %v1049, %v1659
    %v1673 = vmul.f32 %v1051, %v1663
    %v1674 = vmul.f32 %v1090, %v1667
    %v1675 = vmul.f32 %v1092, %v1671
    %v1676 = vlaneseq
    %v1677 = vshrl.u32 %v1676, 7
    %v1678 = vsub.s32 1, %v1677
    %v1679 = vrot.slane %v1609, %v1678
    %v1680 = vlaneseq
    %v1681 = vshrl.u32 %v1680, 7
    %v1682 = vsub.s32 1, %v1681
    %v1683 = vrot.slane %v1611, %v1682
    %v1684 = vlaneseq
    %v1685 = vshrl.u32 %v1684, 7
    %v1686 = vsub.s32 1, %v1685
    %v1687 = vrot.slane %v1650, %v1686
    %v1688 = vlaneseq
    %v1689 = vshrl.u32 %v1688, 7
    %v1690 = vsub.s32 1, %v1689
    %v1691 = vrot.slane %v1652, %v1690
    %v1692 = vadd.f32 %v1672, %v1679
    %v1693 = vadd.f32 %v1673, %v1683
    %v1694 = vadd.f32 %v1674, %v1687
    %v1695 = vadd.f32 %v1675, %v1691
    %v1696 = vmax.f32 %v1692, 0.0
    %v1697 = vmax.f32 %v1693, 0.0
    %v1698 = vmax.f32 %v1694, 0.0
    %v1699 = vmax.f32 %v1695, 0.0
    %s1700 = smul.u32 4, 64
    %s1701 = smul.u32 %s1700, 6
    %s1702 = sshll.u32 %s1701, 4
    %1703 = dma.done [#allocation7], %s1702
    %v1704 = vpack.c.bf16 %v1696, %v1696
    %v1705 = vpack.c.bf16 %v1697, %v1697
    %v1706 = vpack.c.bf16 %v1698, %v1698
    %v1707 = vpack.c.bf16 %v1699, %v1699
    %v1708 = vld [vmem:[#allocation2] sm:$0xff]
    %v1709 = vld [vmem:[#allocation2 + $0x8] sm:$0xff]
    %v1710 = vld [vmem:[#allocation2 + $0x10] sm:$0xff]
    %v1711 = vld [vmem:[#allocation2 + $0x18] sm:$0xff]
    %v1712 = vld [vmem:[#allocation2 + $0x20] sm:$0xff]
    %v1713 = vld [vmem:[#allocation2 + $0x28] sm:$0xff]
    %v1714 = vld [vmem:[#allocation2 + $0x30] sm:$0xff]
    %v1715 = vld [vmem:[#allocation2 + $0x38] sm:$0xff]
    %v1716 = vld [vmem:[#allocation2 + $0x40] sm:$0xff]
    %v1717 = vld [vmem:[#allocation2 + $0x48] sm:$0xff]
    %v1718 = vld [vmem:[#allocation2 + $0x50] sm:$0xff]
    %v1719 = vld [vmem:[#allocation2 + $0x58] sm:$0xff]
    %v1720 = vld [vmem:[#allocation2 + $0x60] sm:$0xff]
    %v1721 = vld [vmem:[#allocation2 + $0x68] sm:$0xff]
    %v1722 = vld [vmem:[#allocation2 + $0x70] sm:$0xff]
    %v1723 = vld [vmem:[#allocation2 + $0x78] sm:$0xff]
    %v1724 = vld [vmem:[#allocation2 + $0x80] sm:$0xff]
    %v1725 = vld [vmem:[#allocation2 + $0x88] sm:$0xff]
    %v1726 = vld [vmem:[#allocation2 + $0x90] sm:$0xff]
    %v1727 = vld [vmem:[#allocation2 + $0x98] sm:$0xff]
    %v1728 = vld [vmem:[#allocation2 + $0xa0] sm:$0xff]
    %v1729 = vld [vmem:[#allocation2 + $0xa8] sm:$0xff]
    %v1730 = vld [vmem:[#allocation2 + $0xb0] sm:$0xff]
    %v1731 = vld [vmem:[#allocation2 + $0xb8] sm:$0xff]
    %v1732 = vld [vmem:[#allocation2 + $0xc0] sm:$0xff]
    %v1733 = vld [vmem:[#allocation2 + $0xc8] sm:$0xff]
    %v1734 = vld [vmem:[#allocation2 + $0xd0] sm:$0xff]
    %v1735 = vld [vmem:[#allocation2 + $0xd8] sm:$0xff]
    %v1736 = vld [vmem:[#allocation2 + $0xe0] sm:$0xff]
    %v1737 = vld [vmem:[#allocation2 + $0xe8] sm:$0xff]
    %v1738 = vld [vmem:[#allocation2 + $0xf0] sm:$0xff]
    %v1739 = vld [vmem:[#allocation2 + $0xf8] sm:$0xff]
    %v1740 = vld [vmem:[#allocation2 + $0x100] sm:$0xff]
    %v1741 = vld [vmem:[#allocation2 + $0x108] sm:$0xff]
    %v1742 = vld [vmem:[#allocation2 + $0x110] sm:$0xff]
    %v1743 = vld [vmem:[#allocation2 + $0x118] sm:$0xff]
    %v1744 = vld [vmem:[#allocation2 + $0x120] sm:$0xff]
    %v1745 = vld [vmem:[#allocation2 + $0x128] sm:$0xff]
    %v1746 = vld [vmem:[#allocation2 + $0x130] sm:$0xff]
    %v1747 = vld [vmem:[#allocation2 + $0x138] sm:$0xff]
    %v1748 = vld [vmem:[#allocation2 + $0x140] sm:$0xff]
    %v1749 = vld [vmem:[#allocation2 + $0x148] sm:$0xff]
    %v1750 = vld [vmem:[#allocation2 + $0x150] sm:$0xff]
    %v1751 = vld [vmem:[#allocation2 + $0x158] sm:$0xff]
    %v1752 = vld [vmem:[#allocation2 + $0x160] sm:$0xff]
    %v1753 = vld [vmem:[#allocation2 + $0x168] sm:$0xff]
    %v1754 = vld [vmem:[#allocation2 + $0x170] sm:$0xff]
    %v1755 = vld [vmem:[#allocation2 + $0x178] sm:$0xff]
    %v1756 = vld [vmem:[#allocation2 + $0x180] sm:$0xff]
    %v1757 = vld [vmem:[#allocation2 + $0x188] sm:$0xff]
    %v1758 = vld [vmem:[#allocation2 + $0x190] sm:$0xff]
    %v1759 = vld [vmem:[#allocation2 + $0x198] sm:$0xff]
    %v1760 = vld [vmem:[#allocation2 + $0x1a0] sm:$0xff]
    %v1761 = vld [vmem:[#allocation2 + $0x1a8] sm:$0xff]
    %v1762 = vld [vmem:[#allocation2 + $0x1b0] sm:$0xff]
    %v1763 = vld [vmem:[#allocation2 + $0x1b8] sm:$0xff]
    %v1764 = vld [vmem:[#allocation2 + $0x1c0] sm:$0xff]
    %v1765 = vld [vmem:[#allocation2 + $0x1c8] sm:$0xff]
    %v1766 = vld [vmem:[#allocation2 + $0x1d0] sm:$0xff]
    %v1767 = vld [vmem:[#allocation2 + $0x1d8] sm:$0xff]
    %v1768 = vld [vmem:[#allocation2 + $0x1e0] sm:$0xff]
    %v1769 = vld [vmem:[#allocation2 + $0x1e8] sm:$0xff]
    %v1770 = vld [vmem:[#allocation2 + $0x1f0] sm:$0xff]
    %v1771 = vld [vmem:[#allocation2 + $0x1f8] sm:$0xff]
    %v1772 = vld [vmem:[#allocation2 + $0x200] sm:$0xff]
    %v1773 = vld [vmem:[#allocation2 + $0x208] sm:$0xff]
    %v1774 = vld [vmem:[#allocation2 + $0x210] sm:$0xff]
    %v1775 = vld [vmem:[#allocation2 + $0x218] sm:$0xff]
    %v1776 = vld [vmem:[#allocation2 + $0x220] sm:$0xff]
    %v1777 = vld [vmem:[#allocation2 + $0x228] sm:$0xff]
    %v1778 = vld [vmem:[#allocation2 + $0x230] sm:$0xff]
    %v1779 = vld [vmem:[#allocation2 + $0x238] sm:$0xff]
    %v1780 = vld [vmem:[#allocation2 + $0x240] sm:$0xff]
    %v1781 = vld [vmem:[#allocation2 + $0x248] sm:$0xff]
    %v1782 = vld [vmem:[#allocation2 + $0x250] sm:$0xff]
    %v1783 = vld [vmem:[#allocation2 + $0x258] sm:$0xff]
    %v1784 = vld [vmem:[#allocation2 + $0x260] sm:$0xff]
    %v1785 = vld [vmem:[#allocation2 + $0x268] sm:$0xff]
    %v1786 = vld [vmem:[#allocation2 + $0x270] sm:$0xff]
    %v1787 = vld [vmem:[#allocation2 + $0x278] sm:$0xff]
    %v1788 = vld [vmem:[#allocation2 + $0x280] sm:$0xff]
    %v1789 = vld [vmem:[#allocation2 + $0x288] sm:$0xff]
    %v1790 = vld [vmem:[#allocation2 + $0x290] sm:$0xff]
    %v1791 = vld [vmem:[#allocation2 + $0x298] sm:$0xff]
    %v1792 = vld [vmem:[#allocation2 + $0x2a0] sm:$0xff]
    %v1793 = vld [vmem:[#allocation2 + $0x2a8] sm:$0xff]
    %v1794 = vld [vmem:[#allocation2 + $0x2b0] sm:$0xff]
    %v1795 = vld [vmem:[#allocation2 + $0x2b8] sm:$0xff]
    %v1796 = vld [vmem:[#allocation2 + $0x2c0] sm:$0xff]
    %v1797 = vld [vmem:[#allocation2 + $0x2c8] sm:$0xff]
    %v1798 = vld [vmem:[#allocation2 + $0x2d0] sm:$0xff]
    %v1799 = vld [vmem:[#allocation2 + $0x2d8] sm:$0xff]
    %v1800 = vld [vmem:[#allocation2 + $0x2e0] sm:$0xff]
    %v1801 = vld [vmem:[#allocation2 + $0x2e8] sm:$0xff]
    %v1802 = vld [vmem:[#allocation2 + $0x2f0] sm:$0xff]
    %v1803 = vld [vmem:[#allocation2 + $0x2f8] sm:$0xff]
    %v1804 = vld [vmem:[#allocation2 + $0x300] sm:$0xff]
    %v1805 = vld [vmem:[#allocation2 + $0x308] sm:$0xff]
    %v1806 = vld [vmem:[#allocation2 + $0x310] sm:$0xff]
    %v1807 = vld [vmem:[#allocation2 + $0x318] sm:$0xff]
    %v1808 = vld [vmem:[#allocation2 + $0x320] sm:$0xff]
    %v1809 = vld [vmem:[#allocation2 + $0x328] sm:$0xff]
    %v1810 = vld [vmem:[#allocation2 + $0x330] sm:$0xff]
    %v1811 = vld [vmem:[#allocation2 + $0x338] sm:$0xff]
    %v1812 = vld [vmem:[#allocation2 + $0x340] sm:$0xff]
    %v1813 = vld [vmem:[#allocation2 + $0x348] sm:$0xff]
    %v1814 = vld [vmem:[#allocation2 + $0x350] sm:$0xff]
    %v1815 = vld [vmem:[#allocation2 + $0x358] sm:$0xff]
    %v1816 = vld [vmem:[#allocation2 + $0x360] sm:$0xff]
    %v1817 = vld [vmem:[#allocation2 + $0x368] sm:$0xff]
    %v1818 = vld [vmem:[#allocation2 + $0x370] sm:$0xff]
    %v1819 = vld [vmem:[#allocation2 + $0x378] sm:$0xff]
    %v1820 = vld [vmem:[#allocation2 + $0x380] sm:$0xff]
    %v1821 = vld [vmem:[#allocation2 + $0x388] sm:$0xff]
    %v1822 = vld [vmem:[#allocation2 + $0x390] sm:$0xff]
    %v1823 = vld [vmem:[#allocation2 + $0x398] sm:$0xff]
    %v1824 = vld [vmem:[#allocation2 + $0x3a0] sm:$0xff]
    %v1825 = vld [vmem:[#allocation2 + $0x3a8] sm:$0xff]
    %v1826 = vld [vmem:[#allocation2 + $0x3b0] sm:$0xff]
    %v1827 = vld [vmem:[#allocation2 + $0x3b8] sm:$0xff]
    %v1828 = vld [vmem:[#allocation2 + $0x3c0] sm:$0xff]
    %v1829 = vld [vmem:[#allocation2 + $0x3c8] sm:$0xff]
    %v1830 = vld [vmem:[#allocation2 + $0x3d0] sm:$0xff]
    %v1831 = vld [vmem:[#allocation2 + $0x3d8] sm:$0xff]
    %v1832 = vld [vmem:[#allocation2 + $0x3e0] sm:$0xff]
    %v1833 = vld [vmem:[#allocation2 + $0x3e8] sm:$0xff]
    %v1834 = vld [vmem:[#allocation2 + $0x3f0] sm:$0xff]
    %v1835 = vld [vmem:[#allocation2 + $0x3f8] sm:$0xff]
    %v1836 = vld [vmem:[#allocation2 + $0x400] sm:$0xff]
    %v1837 = vld [vmem:[#allocation2 + $0x408] sm:$0xff]
    %v1838 = vld [vmem:[#allocation2 + $0x410] sm:$0xff]
    %v1839 = vld [vmem:[#allocation2 + $0x418] sm:$0xff]
    %v1840 = vld [vmem:[#allocation2 + $0x420] sm:$0xff]
    %v1841 = vld [vmem:[#allocation2 + $0x428] sm:$0xff]
    %v1842 = vld [vmem:[#allocation2 + $0x430] sm:$0xff]
    %v1843 = vld [vmem:[#allocation2 + $0x438] sm:$0xff]
    %v1844 = vld [vmem:[#allocation2 + $0x440] sm:$0xff]
    %v1845 = vld [vmem:[#allocation2 + $0x448] sm:$0xff]
    %v1846 = vld [vmem:[#allocation2 + $0x450] sm:$0xff]
    %v1847 = vld [vmem:[#allocation2 + $0x458] sm:$0xff]
    %v1848 = vld [vmem:[#allocation2 + $0x460] sm:$0xff]
    %v1849 = vld [vmem:[#allocation2 + $0x468] sm:$0xff]
    %v1850 = vld [vmem:[#allocation2 + $0x470] sm:$0xff]
    %v1851 = vld [vmem:[#allocation2 + $0x478] sm:$0xff]
    %v1852 = vld [vmem:[#allocation2 + $0x480] sm:$0xff]
    %v1853 = vld [vmem:[#allocation2 + $0x488] sm:$0xff]
    %v1854 = vld [vmem:[#allocation2 + $0x490] sm:$0xff]
    %v1855 = vld [vmem:[#allocation2 + $0x498] sm:$0xff]
    %v1856 = vld [vmem:[#allocation2 + $0x4a0] sm:$0xff]
    %v1857 = vld [vmem:[#allocation2 + $0x4a8] sm:$0xff]
    %v1858 = vld [vmem:[#allocation2 + $0x4b0] sm:$0xff]
    %v1859 = vld [vmem:[#allocation2 + $0x4b8] sm:$0xff]
    %v1860 = vld [vmem:[#allocation2 + $0x4c0] sm:$0xff]
    %v1861 = vld [vmem:[#allocation2 + $0x4c8] sm:$0xff]
    %v1862 = vld [vmem:[#allocation2 + $0x4d0] sm:$0xff]
    %v1863 = vld [vmem:[#allocation2 + $0x4d8] sm:$0xff]
    %v1864 = vld [vmem:[#allocation2 + $0x4e0] sm:$0xff]
    %v1865 = vld [vmem:[#allocation2 + $0x4e8] sm:$0xff]
    %v1866 = vld [vmem:[#allocation2 + $0x4f0] sm:$0xff]
    %v1867 = vld [vmem:[#allocation2 + $0x4f8] sm:$0xff]
    %v1868 = vld [vmem:[#allocation2 + $0x500] sm:$0xff]
    %v1869 = vld [vmem:[#allocation2 + $0x508] sm:$0xff]
    %v1870 = vld [vmem:[#allocation2 + $0x510] sm:$0xff]
    %v1871 = vld [vmem:[#allocation2 + $0x518] sm:$0xff]
    %v1872 = vld [vmem:[#allocation2 + $0x520] sm:$0xff]
    %v1873 = vld [vmem:[#allocation2 + $0x528] sm:$0xff]
    %v1874 = vld [vmem:[#allocation2 + $0x530] sm:$0xff]
    %v1875 = vld [vmem:[#allocation2 + $0x538] sm:$0xff]
    %v1876 = vld [vmem:[#allocation2 + $0x540] sm:$0xff]
    %v1877 = vld [vmem:[#allocation2 + $0x548] sm:$0xff]
    %v1878 = vld [vmem:[#allocation2 + $0x550] sm:$0xff]
    %v1879 = vld [vmem:[#allocation2 + $0x558] sm:$0xff]
    %v1880 = vld [vmem:[#allocation2 + $0x560] sm:$0xff]
    %v1881 = vld [vmem:[#allocation2 + $0x568] sm:$0xff]
    %v1882 = vld [vmem:[#allocation2 + $0x570] sm:$0xff]
    %v1883 = vld [vmem:[#allocation2 + $0x578] sm:$0xff]
    %v1884 = vld [vmem:[#allocation2 + $0x580] sm:$0xff]
    %v1885 = vld [vmem:[#allocation2 + $0x588] sm:$0xff]
    %v1886 = vld [vmem:[#allocation2 + $0x590] sm:$0xff]
    %v1887 = vld [vmem:[#allocation2 + $0x598] sm:$0xff]
    %v1888 = vld [vmem:[#allocation2 + $0x5a0] sm:$0xff]
    %v1889 = vld [vmem:[#allocation2 + $0x5a8] sm:$0xff]
    %v1890 = vld [vmem:[#allocation2 + $0x5b0] sm:$0xff]
    %v1891 = vld [vmem:[#allocation2 + $0x5b8] sm:$0xff]
    %v1892 = vld [vmem:[#allocation2 + $0x5c0] sm:$0xff]
    %v1893 = vld [vmem:[#allocation2 + $0x5c8] sm:$0xff]
    %v1894 = vld [vmem:[#allocation2 + $0x5d0] sm:$0xff]
    %v1895 = vld [vmem:[#allocation2 + $0x5d8] sm:$0xff]
    %v1896 = vld [vmem:[#allocation2 + $0x5e0] sm:$0xff]
    %v1897 = vld [vmem:[#allocation2 + $0x5e8] sm:$0xff]
    %v1898 = vld [vmem:[#allocation2 + $0x5f0] sm:$0xff]
    %v1899 = vld [vmem:[#allocation2 + $0x5f8] sm:$0xff]
    %v1900 = vld [vmem:[%s8] sm:$0x3f]
    %v1902 = vlaneseq
    %v1903 = vshrl.u32 %v1902, 7
    %v1904 = vsub.s32 0, %v1903
    %v1905 = vrot.slane %v1900, %v1904
    %v1906 = vlaneseq
    %v1907 = vshrl.u32 %v1906, 7
    %v1908 = vsub.s32 1, %v1907
    %v1909 = vrot.slane %v1900, %v1908
    %v1910 = vlaneseq
    %v1911 = vshrl.u32 %v1910, 7
    %v1912 = vsub.s32 2, %v1911
    %v1913 = vrot.slane %v1900, %v1912
    %v1914 = vlaneseq
    %v1915 = vshrl.u32 %v1914, 7
    %v1916 = vsub.s32 3, %v1915
    %v1917 = vrot.slane %v1900, %v1916
    %v1918 = vlaneseq
    %v1919 = vshrl.u32 %v1918, 7
    %v1920 = vsub.s32 4, %v1919
    %v1921 = vrot.slane %v1900, %v1920
    %v1922 = vlaneseq
    %v1923 = vshrl.u32 %v1922, 7
    %v1924 = vsub.s32 5, %v1923
    %v1925 = vrot.slane %v1900, %v1924
    %1932 = vmatprep.subr.bf16.mxu0 %v1709
    %1933 = vmatpush1.bf16.msra.mxu0 %v1708
    %1934 = vmatprep.subr.bf16.mxu0 %v1715
    %1935 = vmatpush1.bf16.msra.mxu0 %v1714
    %1936 = vmatprep.subr.bf16.mxu0 %v1721
    %1937 = vmatpush1.bf16.msra.mxu0 %v1720
    %1938 = vmatprep.subr.bf16.mxu0 %v1727
    %1939 = vmatpush1.bf16.msra.mxu0 %v1726
    %1940 = vmatprep.subr.bf16.mxu0 %v1733
    %1941 = vmatpush1.bf16.msra.mxu0 %v1732
    %1942 = vmatprep.subr.bf16.mxu0 %v1739
    %1943 = vmatpush1.bf16.msra.mxu0 %v1738
    %1944 = vmatprep.subr.bf16.mxu0 %v1745
    %1945 = vmatpush1.bf16.msra.mxu0 %v1744
    %1946 = vmatprep.subr.bf16.mxu0 %v1751
    %1947 = vmatpush1.bf16.msra.mxu0 %v1750
    %1948 = vmatprep.subr.bf16.mxu0 %v1757
    %1949 = vmatpush1.bf16.msra.mxu0 %v1756
    %1950 = vmatprep.subr.bf16.mxu0 %v1763
    %1951 = vmatpush1.bf16.msra.mxu0 %v1762
    %1952 = vmatprep.subr.bf16.mxu0 %v1769
    %1953 = vmatpush1.bf16.msra.mxu0 %v1768
    %1954 = vmatprep.subr.bf16.mxu0 %v1775
    %1955 = vmatpush1.bf16.msra.mxu0 %v1774
    %1956 = vmatprep.subr.bf16.mxu0 %v1781
    %1957 = vmatpush1.bf16.msra.mxu0 %v1780
    %1958 = vmatprep.subr.bf16.mxu0 %v1787
    %1959 = vmatpush1.bf16.msra.mxu0 %v1786
    %1960 = vmatprep.subr.bf16.mxu0 %v1793
    %1961 = vmatpush1.bf16.msra.mxu0 %v1792
    %1962 = vmatprep.subr.bf16.mxu0 %v1799
    %1963 = vmatpush1.bf16.msra.mxu0 %v1798
    %1964 = vmatprep.mubr.bf16.mxu0 %v1705
    %1965 = vmatmul.mubr.bf16.gmra.mrb[0].mxu0 %v1704
    %v1966 = vpop.f32.mrb[0].mxu0
    %v1967 = vadd.f32 %v1905, %v1966
    %v1968 = vpop.f32.mrb[0].mxu0
    %v1969 = vadd.f32 %v1909, %v1968
    %v1970 = vpop.f32.mrb[0].mxu0
    %v1971 = vpop.f32.mrb[0].mxu0
    %1972 = vdwg.mxu0
    %1973 = vmatprep.subr.bf16.mxu0 %v1805
    %1974 = vmatpush1.bf16.msra.mxu0 %v1804
    %1975 = vmatprep.subr.bf16.mxu0 %v1811
    %1976 = vmatpush1.bf16.msra.mxu0 %v1810
    %1977 = vmatprep.subr.bf16.mxu0 %v1817
    %1978 = vmatpush1.bf16.msra.mxu0 %v1816
    %1979 = vmatprep.subr.bf16.mxu0 %v1823
    %1980 = vmatpush1.bf16.msra.mxu0 %v1822
    %1981 = vmatprep.subr.bf16.mxu0 %v1829
    %1982 = vmatpush1.bf16.msra.mxu0 %v1828
    %1983 = vmatprep.subr.bf16.mxu0 %v1835
    %1984 = vmatpush1.bf16.msra.mxu0 %v1834
    %1985 = vmatprep.subr.bf16.mxu0 %v1841
    %1986 = vmatpush1.bf16.msra.mxu0 %v1840
    %1987 = vmatprep.subr.bf16.mxu0 %v1847
    %1988 = vmatpush1.bf16.msra.mxu0 %v1846
    %1989 = vmatprep.subr.bf16.mxu0 %v1853
    %1990 = vmatpush1.bf16.msra.mxu0 %v1852
    %1991 = vmatprep.subr.bf16.mxu0 %v1859
    %1992 = vmatpush1.bf16.msra.mxu0 %v1858
    %1993 = vmatprep.subr.bf16.mxu0 %v1865
    %1994 = vmatpush1.bf16.msra.mxu0 %v1864
    %1995 = vmatprep.subr.bf16.mxu0 %v1871
    %1996 = vmatpush1.bf16.msra.mxu0 %v1870
    %1997 = vmatprep.subr.bf16.mxu0 %v1877
    %1998 = vmatpush1.bf16.msra.mxu0 %v1876
    %1999 = vmatprep.subr.bf16.mxu0 %v1883
    %2000 = vmatpush1.bf16.msra.mxu0 %v1882
    %2001 = vmatprep.subr.bf16.mxu0 %v1889
    %2002 = vmatpush1.bf16.msra.mxu0 %v1888
    %2003 = vmatprep.subr.bf16.mxu0 %v1895
    %2004 = vmatpush1.bf16.msra.mxu0 %v1894
    %2005 = vmatprep.mubr.bf16.mxu0 %v1707
    %2006 = vmatmul.mubr.bf16.gmra.mrb[0].mxu0 %v1706
    %v2007 = vpop.f32.mrb[0].mxu0
    %v2008 = vadd.f32 %v1967, %v2007
    %v2009 = vpop.f32.mrb[0].mxu0
    %v2010 = vadd.f32 %v1969, %v2009
    %v2011 = vpop.f32.mrb[0].mxu0
    %v2012 = vpop.f32.mrb[0].mxu0
    %2013 = vdwg.mxu0
    %2014 = vmatprep.subr.bf16.mxu0 %v1711
    %2015 = vmatpush1.bf16.msra.mxu0 %v1710
    %2016 = vmatprep.subr.bf16.mxu0 %v1717
    %2017 = vmatpush1.bf16.msra.mxu0 %v1716
    %2018 = vmatprep.subr.bf16.mxu0 %v1723
    %2019 = vmatpush1.bf16.msra.mxu0 %v1722
    %2020 = vmatprep.subr.bf16.mxu0 %v1729
    %2021 = vmatpush1.bf16.msra.mxu0 %v1728
    %2022 = vmatprep.subr.bf16.mxu0 %v1735
    %2023 = vmatpush1.bf16.msra.mxu0 %v1734
    %2024 = vmatprep.subr.bf16.mxu0 %v1741
    %2025 = vmatpush1.bf16.msra.mxu0 %v1740
    %2026 = vmatprep.subr.bf16.mxu0 %v1747
    %2027 = vmatpush1.bf16.msra.mxu0 %v1746
    %2028 = vmatprep.subr.bf16.mxu0 %v1753
    %2029 = vmatpush1.bf16.msra.mxu0 %v1752
    %2030 = vmatprep.subr.bf16.mxu0 %v1759
    %2031 = vmatpush1.bf16.msra.mxu0 %v1758
    %2032 = vmatprep.subr.bf16.mxu0 %v1765
    %2033 = vmatpush1.bf16.msra.mxu0 %v1764
    %2034 = vmatprep.subr.bf16.mxu0 %v1771
    %2035 = vmatpush1.bf16.msra.mxu0 %v1770
    %2036 = vmatprep.subr.bf16.mxu0 %v1777
    %2037 = vmatpush1.bf16.msra.mxu0 %v1776
    %2038 = vmatprep.subr.bf16.mxu0 %v1783
    %2039 = vmatpush1.bf16.msra.mxu0 %v1782
    %2040 = vmatprep.subr.bf16.mxu0 %v1789
    %2041 = vmatpush1.bf16.msra.mxu0 %v1788
    %2042 = vmatprep.subr.bf16.mxu0 %v1795
    %2043 = vmatpush1.bf16.msra.mxu0 %v1794
    %2044 = vmatprep.subr.bf16.mxu0 %v1801
    %2045 = vmatpush1.bf16.msra.mxu0 %v1800
    %2046 = vmatprep.mubr.bf16.mxu0 %v1705
    %2047 = vmatmul.mubr.bf16.gmra.mrb[0].mxu0 %v1704
    %v2048 = vpop.f32.mrb[0].mxu0
    %v2049 = vadd.f32 %v1913, %v2048
    %v2050 = vpop.f32.mrb[0].mxu0
    %v2051 = vadd.f32 %v1917, %v2050
    %v2052 = vpop.f32.mrb[0].mxu0
    %v2053 = vpop.f32.mrb[0].mxu0
    %2054 = vdwg.mxu0
    %2055 = vmatprep.subr.bf16.mxu0 %v1807
    %2056 = vmatpush1.bf16.msra.mxu0 %v1806
    %2057 = vmatprep.subr.bf16.mxu0 %v1813
    %2058 = vmatpush1.bf16.msra.mxu0 %v1812
    %2059 = vmatprep.subr.bf16.mxu0 %v1819
    %2060 = vmatpush1.bf16.msra.mxu0 %v1818
    %2061 = vmatprep.subr.bf16.mxu0 %v1825
    %2062 = vmatpush1.bf16.msra.mxu0 %v1824
    %2063 = vmatprep.subr.bf16.mxu0 %v1831
    %2064 = vmatpush1.bf16.msra.mxu0 %v1830
    %2065 = vmatprep.subr.bf16.mxu0 %v1837
    %2066 = vmatpush1.bf16.msra.mxu0 %v1836
    %2067 = vmatprep.subr.bf16.mxu0 %v1843
    %2068 = vmatpush1.bf16.msra.mxu0 %v1842
    %2069 = vmatprep.subr.bf16.mxu0 %v1849
    %2070 = vmatpush1.bf16.msra.mxu0 %v1848
    %2071 = vmatprep.subr.bf16.mxu0 %v1855
    %2072 = vmatpush1.bf16.msra.mxu0 %v1854
    %2073 = vmatprep.subr.bf16.mxu0 %v1861
    %2074 = vmatpush1.bf16.msra.mxu0 %v1860
    %2075 = vmatprep.subr.bf16.mxu0 %v1867
    %2076 = vmatpush1.bf16.msra.mxu0 %v1866
    %2077 = vmatprep.subr.bf16.mxu0 %v1873
    %2078 = vmatpush1.bf16.msra.mxu0 %v1872
    %2079 = vmatprep.subr.bf16.mxu0 %v1879
    %2080 = vmatpush1.bf16.msra.mxu0 %v1878
    %2081 = vmatprep.subr.bf16.mxu0 %v1885
    %2082 = vmatpush1.bf16.msra.mxu0 %v1884
    %2083 = vmatprep.subr.bf16.mxu0 %v1891
    %2084 = vmatpush1.bf16.msra.mxu0 %v1890
    %2085 = vmatprep.subr.bf16.mxu0 %v1897
    %2086 = vmatpush1.bf16.msra.mxu0 %v1896
    %2087 = vmatprep.mubr.bf16.mxu0 %v1707
    %2088 = vmatmul.mubr.bf16.gmra.mrb[0].mxu0 %v1706
    %v2089 = vpop.f32.mrb[0].mxu0
    %v2090 = vadd.f32 %v2049, %v2089
    %v2091 = vpop.f32.mrb[0].mxu0
    %v2092 = vadd.f32 %v2051, %v2091
    %v2093 = vpop.f32.mrb[0].mxu0
    %v2094 = vpop.f32.mrb[0].mxu0
    %2095 = vdwg.mxu0
    %2096 = vmatprep.subr.bf16.mxu0 %v1713
    %2097 = vmatpush1.bf16.msra.mxu0 %v1712
    %2098 = vmatprep.subr.bf16.mxu0 %v1719
    %2099 = vmatpush1.bf16.msra.mxu0 %v1718
    %2100 = vmatprep.subr.bf16.mxu0 %v1725
    %2101 = vmatpush1.bf16.msra.mxu0 %v1724
    %2102 = vmatprep.subr.bf16.mxu0 %v1731
    %2103 = vmatpush1.bf16.msra.mxu0 %v1730
    %2104 = vmatprep.subr.bf16.mxu0 %v1737
    %2105 = vmatpush1.bf16.msra.mxu0 %v1736
    %2106 = vmatprep.subr.bf16.mxu0 %v1743
    %2107 = vmatpush1.bf16.msra.mxu0 %v1742
    %2108 = vmatprep.subr.bf16.mxu0 %v1749
    %2109 = vmatpush1.bf16.msra.mxu0 %v1748
    %2110 = vmatprep.subr.bf16.mxu0 %v1755
    %2111 = vmatpush1.bf16.msra.mxu0 %v1754
    %2112 = vmatprep.subr.bf16.mxu0 %v1761
    %2113 = vmatpush1.bf16.msra.mxu0 %v1760
    %2114 = vmatprep.subr.bf16.mxu0 %v1767
    %2115 = vmatpush1.bf16.msra.mxu0 %v1766
    %2116 = vmatprep.subr.bf16.mxu0 %v1773
    %2117 = vmatpush1.bf16.msra.mxu0 %v1772
    %2118 = vmatprep.subr.bf16.mxu0 %v1779
    %2119 = vmatpush1.bf16.msra.mxu0 %v1778
    %2120 = vmatprep.subr.bf16.mxu0 %v1785
    %2121 = vmatpush1.bf16.msra.mxu0 %v1784
    %2122 = vmatprep.subr.bf16.mxu0 %v1791
    %2123 = vmatpush1.bf16.msra.mxu0 %v1790
    %2124 = vmatprep.subr.bf16.mxu0 %v1797
    %2125 = vmatpush1.bf16.msra.mxu0 %v1796
    %2126 = vmatprep.subr.bf16.mxu0 %v1803
    %2127 = vmatpush1.bf16.msra.mxu0 %v1802
    %2128 = vmatprep.mubr.bf16.mxu0 %v1705
    %2129 = vmatmul.mubr.bf16.gmra.mrb[0].mxu0 %v1704
    %v2130 = vpop.f32.mrb[0].mxu0
    %v2131 = vadd.f32 %v1921, %v2130
    %v2132 = vpop.f32.mrb[0].mxu0
    %v2133 = vadd.f32 %v1925, %v2132
    %v2134 = vpop.f32.mrb[0].mxu0
    %v2135 = vpop.f32.mrb[0].mxu0
    %2136 = vdwg.mxu0
    %2137 = vmatprep.subr.bf16.mxu0 %v1809
    %2138 = vmatpush1.bf16.msra.mxu0 %v1808
    %2139 = vmatprep.subr.bf16.mxu0 %v1815
    %2140 = vmatpush1.bf16.msra.mxu0 %v1814
    %2141 = vmatprep.subr.bf16.mxu0 %v1821
    %2142 = vmatpush1.bf16.msra.mxu0 %v1820
    %2143 = vmatprep.subr.bf16.mxu0 %v1827
    %2144 = vmatpush1.bf16.msra.mxu0 %v1826
    %2145 = vmatprep.subr.bf16.mxu0 %v1833
    %2146 = vmatpush1.bf16.msra.mxu0 %v1832
    %2147 = vmatprep.subr.bf16.mxu0 %v1839
    %2148 = vmatpush1.bf16.msra.mxu0 %v1838
    %2149 = vmatprep.subr.bf16.mxu0 %v1845
    %2150 = vmatpush1.bf16.msra.mxu0 %v1844
    %2151 = vmatprep.subr.bf16.mxu0 %v1851
    %2152 = vmatpush1.bf16.msra.mxu0 %v1850
    %2153 = vmatprep.subr.bf16.mxu0 %v1857
    %2154 = vmatpush1.bf16.msra.mxu0 %v1856
    %2155 = vmatprep.subr.bf16.mxu0 %v1863
    %2156 = vmatpush1.bf16.msra.mxu0 %v1862
    %2157 = vmatprep.subr.bf16.mxu0 %v1869
    %2158 = vmatpush1.bf16.msra.mxu0 %v1868
    %2159 = vmatprep.subr.bf16.mxu0 %v1875
    %2160 = vmatpush1.bf16.msra.mxu0 %v1874
    %2161 = vmatprep.subr.bf16.mxu0 %v1881
    %2162 = vmatpush1.bf16.msra.mxu0 %v1880
    %2163 = vmatprep.subr.bf16.mxu0 %v1887
    %2164 = vmatpush1.bf16.msra.mxu0 %v1886
    %2165 = vmatprep.subr.bf16.mxu0 %v1893
    %2166 = vmatpush1.bf16.msra.mxu0 %v1892
    %2167 = vmatprep.subr.bf16.mxu0 %v1899
    %2168 = vmatpush1.bf16.msra.mxu0 %v1898
    %2169 = vmatprep.mubr.bf16.mxu0 %v1707
    %2170 = vmatmul.mubr.bf16.gmra.mrb[0].mxu0 %v1706
    %v2171 = vpop.f32.mrb[0].mxu0
    %v2172 = vadd.f32 %v2131, %v2171
    %v2173 = vpop.f32.mrb[0].mxu0
    %v2174 = vadd.f32 %v2133, %v2173
    %v2175 = vpop.f32.mrb[0].mxu0
    %v2176 = vpop.f32.mrb[0].mxu0
    %2177 = vdwg.mxu0
    %v2178 = vtanh.pop %v2008
    %v2179 = vtanh.pop %v2010
    %v2180 = vtanh.pop %v2090
    %v2181 = vtanh.pop %v2092
    %v2182 = vtanh.pop %v2172
    %v2183 = vtanh.pop %v2174
    %v2184 = vld [vmem:[%s0] sm:$0xff]
    %v2185 = vld [vmem:[%s0 + $0x8] sm:$0xf]
    %v2188 = vcombine.high %v2184, %v2184
    %v2190 = vunpack.c.l.s4 1983009808
    %v2191 = vunpack.c.0.s8 %v2190
    %v2192 = vlaneseq
    %v2193 = vshrl.u32 %v2192, 7
    %v2194 = vsub.s32 %v2191, %v2193
    %v2195 = vrot.slane %v2184, %v2194
    %v2197 = vunpack.c.l.s4 1983009808
    %v2198 = vunpack.c.0.s8 %v2197
    %v2199 = vlaneseq
    %v2200 = vshrl.u32 %v2199, 7
    %v2201 = vsub.s32 %v2198, %v2200
    %v2202 = vrot.slane %v2188, %v2201
    %v2204 = vunpack.c.l.s4 1983009808
    %v2205 = vunpack.c.0.s8 %v2204
    %v2206 = vlaneseq
    %v2207 = vshrl.u32 %v2206, 7
    %v2208 = vsub.s32 %v2205, %v2207
    %v2209 = vrot.slane %v2185, %v2208
    %2213 = vst [vmem:[#allocation6] sm:$0x33] %v2195
    %2214 = vst [vmem:[#allocation6 + $0x8] sm:$0x33] %v2202
    %2215 = vst [vmem:[#allocation6 + $0x10] sm:$0x33] %v2209
    %v2222 = vcombine.low %v2178, %v2179
    %v2223 = vcombine.low %v2180, %v2181
    %v2224 = vcombine.low %v2182, %v2183
    %v2225 = vrot.slane %v2222, 6
    %v2226 = vrot.slane %v2223, 6
    %v2227 = vrot.slane %v2224, 6
    %2231 = vst [vmem:[#allocation6] sm:$0xcc] %v2225
    %2232 = vst [vmem:[#allocation6 + $0x8] sm:$0xcc] %v2226
    %2233 = vst [vmem:[#allocation6 + $0x10] sm:$0xcc] %v2227
    %v2234 = vld [vmem:[#allocation6] sm:$0xff]
    %v2235 = vld [vmem:[#allocation6 + $0x8] sm:$0xff]
    %v2236 = vld [vmem:[#allocation6 + $0x10] sm:$0xff]
    %s2237 = smul.u32 4, 96
    %s2238 = smul.u32 %s2237, 4
    %s2239 = sshll.u32 %s2238, 4
    %2240 = dma.done %s97, %s2239
    %v2244 = vcombine.high %v2234, %v2234
    %v2245 = vcombine.high %v2235, %v2235
    %v2246 = vcombine.high %v2236, %v2236
    %v2250 = vpack.c.bf16 %v2234, %v2234
    %v2251 = vpack.c.bf16 %v2244, %v2244
    %v2252 = vpack.c.bf16 %v2235, %v2235
    %v2253 = vpack.c.bf16 %v2245, %v2245
    %v2254 = vpack.c.bf16 %v2236, %v2236
    %v2255 = vpack.c.bf16 %v2246, %v2246
    %v2256 = vld [vmem:[#allocation3] sm:$0xff]
    %v2257 = vld [vmem:[#allocation3 + $0x8] sm:$0xff]
    %v2258 = vld [vmem:[#allocation3 + $0x10] sm:$0xff]
    %v2259 = vld [vmem:[#allocation3 + $0x18] sm:$0xff]
    %v2260 = vld [vmem:[#allocation3 + $0x20] sm:$0xff]
    %v2261 = vld [vmem:[#allocation3 + $0x28] sm:$0xff]
    %v2262 = vld [vmem:[#allocation3 + $0x30] sm:$0xff]
    %v2263 = vld [vmem:[#allocation3 + $0x38] sm:$0xff]
    %v2264 = vld [vmem:[#allocation3 + $0x40] sm:$0xff]
    %v2265 = vld [vmem:[#allocation3 + $0x48] sm:$0xff]
    %v2266 = vld [vmem:[#allocation3 + $0x50] sm:$0xff]
    %v2267 = vld [vmem:[#allocation3 + $0x58] sm:$0xff]
    %v2268 = vld [vmem:[#allocation3 + $0x60] sm:$0xff]
    %v2269 = vld [vmem:[#allocation3 + $0x68] sm:$0xff]
    %v2270 = vld [vmem:[#allocation3 + $0x70] sm:$0xff]
    %v2271 = vld [vmem:[#allocation3 + $0x78] sm:$0xff]
    %v2272 = vld [vmem:[#allocation3 + $0x80] sm:$0xff]
    %v2273 = vld [vmem:[#allocation3 + $0x88] sm:$0xff]
    %v2274 = vld [vmem:[#allocation3 + $0x90] sm:$0xff]
    %v2275 = vld [vmem:[#allocation3 + $0x98] sm:$0xff]
    %v2276 = vld [vmem:[#allocation3 + $0xa0] sm:$0xff]
    %v2277 = vld [vmem:[#allocation3 + $0xa8] sm:$0xff]
    %v2278 = vld [vmem:[#allocation3 + $0xb0] sm:$0xff]
    %v2279 = vld [vmem:[#allocation3 + $0xb8] sm:$0xff]
    %v2280 = vld [vmem:[#allocation3 + $0xc0] sm:$0xff]
    %v2281 = vld [vmem:[#allocation3 + $0xc8] sm:$0xff]
    %v2282 = vld [vmem:[#allocation3 + $0xd0] sm:$0xff]
    %v2283 = vld [vmem:[#allocation3 + $0xd8] sm:$0xff]
    %v2284 = vld [vmem:[#allocation3 + $0xe0] sm:$0xff]
    %v2285 = vld [vmem:[#allocation3 + $0xe8] sm:$0xff]
    %v2286 = vld [vmem:[#allocation3 + $0xf0] sm:$0xff]
    %v2287 = vld [vmem:[#allocation3 + $0xf8] sm:$0xff]
    %v2288 = vld [vmem:[#allocation3 + $0x100] sm:$0xff]
    %v2289 = vld [vmem:[#allocation3 + $0x108] sm:$0xff]
    %v2290 = vld [vmem:[#allocation3 + $0x110] sm:$0xff]
    %v2291 = vld [vmem:[#allocation3 + $0x118] sm:$0xff]
    %v2292 = vld [vmem:[#allocation3 + $0x120] sm:$0xff]
    %v2293 = vld [vmem:[#allocation3 + $0x128] sm:$0xff]
    %v2294 = vld [vmem:[#allocation3 + $0x130] sm:$0xff]
    %v2295 = vld [vmem:[#allocation3 + $0x138] sm:$0xff]
    %v2296 = vld [vmem:[#allocation3 + $0x140] sm:$0xff]
    %v2297 = vld [vmem:[#allocation3 + $0x148] sm:$0xff]
    %v2298 = vld [vmem:[#allocation3 + $0x150] sm:$0xff]
    %v2299 = vld [vmem:[#allocation3 + $0x158] sm:$0xff]
    %v2300 = vld [vmem:[#allocation3 + $0x160] sm:$0xff]
    %v2301 = vld [vmem:[#allocation3 + $0x168] sm:$0xff]
    %v2302 = vld [vmem:[#allocation3 + $0x170] sm:$0xff]
    %v2303 = vld [vmem:[#allocation3 + $0x178] sm:$0xff]
    %v2304 = vld [vmem:[#allocation3 + $0x180] sm:$0xff]
    %v2305 = vld [vmem:[#allocation3 + $0x188] sm:$0xff]
    %v2306 = vld [vmem:[#allocation3 + $0x190] sm:$0xff]
    %v2307 = vld [vmem:[#allocation3 + $0x198] sm:$0xff]
    %v2308 = vld [vmem:[#allocation3 + $0x1a0] sm:$0xff]
    %v2309 = vld [vmem:[#allocation3 + $0x1a8] sm:$0xff]
    %v2310 = vld [vmem:[#allocation3 + $0x1b0] sm:$0xff]
    %v2311 = vld [vmem:[#allocation3 + $0x1b8] sm:$0xff]
    %v2312 = vld [vmem:[#allocation3 + $0x1c0] sm:$0xff]
    %v2313 = vld [vmem:[#allocation3 + $0x1c8] sm:$0xff]
    %v2314 = vld [vmem:[#allocation3 + $0x1d0] sm:$0xff]
    %v2315 = vld [vmem:[#allocation3 + $0x1d8] sm:$0xff]
    %v2316 = vld [vmem:[#allocation3 + $0x1e0] sm:$0xff]
    %v2317 = vld [vmem:[#allocation3 + $0x1e8] sm:$0xff]
    %v2318 = vld [vmem:[#allocation3 + $0x1f0] sm:$0xff]
    %v2319 = vld [vmem:[#allocation3 + $0x1f8] sm:$0xff]
    %v2320 = vld [vmem:[#allocation3 + $0x200] sm:$0xff]
    %v2321 = vld [vmem:[#allocation3 + $0x208] sm:$0xff]
    %v2322 = vld [vmem:[#allocation3 + $0x210] sm:$0xff]
    %v2323 = vld [vmem:[#allocation3 + $0x218] sm:$0xff]
    %v2324 = vld [vmem:[#allocation3 + $0x220] sm:$0xff]
    %v2325 = vld [vmem:[#allocation3 + $0x228] sm:$0xff]
    %v2326 = vld [vmem:[#allocation3 + $0x230] sm:$0xff]
    %v2327 = vld [vmem:[#allocation3 + $0x238] sm:$0xff]
    %v2328 = vld [vmem:[#allocation3 + $0x240] sm:$0xff]
    %v2329 = vld [vmem:[#allocation3 + $0x248] sm:$0xff]
    %v2330 = vld [vmem:[#allocation3 + $0x250] sm:$0xff]
    %v2331 = vld [vmem:[#allocation3 + $0x258] sm:$0xff]
    %v2332 = vld [vmem:[#allocation3 + $0x260] sm:$0xff]
    %v2333 = vld [vmem:[#allocation3 + $0x268] sm:$0xff]
    %v2334 = vld [vmem:[#allocation3 + $0x270] sm:$0xff]
    %v2335 = vld [vmem:[#allocation3 + $0x278] sm:$0xff]
    %v2336 = vld [vmem:[#allocation3 + $0x280] sm:$0xff]
    %v2337 = vld [vmem:[#allocation3 + $0x288] sm:$0xff]
    %v2338 = vld [vmem:[#allocation3 + $0x290] sm:$0xff]
    %v2339 = vld [vmem:[#allocation3 + $0x298] sm:$0xff]
    %v2340 = vld [vmem:[#allocation3 + $0x2a0] sm:$0xff]
    %v2341 = vld [vmem:[#allocation3 + $0x2a8] sm:$0xff]
    %v2342 = vld [vmem:[#allocation3 + $0x2b0] sm:$0xff]
    %v2343 = vld [vmem:[#allocation3 + $0x2b8] sm:$0xff]
    %v2344 = vld [vmem:[#allocation3 + $0x2c0] sm:$0xff]
    %v2345 = vld [vmem:[#allocation3 + $0x2c8] sm:$0xff]
    %v2346 = vld [vmem:[#allocation3 + $0x2d0] sm:$0xff]
    %v2347 = vld [vmem:[#allocation3 + $0x2d8] sm:$0xff]
    %v2348 = vld [vmem:[#allocation3 + $0x2e0] sm:$0xff]
    %v2349 = vld [vmem:[#allocation3 + $0x2e8] sm:$0xff]
    %v2350 = vld [vmem:[#allocation3 + $0x2f0] sm:$0xff]
    %v2351 = vld [vmem:[#allocation3 + $0x2f8] sm:$0xff]
    %v2352 = vld [vmem:[#allocation3 + $0x300] sm:$0xff]
    %v2353 = vld [vmem:[#allocation3 + $0x308] sm:$0xff]
    %v2354 = vld [vmem:[#allocation3 + $0x310] sm:$0xff]
    %v2355 = vld [vmem:[#allocation3 + $0x318] sm:$0xff]
    %v2356 = vld [vmem:[#allocation3 + $0x320] sm:$0xff]
    %v2357 = vld [vmem:[#allocation3 + $0x328] sm:$0xff]
    %v2358 = vld [vmem:[#allocation3 + $0x330] sm:$0xff]
    %v2359 = vld [vmem:[#allocation3 + $0x338] sm:$0xff]
    %v2360 = vld [vmem:[#allocation3 + $0x340] sm:$0xff]
    %v2361 = vld [vmem:[#allocation3 + $0x348] sm:$0xff]
    %v2362 = vld [vmem:[#allocation3 + $0x350] sm:$0xff]
    %v2363 = vld [vmem:[#allocation3 + $0x358] sm:$0xff]
    %v2364 = vld [vmem:[#allocation3 + $0x360] sm:$0xff]
    %v2365 = vld [vmem:[#allocation3 + $0x368] sm:$0xff]
    %v2366 = vld [vmem:[#allocation3 + $0x370] sm:$0xff]
    %v2367 = vld [vmem:[#allocation3 + $0x378] sm:$0xff]
    %v2368 = vld [vmem:[#allocation3 + $0x380] sm:$0xff]
    %v2369 = vld [vmem:[#allocation3 + $0x388] sm:$0xff]
    %v2370 = vld [vmem:[#allocation3 + $0x390] sm:$0xff]
    %v2371 = vld [vmem:[#allocation3 + $0x398] sm:$0xff]
    %v2372 = vld [vmem:[#allocation3 + $0x3a0] sm:$0xff]
    %v2373 = vld [vmem:[#allocation3 + $0x3a8] sm:$0xff]
    %v2374 = vld [vmem:[#allocation3 + $0x3b0] sm:$0xff]
    %v2375 = vld [vmem:[#allocation3 + $0x3b8] sm:$0xff]
    %v2376 = vld [vmem:[#allocation3 + $0x3c0] sm:$0xff]
    %v2377 = vld [vmem:[#allocation3 + $0x3c8] sm:$0xff]
    %v2378 = vld [vmem:[#allocation3 + $0x3d0] sm:$0xff]
    %v2379 = vld [vmem:[#allocation3 + $0x3d8] sm:$0xff]
    %v2380 = vld [vmem:[#allocation3 + $0x3e0] sm:$0xff]
    %v2381 = vld [vmem:[#allocation3 + $0x3e8] sm:$0xff]
    %v2382 = vld [vmem:[#allocation3 + $0x3f0] sm:$0xff]
    %v2383 = vld [vmem:[#allocation3 + $0x3f8] sm:$0xff]
    %v2384 = vld [vmem:[#allocation3 + $0x400] sm:$0xff]
    %v2385 = vld [vmem:[#allocation3 + $0x408] sm:$0xff]
    %v2386 = vld [vmem:[#allocation3 + $0x410] sm:$0xff]
    %v2387 = vld [vmem:[#allocation3 + $0x418] sm:$0xff]
    %v2388 = vld [vmem:[#allocation3 + $0x420] sm:$0xff]
    %v2389 = vld [vmem:[#allocation3 + $0x428] sm:$0xff]
    %v2390 = vld [vmem:[#allocation3 + $0x430] sm:$0xff]
    %v2391 = vld [vmem:[#allocation3 + $0x438] sm:$0xff]
    %v2392 = vld [vmem:[#allocation3 + $0x440] sm:$0xff]
    %v2393 = vld [vmem:[#allocation3 + $0x448] sm:$0xff]
    %v2394 = vld [vmem:[#allocation3 + $0x450] sm:$0xff]
    %v2395 = vld [vmem:[#allocation3 + $0x458] sm:$0xff]
    %v2396 = vld [vmem:[#allocation3 + $0x460] sm:$0xff]
    %v2397 = vld [vmem:[#allocation3 + $0x468] sm:$0xff]
    %v2398 = vld [vmem:[#allocation3 + $0x470] sm:$0xff]
    %v2399 = vld [vmem:[#allocation3 + $0x478] sm:$0xff]
    %v2400 = vld [vmem:[#allocation3 + $0x480] sm:$0xff]
    %v2401 = vld [vmem:[#allocation3 + $0x488] sm:$0xff]
    %v2402 = vld [vmem:[#allocation3 + $0x490] sm:$0xff]
    %v2403 = vld [vmem:[#allocation3 + $0x498] sm:$0xff]
    %v2404 = vld [vmem:[#allocation3 + $0x4a0] sm:$0xff]
    %v2405 = vld [vmem:[#allocation3 + $0x4a8] sm:$0xff]
    %v2406 = vld [vmem:[#allocation3 + $0x4b0] sm:$0xff]
    %v2407 = vld [vmem:[#allocation3 + $0x4b8] sm:$0xff]
    %v2408 = vld [vmem:[#allocation3 + $0x4c0] sm:$0xff]
    %v2409 = vld [vmem:[#allocation3 + $0x4c8] sm:$0xff]
    %v2410 = vld [vmem:[#allocation3 + $0x4d0] sm:$0xff]
    %v2411 = vld [vmem:[#allocation3 + $0x4d8] sm:$0xff]
    %v2412 = vld [vmem:[#allocation3 + $0x4e0] sm:$0xff]
    %v2413 = vld [vmem:[#allocation3 + $0x4e8] sm:$0xff]
    %v2414 = vld [vmem:[#allocation3 + $0x4f0] sm:$0xff]
    %v2415 = vld [vmem:[#allocation3 + $0x4f8] sm:$0xff]
    %v2416 = vld [vmem:[#allocation3 + $0x500] sm:$0xff]
    %v2417 = vld [vmem:[#allocation3 + $0x508] sm:$0xff]
    %v2418 = vld [vmem:[#allocation3 + $0x510] sm:$0xff]
    %v2419 = vld [vmem:[#allocation3 + $0x518] sm:$0xff]
    %v2420 = vld [vmem:[#allocation3 + $0x520] sm:$0xff]
    %v2421 = vld [vmem:[#allocation3 + $0x528] sm:$0xff]
    %v2422 = vld [vmem:[#allocation3 + $0x530] sm:$0xff]
    %v2423 = vld [vmem:[#allocation3 + $0x538] sm:$0xff]
    %v2424 = vld [vmem:[#allocation3 + $0x540] sm:$0xff]
    %v2425 = vld [vmem:[#allocation3 + $0x548] sm:$0xff]
    %v2426 = vld [vmem:[#allocation3 + $0x550] sm:$0xff]
    %v2427 = vld [vmem:[#allocation3 + $0x558] sm:$0xff]
    %v2428 = vld [vmem:[#allocation3 + $0x560] sm:$0xff]
    %v2429 = vld [vmem:[#allocation3 + $0x568] sm:$0xff]
    %v2430 = vld [vmem:[#allocation3 + $0x570] sm:$0xff]
    %v2431 = vld [vmem:[#allocation3 + $0x578] sm:$0xff]
    %v2432 = vld [vmem:[#allocation3 + $0x580] sm:$0xff]
    %v2433 = vld [vmem:[#allocation3 + $0x588] sm:$0xff]
    %v2434 = vld [vmem:[#allocation3 + $0x590] sm:$0xff]
    %v2435 = vld [vmem:[#allocation3 + $0x598] sm:$0xff]
    %v2436 = vld [vmem:[#allocation3 + $0x5a0] sm:$0xff]
    %v2437 = vld [vmem:[#allocation3 + $0x5a8] sm:$0xff]
    %v2438 = vld [vmem:[#allocation3 + $0x5b0] sm:$0xff]
    %v2439 = vld [vmem:[#allocation3 + $0x5b8] sm:$0xff]
    %v2440 = vld [vmem:[#allocation3 + $0x5c0] sm:$0xff]
    %v2441 = vld [vmem:[#allocation3 + $0x5c8] sm:$0xff]
    %v2442 = vld [vmem:[#allocation3 + $0x5d0] sm:$0xff]
    %v2443 = vld [vmem:[#allocation3 + $0x5d8] sm:$0xff]
    %v2444 = vld [vmem:[#allocation3 + $0x5e0] sm:$0xff]
    %v2445 = vld [vmem:[#allocation3 + $0x5e8] sm:$0xff]
    %v2446 = vld [vmem:[#allocation3 + $0x5f0] sm:$0xff]
    %v2447 = vld [vmem:[#allocation3 + $0x5f8] sm:$0xff]
    %v2448 = vld [vmem:[%s9] sm:$0xf]
    %v2450 = vlaneseq
    %v2451 = vshrl.u32 %v2450, 7
    %v2452 = vsub.s32 0, %v2451
    %v2453 = vrot.slane %v2448, %v2452
    %v2454 = vlaneseq
    %v2455 = vshrl.u32 %v2454, 7
    %v2456 = vsub.s32 1, %v2455
    %v2457 = vrot.slane %v2448, %v2456
    %v2458 = vlaneseq
    %v2459 = vshrl.u32 %v2458, 7
    %v2460 = vsub.s32 2, %v2459
    %v2461 = vrot.slane %v2448, %v2460
    %v2462 = vlaneseq
    %v2463 = vshrl.u32 %v2462, 7
    %v2464 = vsub.s32 3, %v2463
    %v2465 = vrot.slane %v2448, %v2464
    %2470 = vmatprep.subr.bf16.mxu0 %v2257
    %2471 = vmatpush1.bf16.msra.mxu0 %v2256
    %2472 = vmatprep.subr.bf16.mxu0 %v2261
    %2473 = vmatpush1.bf16.msra.mxu0 %v2260
    %2474 = vmatprep.subr.bf16.mxu0 %v2265
    %2475 = vmatpush1.bf16.msra.mxu0 %v2264
    %2476 = vmatprep.subr.bf16.mxu0 %v2269
    %2477 = vmatpush1.bf16.msra.mxu0 %v2268
    %2478 = vmatprep.subr.bf16.mxu0 %v2273
    %2479 = vmatpush1.bf16.msra.mxu0 %v2272
    %2480 = vmatprep.subr.bf16.mxu0 %v2277
    %2481 = vmatpush1.bf16.msra.mxu0 %v2276
    %2482 = vmatprep.subr.bf16.mxu0 %v2281
    %2483 = vmatpush1.bf16.msra.mxu0 %v2280
    %2484 = vmatprep.subr.bf16.mxu0 %v2285
    %2485 = vmatpush1.bf16.msra.mxu0 %v2284
    %2486 = vmatprep.subr.bf16.mxu0 %v2289
    %2487 = vmatpush1.bf16.msra.mxu0 %v2288
    %2488 = vmatprep.subr.bf16.mxu0 %v2293
    %2489 = vmatpush1.bf16.msra.mxu0 %v2292
    %2490 = vmatprep.subr.bf16.mxu0 %v2297
    %2491 = vmatpush1.bf16.msra.mxu0 %v2296
    %2492 = vmatprep.subr.bf16.mxu0 %v2301
    %2493 = vmatpush1.bf16.msra.mxu0 %v2300
    %2494 = vmatprep.subr.bf16.mxu0 %v2305
    %2495 = vmatpush1.bf16.msra.mxu0 %v2304
    %2496 = vmatprep.subr.bf16.mxu0 %v2309
    %2497 = vmatpush1.bf16.msra.mxu0 %v2308
    %2498 = vmatprep.subr.bf16.mxu0 %v2313
    %2499 = vmatpush1.bf16.msra.mxu0 %v2312
    %2500 = vmatprep.subr.bf16.mxu0 %v2317
    %2501 = vmatpush1.bf16.msra.mxu0 %v2316
    %2502 = vmatprep.mubr.bf16.mxu0 %v2251
    %2503 = vmatmul.mubr.bf16.gmra.mrb[0].mxu0 %v2250
    %v2504 = vpop.f32.mrb[0].mxu0
    %v2505 = vadd.f32 %v2453, %v2504
    %v2506 = vpop.f32.mrb[0].mxu0
    %v2507 = vadd.f32 %v2457, %v2506
    %v2508 = vpop.f32.mrb[0].mxu0
    %v2509 = vpop.f32.mrb[0].mxu0
    %2510 = vdwg.mxu0
    %2511 = vmatprep.subr.bf16.mxu0 %v2321
    %2512 = vmatpush1.bf16.msra.mxu0 %v2320
    %2513 = vmatprep.subr.bf16.mxu0 %v2325
    %2514 = vmatpush1.bf16.msra.mxu0 %v2324
    %2515 = vmatprep.subr.bf16.mxu0 %v2329
    %2516 = vmatpush1.bf16.msra.mxu0 %v2328
    %2517 = vmatprep.subr.bf16.mxu0 %v2333
    %2518 = vmatpush1.bf16.msra.mxu0 %v2332
    %2519 = vmatprep.subr.bf16.mxu0 %v2337
    %2520 = vmatpush1.bf16.msra.mxu0 %v2336
    %2521 = vmatprep.subr.bf16.mxu0 %v2341
    %2522 = vmatpush1.bf16.msra.mxu0 %v2340
    %2523 = vmatprep.subr.bf16.mxu0 %v2345
    %2524 = vmatpush1.bf16.msra.mxu0 %v2344
    %2525 = vmatprep.subr.bf16.mxu0 %v2349
    %2526 = vmatpush1.bf16.msra.mxu0 %v2348
    %2527 = vmatprep.subr.bf16.mxu0 %v2353
    %2528 = vmatpush1.bf16.msra.mxu0 %v2352
    %2529 = vmatprep.subr.bf16.mxu0 %v2357
    %2530 = vmatpush1.bf16.msra.mxu0 %v2356
    %2531 = vmatprep.subr.bf16.mxu0 %v2361
    %2532 = vmatpush1.bf16.msra.mxu0 %v2360
    %2533 = vmatprep.subr.bf16.mxu0 %v2365
    %2534 = vmatpush1.bf16.msra.mxu0 %v2364
    %2535 = vmatprep.subr.bf16.mxu0 %v2369
    %2536 = vmatpush1.bf16.msra.mxu0 %v2368
    %2537 = vmatprep.subr.bf16.mxu0 %v2373
    %2538 = vmatpush1.bf16.msra.mxu0 %v2372
    %2539 = vmatprep.subr.bf16.mxu0 %v2377
    %2540 = vmatpush1.bf16.msra.mxu0 %v2376
    %2541 = vmatprep.subr.bf16.mxu0 %v2381
    %2542 = vmatpush1.bf16.msra.mxu0 %v2380
    %2543 = vmatprep.mubr.bf16.mxu0 %v2253
    %2544 = vmatmul.mubr.bf16.gmra.mrb[0].mxu0 %v2252
    %v2545 = vpop.f32.mrb[0].mxu0
    %v2546 = vadd.f32 %v2505, %v2545
    %v2547 = vpop.f32.mrb[0].mxu0
    %v2548 = vadd.f32 %v2507, %v2547
    %v2549 = vpop.f32.mrb[0].mxu0
    %v2550 = vpop.f32.mrb[0].mxu0
    %2551 = vdwg.mxu0
    %2552 = vmatprep.subr.bf16.mxu0 %v2385
    %2553 = vmatpush1.bf16.msra.mxu0 %v2384
    %2554 = vmatprep.subr.bf16.mxu0 %v2389
    %2555 = vmatpush1.bf16.msra.mxu0 %v2388
    %2556 = vmatprep.subr.bf16.mxu0 %v2393
    %2557 = vmatpush1.bf16.msra.mxu0 %v2392
    %2558 = vmatprep.subr.bf16.mxu0 %v2397
    %2559 = vmatpush1.bf16.msra.mxu0 %v2396
    %2560 = vmatprep.subr.bf16.mxu0 %v2401
    %2561 = vmatpush1.bf16.msra.mxu0 %v2400
    %2562 = vmatprep.subr.bf16.mxu0 %v2405
    %2563 = vmatpush1.bf16.msra.mxu0 %v2404
    %2564 = vmatprep.subr.bf16.mxu0 %v2409
    %2565 = vmatpush1.bf16.msra.mxu0 %v2408
    %2566 = vmatprep.subr.bf16.mxu0 %v2413
    %2567 = vmatpush1.bf16.msra.mxu0 %v2412
    %2568 = vmatprep.subr.bf16.mxu0 %v2417
    %2569 = vmatpush1.bf16.msra.mxu0 %v2416
    %2570 = vmatprep.subr.bf16.mxu0 %v2421
    %2571 = vmatpush1.bf16.msra.mxu0 %v2420
    %2572 = vmatprep.subr.bf16.mxu0 %v2425
    %2573 = vmatpush1.bf16.msra.mxu0 %v2424
    %2574 = vmatprep.subr.bf16.mxu0 %v2429
    %2575 = vmatpush1.bf16.msra.mxu0 %v2428
    %2576 = vmatprep.subr.bf16.mxu0 %v2433
    %2577 = vmatpush1.bf16.msra.mxu0 %v2432
    %2578 = vmatprep.subr.bf16.mxu0 %v2437
    %2579 = vmatpush1.bf16.msra.mxu0 %v2436
    %2580 = vmatprep.subr.bf16.mxu0 %v2441
    %2581 = vmatpush1.bf16.msra.mxu0 %v2440
    %2582 = vmatprep.subr.bf16.mxu0 %v2445
    %2583 = vmatpush1.bf16.msra.mxu0 %v2444
    %2584 = vmatprep.mubr.bf16.mxu0 %v2255
    %2585 = vmatmul.mubr.bf16.gmra.mrb[0].mxu0 %v2254
    %v2586 = vpop.f32.mrb[0].mxu0
    %v2587 = vadd.f32 %v2546, %v2586
    %v2588 = vpop.f32.mrb[0].mxu0
    %v2589 = vadd.f32 %v2548, %v2588
    %v2590 = vpop.f32.mrb[0].mxu0
    %v2591 = vpop.f32.mrb[0].mxu0
    %2592 = vdwg.mxu0
    %2593 = vmatprep.subr.bf16.mxu0 %v2259
    %2594 = vmatpush1.bf16.msra.mxu0 %v2258
    %2595 = vmatprep.subr.bf16.mxu0 %v2263
    %2596 = vmatpush1.bf16.msra.mxu0 %v2262
    %2597 = vmatprep.subr.bf16.mxu0 %v2267
    %2598 = vmatpush1.bf16.msra.mxu0 %v2266
    %2599 = vmatprep.subr.bf16.mxu0 %v2271
    %2600 = vmatpush1.bf16.msra.mxu0 %v2270
    %2601 = vmatprep.subr.bf16.mxu0 %v2275
    %2602 = vmatpush1.bf16.msra.mxu0 %v2274
    %2603 = vmatprep.subr.bf16.mxu0 %v2279
    %2604 = vmatpush1.bf16.msra.mxu0 %v2278
    %2605 = vmatprep.subr.bf16.mxu0 %v2283
    %2606 = vmatpush1.bf16.msra.mxu0 %v2282
    %2607 = vmatprep.subr.bf16.mxu0 %v2287
    %2608 = vmatpush1.bf16.msra.mxu0 %v2286
    %2609 = vmatprep.subr.bf16.mxu0 %v2291
    %2610 = vmatpush1.bf16.msra.mxu0 %v2290
    %2611 = vmatprep.subr.bf16.mxu0 %v2295
    %2612 = vmatpush1.bf16.msra.mxu0 %v2294
    %2613 = vmatprep.subr.bf16.mxu0 %v2299
    %2614 = vmatpush1.bf16.msra.mxu0 %v2298
    %2615 = vmatprep.subr.bf16.mxu0 %v2303
    %2616 = vmatpush1.bf16.msra.mxu0 %v2302
    %2617 = vmatprep.subr.bf16.mxu0 %v2307
    %2618 = vmatpush1.bf16.msra.mxu0 %v2306
    %2619 = vmatprep.subr.bf16.mxu0 %v2311
    %2620 = vmatpush1.bf16.msra.mxu0 %v2310
    %2621 = vmatprep.subr.bf16.mxu0 %v2315
    %2622 = vmatpush1.bf16.msra.mxu0 %v2314
    %2623 = vmatprep.subr.bf16.mxu0 %v2319
    %2624 = vmatpush1.bf16.msra.mxu0 %v2318
    %2625 = vmatprep.mubr.bf16.mxu0 %v2251
    %2626 = vmatmul.mubr.bf16.gmra.mrb[0].mxu0 %v2250
    %v2627 = vpop.f32.mrb[0].mxu0
    %v2628 = vadd.f32 %v2461, %v2627
    %v2629 = vpop.f32.mrb[0].mxu0
    %v2630 = vadd.f32 %v2465, %v2629
    %v2631 = vpop.f32.mrb[0].mxu0
    %v2632 = vpop.f32.mrb[0].mxu0
    %2633 = vdwg.mxu0
    %2634 = vmatprep.subr.bf16.mxu0 %v2323
    %2635 = vmatpush1.bf16.msra.mxu0 %v2322
    %2636 = vmatprep.subr.bf16.mxu0 %v2327
    %2637 = vmatpush1.bf16.msra.mxu0 %v2326
    %2638 = vmatprep.subr.bf16.mxu0 %v2331
    %2639 = vmatpush1.bf16.msra.mxu0 %v2330
    %2640 = vmatprep.subr.bf16.mxu0 %v2335
    %2641 = vmatpush1.bf16.msra.mxu0 %v2334
    %2642 = vmatprep.subr.bf16.mxu0 %v2339
    %2643 = vmatpush1.bf16.msra.mxu0 %v2338
    %2644 = vmatprep.subr.bf16.mxu0 %v2343
    %2645 = vmatpush1.bf16.msra.mxu0 %v2342
    %2646 = vmatprep.subr.bf16.mxu0 %v2347
    %2647 = vmatpush1.bf16.msra.mxu0 %v2346
    %2648 = vmatprep.subr.bf16.mxu0 %v2351
    %2649 = vmatpush1.bf16.msra.mxu0 %v2350
    %2650 = vmatprep.subr.bf16.mxu0 %v2355
    %2651 = vmatpush1.bf16.msra.mxu0 %v2354
    %2652 = vmatprep.subr.bf16.mxu0 %v2359
    %2653 = vmatpush1.bf16.msra.mxu0 %v2358
    %2654 = vmatprep.subr.bf16.mxu0 %v2363
    %2655 = vmatpush1.bf16.msra.mxu0 %v2362
    %2656 = vmatprep.subr.bf16.mxu0 %v2367
    %2657 = vmatpush1.bf16.msra.mxu0 %v2366
    %2658 = vmatprep.subr.bf16.mxu0 %v2371
    %2659 = vmatpush1.bf16.msra.mxu0 %v2370
    %2660 = vmatprep.subr.bf16.mxu0 %v2375
    %2661 = vmatpush1.bf16.msra.mxu0 %v2374
    %2662 = vmatprep.subr.bf16.mxu0 %v2379
    %2663 = vmatpush1.bf16.msra.mxu0 %v2378
    %2664 = vmatprep.subr.bf16.mxu0 %v2383
    %2665 = vmatpush1.bf16.msra.mxu0 %v2382
    %2666 = vmatprep.mubr.bf16.mxu0 %v2253
    %2667 = vmatmul.mubr.bf16.gmra.mrb[0].mxu0 %v2252
    %v2668 = vpop.f32.mrb[0].mxu0
    %v2669 = vadd.f32 %v2628, %v2668
    %v2670 = vpop.f32.mrb[0].mxu0
    %v2671 = vadd.f32 %v2630, %v2670
    %v2672 = vpop.f32.mrb[0].mxu0
    %v2673 = vpop.f32.mrb[0].mxu0
    %2674 = vdwg.mxu0
    %2675 = vmatprep.subr.bf16.mxu0 %v2387
    %2676 = vmatpush1.bf16.msra.mxu0 %v2386
    %2677 = vmatprep.subr.bf16.mxu0 %v2391
    %2678 = vmatpush1.bf16.msra.mxu0 %v2390
    %2679 = vmatprep.subr.bf16.mxu0 %v2395
    %2680 = vmatpush1.bf16.msra.mxu0 %v2394
    %2681 = vmatprep.subr.bf16.mxu0 %v2399
    %2682 = vmatpush1.bf16.msra.mxu0 %v2398
    %2683 = vmatprep.subr.bf16.mxu0 %v2403
    %2684 = vmatpush1.bf16.msra.mxu0 %v2402
    %2685 = vmatprep.subr.bf16.mxu0 %v2407
    %2686 = vmatpush1.bf16.msra.mxu0 %v2406
    %2687 = vmatprep.subr.bf16.mxu0 %v2411
    %2688 = vmatpush1.bf16.msra.mxu0 %v2410
    %2689 = vmatprep.subr.bf16.mxu0 %v2415
    %2690 = vmatpush1.bf16.msra.mxu0 %v2414
    %2691 = vmatprep.subr.bf16.mxu0 %v2419
    %2692 = vmatpush1.bf16.msra.mxu0 %v2418
    %2693 = vmatprep.subr.bf16.mxu0 %v2423
    %2694 = vmatpush1.bf16.msra.mxu0 %v2422
    %2695 = vmatprep.subr.bf16.mxu0 %v2427
    %2696 = vmatpush1.bf16.msra.mxu0 %v2426
    %2697 = vmatprep.subr.bf16.mxu0 %v2431
    %2698 = vmatpush1.bf16.msra.mxu0 %v2430
    %2699 = vmatprep.subr.bf16.mxu0 %v2435
    %2700 = vmatpush1.bf16.msra.mxu0 %v2434
    %2701 = vmatprep.subr.bf16.mxu0 %v2439
    %2702 = vmatpush1.bf16.msra.mxu0 %v2438
    %2703 = vmatprep.subr.bf16.mxu0 %v2443
    %2704 = vmatpush1.bf16.msra.mxu0 %v2442
    %2705 = vmatprep.subr.bf16.mxu0 %v2447
    %2706 = vmatpush1.bf16.msra.mxu0 %v2446
    %2707 = vmatprep.mubr.bf16.mxu0 %v2255
    %2708 = vmatmul.mubr.bf16.gmra.mrb[0].mxu0 %v2254
    %v2709 = vpop.f32.mrb[0].mxu0
    %v2710 = vadd.f32 %v2669, %v2709
    %v2711 = vpop.f32.mrb[0].mxu0
    %v2712 = vadd.f32 %v2671, %v2711
    %v2713 = vpop.f32.mrb[0].mxu0
    %v2714 = vpop.f32.mrb[0].mxu0
    %2715 = vdwg.mxu0
    %vm2716 = vcmp.gt.f32.partialorder %v2587, 0.0
    %vm2717 = vcmp.gt.f32.partialorder %v2589, 0.0
    %vm2718 = vcmp.gt.f32.partialorder %v2710, 0.0
    %vm2719 = vcmp.gt.f32.partialorder %v2712, 0.0
    %v2720 = vmul.f32 %v2587, 0.2
    %v2721 = vmul.f32 %v2589, 0.2
    %v2722 = vmul.f32 %v2710, 0.2
    %v2723 = vmul.f32 %v2712, 0.2
    %v2724 = vsel %vm2716, %v2587, %v2720
    %v2725 = vsel %vm2717, %v2589, %v2721
    %v2726 = vsel %vm2718, %v2710, %v2722
    %v2727 = vsel %vm2719, %v2712, %v2723
    %s2728 = smul.u32 %s1700, 2
    %s2729 = sshll.u32 %s2728, 4
    %2730 = dma.done %s132, %s2729
    %v2731 = vpack.c.bf16 %v2724, %v2724
    %v2732 = vpack.c.bf16 %v2725, %v2725
    %v2733 = vpack.c.bf16 %v2726, %v2726
    %v2734 = vpack.c.bf16 %v2727, %v2727
    %v2735 = vld [vmem:[#allocation4] sm:$0xff]
    %v2736 = vld [vmem:[#allocation4 + $0x8] sm:$0xff]
    %v2737 = vld [vmem:[#allocation4 + $0x10] sm:$0xff]
    %v2738 = vld [vmem:[#allocation4 + $0x18] sm:$0xff]
    %v2739 = vld [vmem:[#allocation4 + $0x20] sm:$0xff]
    %v2740 = vld [vmem:[#allocation4 + $0x28] sm:$0xff]
    %v2741 = vld [vmem:[#allocation4 + $0x30] sm:$0xff]
    %v2742 = vld [vmem:[#allocation4 + $0x38] sm:$0xff]
    %v2743 = vld [vmem:[#allocation4 + $0x40] sm:$0xff]
    %v2744 = vld [vmem:[#allocation4 + $0x48] sm:$0xff]
    %v2745 = vld [vmem:[#allocation4 + $0x50] sm:$0xff]
    %v2746 = vld [vmem:[#allocation4 + $0x58] sm:$0xff]
    %v2747 = vld [vmem:[#allocation4 + $0x60] sm:$0xff]
    %v2748 = vld [vmem:[#allocation4 + $0x68] sm:$0xff]
    %v2749 = vld [vmem:[#allocation4 + $0x70] sm:$0xff]
    %v2750 = vld [vmem:[#allocation4 + $0x78] sm:$0xff]
    %v2751 = vld [vmem:[#allocation4 + $0x80] sm:$0xff]
    %v2752 = vld [vmem:[#allocation4 + $0x88] sm:$0xff]
    %v2753 = vld [vmem:[#allocation4 + $0x90] sm:$0xff]
    %v2754 = vld [vmem:[#allocation4 + $0x98] sm:$0xff]
    %v2755 = vld [vmem:[#allocation4 + $0xa0] sm:$0xff]
    %v2756 = vld [vmem:[#allocation4 + $0xa8] sm:$0xff]
    %v2757 = vld [vmem:[#allocation4 + $0xb0] sm:$0xff]
    %v2758 = vld [vmem:[#allocation4 + $0xb8] sm:$0xff]
    %v2759 = vld [vmem:[#allocation4 + $0xc0] sm:$0xff]
    %v2760 = vld [vmem:[#allocation4 + $0xc8] sm:$0xff]
    %v2761 = vld [vmem:[#allocation4 + $0xd0] sm:$0xff]
    %v2762 = vld [vmem:[#allocation4 + $0xd8] sm:$0xff]
    %v2763 = vld [vmem:[#allocation4 + $0xe0] sm:$0xff]
    %v2764 = vld [vmem:[#allocation4 + $0xe8] sm:$0xff]
    %v2765 = vld [vmem:[#allocation4 + $0xf0] sm:$0xff]
    %v2766 = vld [vmem:[#allocation4 + $0xf8] sm:$0xff]
    %v2767 = vld [vmem:[#allocation4 + $0x100] sm:$0xff]
    %v2768 = vld [vmem:[#allocation4 + $0x108] sm:$0xff]
    %v2769 = vld [vmem:[#allocation4 + $0x110] sm:$0xff]
    %v2770 = vld [vmem:[#allocation4 + $0x118] sm:$0xff]
    %v2771 = vld [vmem:[#allocation4 + $0x120] sm:$0xff]
    %v2772 = vld [vmem:[#allocation4 + $0x128] sm:$0xff]
    %v2773 = vld [vmem:[#allocation4 + $0x130] sm:$0xff]
    %v2774 = vld [vmem:[#allocation4 + $0x138] sm:$0xff]
    %v2775 = vld [vmem:[#allocation4 + $0x140] sm:$0xff]
    %v2776 = vld [vmem:[#allocation4 + $0x148] sm:$0xff]
    %v2777 = vld [vmem:[#allocation4 + $0x150] sm:$0xff]
    %v2778 = vld [vmem:[#allocation4 + $0x158] sm:$0xff]
    %v2779 = vld [vmem:[#allocation4 + $0x160] sm:$0xff]
    %v2780 = vld [vmem:[#allocation4 + $0x168] sm:$0xff]
    %v2781 = vld [vmem:[#allocation4 + $0x170] sm:$0xff]
    %v2782 = vld [vmem:[#allocation4 + $0x178] sm:$0xff]
    %v2783 = vld [vmem:[#allocation4 + $0x180] sm:$0xff]
    %v2784 = vld [vmem:[#allocation4 + $0x188] sm:$0xff]
    %v2785 = vld [vmem:[#allocation4 + $0x190] sm:$0xff]
    %v2786 = vld [vmem:[#allocation4 + $0x198] sm:$0xff]
    %v2787 = vld [vmem:[#allocation4 + $0x1a0] sm:$0xff]
    %v2788 = vld [vmem:[#allocation4 + $0x1a8] sm:$0xff]
    %v2789 = vld [vmem:[#allocation4 + $0x1b0] sm:$0xff]
    %v2790 = vld [vmem:[#allocation4 + $0x1b8] sm:$0xff]
    %v2791 = vld [vmem:[#allocation4 + $0x1c0] sm:$0xff]
    %v2792 = vld [vmem:[#allocation4 + $0x1c8] sm:$0xff]
    %v2793 = vld [vmem:[#allocation4 + $0x1d0] sm:$0xff]
    %v2794 = vld [vmem:[#allocation4 + $0x1d8] sm:$0xff]
    %v2795 = vld [vmem:[#allocation4 + $0x1e0] sm:$0xff]
    %v2796 = vld [vmem:[#allocation4 + $0x1e8] sm:$0xff]
    %v2797 = vld [vmem:[#allocation4 + $0x1f0] sm:$0xff]
    %v2798 = vld [vmem:[#allocation4 + $0x1f8] sm:$0xff]
    %2799 = vmatprep.subr.bf16.mxu0 %v2736
    %2800 = vmatpush1.bf16.msra.mxu0 %v2735
    %2801 = vmatprep.subr.bf16.mxu0 %v2738
    %2802 = vmatpush1.bf16.msra.mxu0 %v2737
    %2803 = vmatprep.subr.bf16.mxu0 %v2740
    %2804 = vmatpush1.bf16.msra.mxu0 %v2739
    %2805 = vmatprep.subr.bf16.mxu0 %v2742
    %2806 = vmatpush1.bf16.msra.mxu0 %v2741
    %2807 = vmatprep.subr.bf16.mxu0 %v2744
    %2808 = vmatpush1.bf16.msra.mxu0 %v2743
    %2809 = vmatprep.subr.bf16.mxu0 %v2746
    %2810 = vmatpush1.bf16.msra.mxu0 %v2745
    %2811 = vmatprep.subr.bf16.mxu0 %v2748
    %2812 = vmatpush1.bf16.msra.mxu0 %v2747
    %2813 = vmatprep.subr.bf16.mxu0 %v2750
    %2814 = vmatpush1.bf16.msra.mxu0 %v2749
    %2815 = vmatprep.subr.bf16.mxu0 %v2752
    %2816 = vmatpush1.bf16.msra.mxu0 %v2751
    %2817 = vmatprep.subr.bf16.mxu0 %v2754
    %2818 = vmatpush1.bf16.msra.mxu0 %v2753
    %2819 = vmatprep.subr.bf16.mxu0 %v2756
    %2820 = vmatpush1.bf16.msra.mxu0 %v2755
    %2821 = vmatprep.subr.bf16.mxu0 %v2758
    %2822 = vmatpush1.bf16.msra.mxu0 %v2757
    %2823 = vmatprep.subr.bf16.mxu0 %v2760
    %2824 = vmatpush1.bf16.msra.mxu0 %v2759
    %2825 = vmatprep.subr.bf16.mxu0 %v2762
    %2826 = vmatpush1.bf16.msra.mxu0 %v2761
    %2827 = vmatprep.subr.bf16.mxu0 %v2764
    %2828 = vmatpush1.bf16.msra.mxu0 %v2763
    %2829 = vmatprep.subr.bf16.mxu0 %v2766
    %2830 = vmatpush1.bf16.msra.mxu0 %v2765
    %2831 = vmatprep.mubr.bf16.mxu0 %v2732
    %2832 = vmatmul.mubr.bf16.gmra.mrb[0].mxu0 %v2731
    %v2833 = vpop.f32.mrb[0].mxu0
    %v2834 = vadd.f32 0.0, %v2833
    %v2835 = vpop.f32.mrb[0].mxu0
    %v2836 = vadd.f32 0.0, %v2835
    %v2837 = vpop.f32.mrb[0].mxu0
    %v2838 = vpop.f32.mrb[0].mxu0
    %2839 = vdwg.mxu0
    %2840 = vmatprep.subr.bf16.mxu0 %v2768
    %2841 = vmatpush1.bf16.msra.mxu0 %v2767
    %2842 = vmatprep.subr.bf16.mxu0 %v2770
    %2843 = vmatpush1.bf16.msra.mxu0 %v2769
    %2844 = vmatprep.subr.bf16.mxu0 %v2772
    %2845 = vmatpush1.bf16.msra.mxu0 %v2771
    %2846 = vmatprep.subr.bf16.mxu0 %v2774
    %2847 = vmatpush1.bf16.msra.mxu0 %v2773
    %2848 = vmatprep.subr.bf16.mxu0 %v2776
    %2849 = vmatpush1.bf16.msra.mxu0 %v2775
    %2850 = vmatprep.subr.bf16.mxu0 %v2778
    %2851 = vmatpush1.bf16.msra.mxu0 %v2777
    %2852 = vmatprep.subr.bf16.mxu0 %v2780
    %2853 = vmatpush1.bf16.msra.mxu0 %v2779
    %2854 = vmatprep.subr.bf16.mxu0 %v2782
    %2855 = vmatpush1.bf16.msra.mxu0 %v2781
    %2856 = vmatprep.subr.bf16.mxu0 %v2784
    %2857 = vmatpush1.bf16.msra.mxu0 %v2783
    %2858 = vmatprep.subr.bf16.mxu0 %v2786
    %2859 = vmatpush1.bf16.msra.mxu0 %v2785
    %2860 = vmatprep.subr.bf16.mxu0 %v2788
    %2861 = vmatpush1.bf16.msra.mxu0 %v2787
    %2862 = vmatprep.subr.bf16.mxu0 %v2790
    %2863 = vmatpush1.bf16.msra.mxu0 %v2789
    %2864 = vmatprep.subr.bf16.mxu0 %v2792
    %2865 = vmatpush1.bf16.msra.mxu0 %v2791
    %2866 = vmatprep.subr.bf16.mxu0 %v2794
    %2867 = vmatpush1.bf16.msra.mxu0 %v2793
    %2868 = vmatprep.subr.bf16.mxu0 %v2796
    %2869 = vmatpush1.bf16.msra.mxu0 %v2795
    %2870 = vmatprep.subr.bf16.mxu0 %v2798
    %2871 = vmatpush1.bf16.msra.mxu0 %v2797
    %2872 = vmatprep.mubr.bf16.mxu0 %v2734
    %2873 = vmatmul.mubr.bf16.gmra.mrb[0].mxu0 %v2733
    %v2874 = vpop.f32.mrb[0].mxu0
    %v2875 = vadd.f32 %v2834, %v2874
    %v2876 = vpop.f32.mrb[0].mxu0
    %v2877 = vadd.f32 %v2836, %v2876
    %v2878 = vpop.f32.mrb[0].mxu0
    %v2879 = vpop.f32.mrb[0].mxu0
    %2880 = vdwg.mxu0
    %v2881 = vsel %vm299, %v2875, 0.0
    %v2882 = vrot.slane %v2881, 4
    %v2883 = vadd.f32 %v2881, %v2882
    %v2884 = vrot.slane %v2883, 2
    %v2885 = vadd.f32 %v2883, %v2884
    %v2886 = vrot.slane %v2885, 1
    %v2887 = vadd.f32 %v2885, %v2886
    %v2888 = vsel %vm299, %v2877, 0.0
    %v2889 = vrot.slane %v2888, 4
    %v2890 = vadd.f32 %v2888, %v2889
    %v2891 = vrot.slane %v2890, 2
    %v2892 = vadd.f32 %v2890, %v2891
    %v2893 = vrot.slane %v2892, 1
    %v2894 = vadd.f32 %v2892, %v2893
    %v2897 = vrot.slane %v2875, 2
    %v2898 = vrot.slane %v2877, 2
    %v2901 = vsel %vm299, %v2897, 0.0
    %v2902 = vrot.slane %v2901, 4
    %v2903 = vadd.f32 %v2901, %v2902
    %v2904 = vrot.slane %v2903, 2
    %v2905 = vadd.f32 %v2903, %v2904
    %v2906 = vrot.slane %v2905, 1
    %v2907 = vadd.f32 %v2905, %v2906
    %v2908 = vsel %vm299, %v2898, 0.0
    %v2909 = vrot.slane %v2908, 4
    %v2910 = vadd.f32 %v2908, %v2909
    %v2911 = vrot.slane %v2910, 2
    %v2912 = vadd.f32 %v2910, %v2911
    %v2913 = vrot.slane %v2912, 1
    %v2914 = vadd.f32 %v2912, %v2913
    %v2915 = vmul.f32 %v2875, %v2875
    %v2916 = vmul.f32 %v2877, %v2877
    %v2917 = vsel %vm299, %v2915, 0.0
    %v2918 = vrot.slane %v2917, 4
    %v2919 = vadd.f32 %v2917, %v2918
    %v2920 = vrot.slane %v2919, 2
    %v2921 = vadd.f32 %v2919, %v2920
    %v2922 = vrot.slane %v2921, 1
    %v2923 = vadd.f32 %v2921, %v2922
    %v2924 = vsel %vm299, %v2916, 0.0
    %v2925 = vrot.slane %v2924, 4
    %v2926 = vadd.f32 %v2924, %v2925
    %v2927 = vrot.slane %v2926, 2
    %v2928 = vadd.f32 %v2926, %v2927
    %v2929 = vrot.slane %v2928, 1
    %v2930 = vadd.f32 %v2928, %v2929
    %v2933 = vrot.slane %v2915, 2
    %v2934 = vrot.slane %v2916, 2
    %v2937 = vsel %vm299, %v2933, 0.0
    %v2938 = vrot.slane %v2937, 4
    %v2939 = vadd.f32 %v2937, %v2938
    %v2940 = vrot.slane %v2939, 2
    %v2941 = vadd.f32 %v2939, %v2940
    %v2942 = vrot.slane %v2941, 1
    %v2943 = vadd.f32 %v2941, %v2942
    %v2944 = vsel %vm299, %v2934, 0.0
    %v2945 = vrot.slane %v2944, 4
    %v2946 = vadd.f32 %v2944, %v2945
    %v2947 = vrot.slane %v2946, 2
    %v2948 = vadd.f32 %v2946, %v2947
    %v2949 = vrot.slane %v2948, 1
    %v2950 = vadd.f32 %v2948, %v2949
    %vm2951 = vcmp.eq.s32.totalorder %v331, 1
    %vm2952 = vcmp.eq.s32.totalorder %v331, 2
    %v2953 = vsel %vm2952, %v2923, %v2943
    %v2954 = vsel %vm2952, %v2930, %v2950
    %v2955 = vsel %vm2951, %v2907, %v2953
    %v2956 = vsel %vm2951, %v2914, %v2954
    %v2957 = vsel %vm332, %v2887, %v2955
    %v2958 = vsel %vm332, %v2894, %v2956
    %v2959 = vpack.c.bf16 %v2957, %v2957
    %v2960 = vpack.c.bf16 %v2958, %v2958
    %v2961 = vld [vmem:[%s12] sm:$0xf]
    %v2962 = vld [vmem:[%s12 + $0x4] sm:$0xf]
    %v2963 = vld [vmem:[%s12 + $0x8] sm:$0xf]
    %v2964 = vld [vmem:[%s12 + $0xc] sm:$0xf]
    %v2965 = vld [vmem:[%s12 + $0x10] sm:$0xf]
    %v2966 = vld [vmem:[%s12 + $0x14] sm:$0xf]
    %v2967 = vld [vmem:[%s12 + $0x18] sm:$0xf]
    %v2968 = vld [vmem:[%s12 + $0x1c] sm:$0xf]
    %v2969 = vld [vmem:[%s12 + $0x20] sm:$0xf]
    %v2970 = vld [vmem:[%s12 + $0x24] sm:$0xf]
    %v2971 = vld [vmem:[%s12 + $0x28] sm:$0xf]
    %v2972 = vld [vmem:[%s12 + $0x2c] sm:$0xf]
    %v2973 = vld [vmem:[%s12 + $0x30] sm:$0xf]
    %v2974 = vld [vmem:[%s12 + $0x34] sm:$0xf]
    %v2975 = vld [vmem:[%s12 + $0x38] sm:$0xf]
    %v2976 = vld [vmem:[%s12 + $0x3c] sm:$0xf]
    %v2977 = vld [vmem:[%s12 + $0x40] sm:$0xf]
    %v2978 = vld [vmem:[%s12 + $0x44] sm:$0xf]
    %v2979 = vld [vmem:[%s12 + $0x48] sm:$0xf]
    %v2980 = vld [vmem:[%s12 + $0x4c] sm:$0xf]
    %v2981 = vld [vmem:[%s12 + $0x50] sm:$0xf]
    %v2982 = vld [vmem:[%s12 + $0x54] sm:$0xf]
    %v2983 = vld [vmem:[%s12 + $0x58] sm:$0xf]
    %v2984 = vld [vmem:[%s12 + $0x5c] sm:$0xf]
    %v2985 = vld [vmem:[%s12 + $0x60] sm:$0xf]
    %v2986 = vld [vmem:[%s12 + $0x64] sm:$0xf]
    %v2987 = vld [vmem:[%s12 + $0x68] sm:$0xf]
    %v2988 = vld [vmem:[%s12 + $0x6c] sm:$0xf]
    %v2989 = vld [vmem:[%s12 + $0x70] sm:$0xf]
    %v2990 = vld [vmem:[%s12 + $0x74] sm:$0xf]
    %v2991 = vld [vmem:[%s12 + $0x78] sm:$0xf]
    %v2992 = vld [vmem:[%s12 + $0x7c] sm:$0xf]
    %v3025 = vunpack.c.l.b16 %v2961
    %v3026 = vunpack.c.l.b16 %v2962
    %v3027 = vunpack.c.l.b16 %v2963
    %v3028 = vunpack.c.l.b16 %v2964
    %v3029 = vunpack.c.l.b16 %v2965
    %v3030 = vunpack.c.l.b16 %v2966
    %v3031 = vunpack.c.l.b16 %v2967
    %v3032 = vunpack.c.l.b16 %v2968
    %v3033 = vunpack.c.l.b16 %v2969
    %v3034 = vunpack.c.l.b16 %v2970
    %v3035 = vunpack.c.l.b16 %v2971
    %v3036 = vunpack.c.l.b16 %v2972
    %v3037 = vunpack.c.l.b16 %v2973
    %v3038 = vunpack.c.l.b16 %v2974
    %v3039 = vunpack.c.l.b16 %v2975
    %v3040 = vunpack.c.l.b16 %v2976
    %v3041 = vunpack.c.l.b16 %v2977
    %v3042 = vunpack.c.l.b16 %v2978
    %v3043 = vunpack.c.l.b16 %v2979
    %v3044 = vunpack.c.l.b16 %v2980
    %v3045 = vunpack.c.l.b16 %v2981
    %v3046 = vunpack.c.l.b16 %v2982
    %v3047 = vunpack.c.l.b16 %v2983
    %v3048 = vunpack.c.l.b16 %v2984
    %v3049 = vunpack.c.l.b16 %v2985
    %v3050 = vunpack.c.l.b16 %v2986
    %v3051 = vunpack.c.l.b16 %v2987
    %v3052 = vunpack.c.l.b16 %v2988
    %v3053 = vunpack.c.l.b16 %v2989
    %v3054 = vunpack.c.l.b16 %v2990
    %v3055 = vunpack.c.l.b16 %v2991
    %v3056 = vunpack.c.l.b16 %v2992
    %v3057 = vpack.c.b16 %v3026, %v3025
    %v3058 = vpack.c.b16 %v3028, %v3027
    %v3059 = vpack.c.b16 %v3030, %v3029
    %v3060 = vpack.c.b16 %v3032, %v3031
    %v3061 = vpack.c.b16 %v3034, %v3033
    %v3062 = vpack.c.b16 %v3036, %v3035
    %v3063 = vpack.c.b16 %v3038, %v3037
    %v3064 = vpack.c.b16 %v3040, %v3039
    %v3065 = vpack.c.b16 %v3042, %v3041
    %v3066 = vpack.c.b16 %v3044, %v3043
    %v3067 = vpack.c.b16 %v3046, %v3045
    %v3068 = vpack.c.b16 %v3048, %v3047
    %v3069 = vpack.c.b16 %v3050, %v3049
    %v3070 = vpack.c.b16 %v3052, %v3051
    %v3071 = vpack.c.b16 %v3054, %v3053
    %v3072 = vpack.c.b16 %v3056, %v3055
    %3089 = vmatprep.subr.bf16.mxu0 0
    %3090 = vmatpush1.bf16.msra.mxu0 %v3057
    %3091 = vmatprep.subr.bf16.mxu0 0
    %3092 = vmatpush1.bf16.msra.mxu0 %v3058
    %3093 = vmatprep.subr.bf16.mxu0 0
    %3094 = vmatpush1.bf16.msra.mxu0 %v3059
    %3095 = vmatprep.subr.bf16.mxu0 0
    %3096 = vmatpush1.bf16.msra.mxu0 %v3060
    %3097 = vmatprep.subr.bf16.mxu0 0
    %3098 = vmatpush1.bf16.msra.mxu0 %v3061
    %3099 = vmatprep.subr.bf16.mxu0 0
    %3100 = vmatpush1.bf16.msra.mxu0 %v3062
    %3101 = vmatprep.subr.bf16.mxu0 0
    %3102 = vmatpush1.bf16.msra.mxu0 %v3063
    %3103 = vmatprep.subr.bf16.mxu0 0
    %3104 = vmatpush1.bf16.msra.mxu0 %v3064
    %3105 = vmatprep.subr.bf16.mxu0 0
    %3106 = vmatpush1.bf16.msra.mxu0 %v3065
    %3107 = vmatprep.subr.bf16.mxu0 0
    %3108 = vmatpush1.bf16.msra.mxu0 %v3066
    %3109 = vmatprep.subr.bf16.mxu0 0
    %3110 = vmatpush1.bf16.msra.mxu0 %v3067
    %3111 = vmatprep.subr.bf16.mxu0 0
    %3112 = vmatpush1.bf16.msra.mxu0 %v3068
    %3113 = vmatprep.subr.bf16.mxu0 0
    %3114 = vmatpush1.bf16.msra.mxu0 %v3069
    %3115 = vmatprep.subr.bf16.mxu0 0
    %3116 = vmatpush1.bf16.msra.mxu0 %v3070
    %3117 = vmatprep.subr.bf16.mxu0 0
    %3118 = vmatpush1.bf16.msra.mxu0 %v3071
    %3119 = vmatprep.subr.bf16.mxu0 0
    %3120 = vmatpush1.bf16.msra.mxu0 %v3072
    %3121 = vmatprep.mubr.bf16.mxu0 %v2960
    %3122 = vmatmul.mubr.bf16.gmra.mrb[0].mxu0 %v2959
    %v3123 = vpop.f32.mrb[0].mxu0
    %v3124 = vadd.f32 0.0, %v3123
    %v3125 = vpop.f32.mrb[0].mxu0
    %v3126 = vpop.f32.mrb[0].mxu0
    %v3127 = vpop.f32.mrb[0].mxu0
    %3128 = vdwg.mxu0
    %v3129 = vmul.f32 %v3124, 0.03125
    %v3130 = vmul.f32 %v3129, %v3129
    %v3132 = vrot.slane %v3130, 6
    %v3134 = vsub.f32 %v3129, %v3132
    %v3135 = vmax.f32 %v3134, 0.0
    %v3136 = vld [vmem:[%s10] sm:$0x1]
    %v3137 = vadd.f32 %v3135, 1e-05
    %v3138 = vrsqrt.pop %v3137
    %v3140 = vlaneseq
    %v3141 = vshrl.u32 %v3140, 7
    %v3142 = vsub.s32 0, %v3141
    %v3143 = vrot.slane %v3136, %v3142
    %v3145 = vmul.f32 %v3143, %v3138
    %v3146 = vld [vmem:[%s11] sm:$0x1]
    %v3148 = vrot.slane %v3145, 2
    %v3150 = vmul.f32 %v3129, %v3148
    %v3152 = vlaneseq
    %v3153 = vshrl.u32 %v3152, 7
    %v3154 = vsub.s32 0, %v3153
    %v3155 = vrot.slane %v3146, %v3154
    %v3157 = vsub.f32 %v3155, %v3150
    %v3158 = vlaneseq
    %v3159 = vshrl.u32 %v3158, 7
    %v3160 = vsub.s32 0, %v3159
    %v3161 = vrot.slane %v3157, %v3160
    %v3162 = vlaneseq
    %v3163 = vshrl.u32 %v3162, 7
    %v3164 = vsub.s32 1, %v3163
    %v3165 = vrot.slane %v3157, %v3164
    %v3166 = vsel %vm2952, %v3161, %v3165
    %v3167 = vlaneseq
    %v3168 = vshrl.u32 %v3167, 7
    %v3169 = vsub.s32 3, %v3168
    %v3170 = vrot.slane %v3145, %v3169
    %v3171 = vsel %vm2951, %v3170, %v3166
    %v3172 = vlaneseq
    %v3173 = vshrl.u32 %v3172, 7
    %v3174 = vsub.s32 2, %v3173
    %v3175 = vrot.slane %v3145, %v3174
    %v3176 = vsel %vm332, %v3175, %v3171
    %v3177 = vpack.c.bf16 %v3176, %v3176
    %v3178 = vld [vmem:[%s13] sm:$0xff]
    %v3179 = vld [vmem:[%s13 + $0x8] sm:$0xff]
    %v3182 = vunpack.c.l.b16 %v3178
    %v3183 = vunpack.c.h.b16 %v3178
    %v3184 = vunpack.c.l.b16 %v3179
    %v3185 = vunpack.c.h.b16 %v3179
    %v3186 = vpack.c.b16 %v3184, %v3182
    %v3187 = vpack.c.b16 %v3185, %v3183
    %v3191 = vsel %vm254, %v3177, 0
    %3193 = vmatprep.subr.bf16.mxu0 %v3187
    %3194 = vmatpush1.bf16.msra.mxu0 %v3186
    %3195 = vmatprep.subr.bf16.mxu0 0
    %3196 = vmatpush1.bf16.msra.mxu0 0
    %3197 = vmatprep.subr.bf16.mxu0 0
    %3198 = vmatpush1.bf16.msra.mxu0 0
    %3199 = vmatprep.subr.bf16.mxu0 0
    %3200 = vmatpush1.bf16.msra.mxu0 0
    %3201 = vmatprep.subr.bf16.mxu0 0
    %3202 = vmatpush1.bf16.msra.mxu0 0
    %3203 = vmatprep.subr.bf16.mxu0 0
    %3204 = vmatpush1.bf16.msra.mxu0 0
    %3205 = vmatprep.subr.bf16.mxu0 0
    %3206 = vmatpush1.bf16.msra.mxu0 0
    %3207 = vmatprep.subr.bf16.mxu0 0
    %3208 = vmatpush1.bf16.msra.mxu0 0
    %3209 = vmatprep.subr.bf16.mxu0 0
    %3210 = vmatpush1.bf16.msra.mxu0 0
    %3211 = vmatprep.subr.bf16.mxu0 0
    %3212 = vmatpush1.bf16.msra.mxu0 0
    %3213 = vmatprep.subr.bf16.mxu0 0
    %3214 = vmatpush1.bf16.msra.mxu0 0
    %3215 = vmatprep.subr.bf16.mxu0 0
    %3216 = vmatpush1.bf16.msra.mxu0 0
    %3217 = vmatprep.subr.bf16.mxu0 0
    %3218 = vmatpush1.bf16.msra.mxu0 0
    %3219 = vmatprep.subr.bf16.mxu0 0
    %3220 = vmatpush1.bf16.msra.mxu0 0
    %3221 = vmatprep.subr.bf16.mxu0 0
    %3222 = vmatpush1.bf16.msra.mxu0 0
    %3223 = vmatprep.subr.bf16.mxu0 0
    %3224 = vmatpush1.bf16.msra.mxu0 0
    %3225 = vmatprep.mubr.bf16.mxu0 0
    %3226 = vmatmul.mubr.bf16.gmra.mrb[0].mxu0 %v3191
    %v3227 = vpop.f32.mrb[0].mxu0
    %v3228 = vadd.f32 0.0, %v3227
    %v3229 = vpop.f32.mrb[0].mxu0
    %v3230 = vadd.f32 0.0, %v3229
    %v3231 = vpop.f32.mrb[0].mxu0
    %v3232 = vpop.f32.mrb[0].mxu0
    %3233 = vdwg.mxu0
    %vm3234 = vcmp.ge.s32.totalorder %v331, 2
    %v3235 = vlaneseq
    %v3236 = vshrl.u32 %v3235, 7
    %v3237 = vsub.s32 1, %v3236
    %v3238 = vrot.slane %v3228, %v3237
    %v3239 = vlaneseq
    %v3240 = vshrl.u32 %v3239, 7
    %v3241 = vsub.s32 1, %v3240
    %v3242 = vrot.slane %v3230, %v3241
    %v3243 = vlaneseq
    %v3244 = vshrl.u32 %v3243, 7
    %v3245 = vsub.s32 0, %v3244
    %v3246 = vrot.slane %v3228, %v3245
    %v3247 = vlaneseq
    %v3248 = vshrl.u32 %v3247, 7
    %v3249 = vsub.s32 0, %v3248
    %v3250 = vrot.slane %v3230, %v3249
    %v3251 = vsel %vm3234, %v3238, %v3246
    %v3252 = vsel %vm3234, %v3242, %v3250
    %v3253 = vlaneseq
    %v3254 = vshrl.u32 %v3253, 7
    %v3255 = vsub.s32 3, %v3254
    %v3256 = vrot.slane %v3228, %v3255
    %v3257 = vlaneseq
    %v3258 = vshrl.u32 %v3257, 7
    %v3259 = vsub.s32 3, %v3258
    %v3260 = vrot.slane %v3230, %v3259
    %v3261 = vlaneseq
    %v3262 = vshrl.u32 %v3261, 7
    %v3263 = vsub.s32 2, %v3262
    %v3264 = vrot.slane %v3228, %v3263
    %v3265 = vlaneseq
    %v3266 = vshrl.u32 %v3265, 7
    %v3267 = vsub.s32 2, %v3266
    %v3268 = vrot.slane %v3230, %v3267
    %v3269 = vsel %vm3234, %v3256, %v3264
    %v3270 = vsel %vm3234, %v3260, %v3268
    %v3271 = vmul.f32 %v2875, %v3251
    %v3272 = vmul.f32 %v2877, %v3252
    %v3273 = vadd.f32 %v3271, %v3269
    %v3274 = vadd.f32 %v3272, %v3270
    %vm3275 = vcmp.gt.f32.partialorder %v3273, 0.0
    %vm3276 = vcmp.gt.f32.partialorder %v3274, 0.0
    %v3277 = vmul.f32 %v3273, 0.2
    %v3278 = vmul.f32 %v3274, 0.2
    %v3279 = vsel %vm3275, %v3273, %v3277
    %v3280 = vsel %vm3276, %v3274, %v3278
    %s3281 = smul.u32 4, 32
    %s3282 = smul.u32 %s3281, 1
    %s3283 = sshll.u32 %s3282, 4
    %3284 = dma.done %s167, %s3283
    %v3285 = vpack.c.bf16 %v3279, %v3279
    %v3286 = vpack.c.bf16 %v3280, %v3280
    %v3287 = vld [vmem:[#allocation5] sm:$0xff]
    %v3288 = vld [vmem:[#allocation5 + $0x8] sm:$0xff]
    %v3289 = vld [vmem:[#allocation5 + $0x10] sm:$0xff]
    %v3290 = vld [vmem:[#allocation5 + $0x18] sm:$0xff]
    %v3291 = vld [vmem:[#allocation5 + $0x20] sm:$0xff]
    %v3292 = vld [vmem:[#allocation5 + $0x28] sm:$0xff]
    %v3293 = vld [vmem:[#allocation5 + $0x30] sm:$0xff]
    %v3294 = vld [vmem:[#allocation5 + $0x38] sm:$0xff]
    %v3295 = vld [vmem:[#allocation5 + $0x40] sm:$0xff]
    %v3296 = vld [vmem:[#allocation5 + $0x48] sm:$0xff]
    %v3297 = vld [vmem:[#allocation5 + $0x50] sm:$0xff]
    %v3298 = vld [vmem:[#allocation5 + $0x58] sm:$0xff]
    %v3299 = vld [vmem:[#allocation5 + $0x60] sm:$0xff]
    %v3300 = vld [vmem:[#allocation5 + $0x68] sm:$0xff]
    %v3301 = vld [vmem:[#allocation5 + $0x70] sm:$0xff]
    %v3302 = vld [vmem:[#allocation5 + $0x78] sm:$0xff]
    %3303 = vmatprep.subr.bf16.mxu0 0
    %3304 = vmatpush1.bf16.msra.mxu0 %v3287
    %3305 = vmatprep.subr.bf16.mxu0 0
    %3306 = vmatpush1.bf16.msra.mxu0 %v3288
    %3307 = vmatprep.subr.bf16.mxu0 0
    %3308 = vmatpush1.bf16.msra.mxu0 %v3289
    %3309 = vmatprep.subr.bf16.mxu0 0
    %3310 = vmatpush1.bf16.msra.mxu0 %v3290
    %3311 = vmatprep.subr.bf16.mxu0 0
    %3312 = vmatpush1.bf16.msra.mxu0 %v3291
    %3313 = vmatprep.subr.bf16.mxu0 0
    %3314 = vmatpush1.bf16.msra.mxu0 %v3292
    %3315 = vmatprep.subr.bf16.mxu0 0
    %3316 = vmatpush1.bf16.msra.mxu0 %v3293
    %3317 = vmatprep.subr.bf16.mxu0 0
    %3318 = vmatpush1.bf16.msra.mxu0 %v3294
    %3319 = vmatprep.subr.bf16.mxu0 0
    %3320 = vmatpush1.bf16.msra.mxu0 %v3295
    %3321 = vmatprep.subr.bf16.mxu0 0
    %3322 = vmatpush1.bf16.msra.mxu0 %v3296
    %3323 = vmatprep.subr.bf16.mxu0 0
    %3324 = vmatpush1.bf16.msra.mxu0 %v3297
    %3325 = vmatprep.subr.bf16.mxu0 0
    %3326 = vmatpush1.bf16.msra.mxu0 %v3298
    %3327 = vmatprep.subr.bf16.mxu0 0
    %3328 = vmatpush1.bf16.msra.mxu0 %v3299
    %3329 = vmatprep.subr.bf16.mxu0 0
    %3330 = vmatpush1.bf16.msra.mxu0 %v3300
    %3331 = vmatprep.subr.bf16.mxu0 0
    %3332 = vmatpush1.bf16.msra.mxu0 %v3301
    %3333 = vmatprep.subr.bf16.mxu0 0
    %3334 = vmatpush1.bf16.msra.mxu0 %v3302
    %3335 = vmatprep.mubr.bf16.mxu0 %v3286
    %3336 = vmatmul.mubr.bf16.gmra.mrb[0].mxu0 %v3285
    %v3337 = vpop.f32.mrb[0].mxu0
    %v3338 = vadd.f32 0.0, %v3337
    %v3339 = vpop.f32.mrb[0].mxu0
    %v3340 = vpop.f32.mrb[0].mxu0
    %v3341 = vpop.f32.mrb[0].mxu0
    %3342 = vdwg.mxu0
    %v3343 = vsub.f32 0.0, %v3338
    %v3344 = vmax.f32 %v3343, 0.0
    %v3345 = vand.u32 2147483647, %v3343
    %v3346 = vsub.f32 0.0, %v3345
    %v3347 = vmul.f32 %v3346, 1.442695
    %v3348 = vpow.pop %v3347
    %v3349 = vadd.f32 %v3348, 1.0
    %v3350 = vlog2.pop %v3349
    %v3351 = vmul.f32 %v3350, 0.6931472
    %v3352 = vadd.f32 %v3344, %v3351
    %v3353 = vmin.f32 %v3352, 100.0
    %v3354 = vmax.f32 %v3338, 0.0
    %v3355 = vand.u32 2147483647, %v3338
    %v3356 = vsub.f32 0.0, %v3355
    %v3357 = vmul.f32 %v3356, 1.442695
    %v3358 = vpow.pop %v3357
    %v3359 = vadd.f32 %v3358, 1.0
    %v3360 = vlog2.pop %v3359
    %v3361 = vmul.f32 %v3360, 0.6931472
    %v3362 = vadd.f32 %v3354, %v3361
    %v3363 = vmin.f32 %v3362, 100.0
    %vm3364 = vcmp.lt.s32.totalorder %v331, 2
    %v3365 = vsel %vm3364, 1, 0
    %v3366 = vcvt.s32.f32 %v3365
    %v3367 = vsub.f32 1.0, %v3366
    %v3368 = vmul.f32 %v3353, %v3366
    %vm3369 = vcmask 3072
    %v3370 = vsel %vm3369, %v3368, 0.0
    %v3371 = vrot.slane %v3370, 4
    %v3372 = vadd.f32 %v3370, %v3371
    %v3373 = vrot.slane %v3372, 2
    %v3374 = vadd.f32 %v3372, %v3373
    %v3375 = vrot.slane %v3374, 1
    %v3376 = vadd.f32 %v3374, %v3375
    %v3377 = vmul.f32 %v3376, 0.5
    %v3378 = vmul.f32 %v3363, %v3367
    %v3379 = vsel %vm3369, %v3378, 0.0
    %v3380 = vrot.slane %v3379, 4
    %v3381 = vadd.f32 %v3379, %v3380
    %v3382 = vrot.slane %v3381, 2
    %v3383 = vadd.f32 %v3381, %v3382
    %v3384 = vrot.slane %v3383, 1
    %v3385 = vadd.f32 %v3383, %v3384
    %v3386 = vmul.f32 %v3385, 0.5
    %v3387 = vmul.f32 %v3353, %v3367
    %v3388 = vsel %vm3369, %v3387, 0.0
    %v3389 = vrot.slane %v3388, 4
    %v3390 = vadd.f32 %v3388, %v3389
    %v3391 = vrot.slane %v3390, 2
    %v3392 = vadd.f32 %v3390, %v3391
    %v3393 = vrot.slane %v3392, 1
    %v3394 = vadd.f32 %v3392, %v3393
    %v3395 = vmul.f32 %v3394, 0.5
    %v3396 = vadd.f32 %v3377, %v3386
    %v3397 = vmul.f32 %v3396, 0.5
    %vm3398 = vcmask 0
    %3399 = vst.msk [vmem:[#allocation8] sm:$0x1] %vm3398, %v3397
    %3400 = vst.msk [vmem:[#allocation10] sm:$0x1] %vm3398, %v3395
    // Predicated region
    $region100: #{dcgan_forward.1} parent=1 // pred_check
      _
    $region101: #{dcgan_forward.1} parent=1 // pred_check_branch
      %3402 = sbr.rel (0) target = $region103
    $region102: #{dcgan_forward.1} parent=1 // pred_region
      %s3404 = ssub.s32 16, 16
      %3405 = vsyncadd [#allocation9], %s3404
      %s3407 = sshll.u32 [#allocation8], 4
      %s3408 = int_to_ptr.vmem [resolvable:$true] %s3407
      %3410 = dma.vmem_to_hbm [thread:$0]  %s3408, 16, %s20, [#allocation9]
    $region103: #{dcgan_forward.1} parent=1 // pred_fallthru
      _
    // Predicated region
    $region104: #{dcgan_forward.1} parent=1 // pred_check
      _
    $region105: #{dcgan_forward.1} parent=1 // pred_check_branch
      %3412 = sbr.rel (0) target = $region107
    $region106: #{dcgan_forward.1} parent=1 // pred_region
      %s3414 = ssub.s32 16, 16
      %3415 = vsyncadd [#allocation11], %s3414
      %s3417 = sshll.u32 [#allocation10], 4
      %s3418 = int_to_ptr.vmem [resolvable:$true] %s3417
      %3420 = dma.vmem_to_hbm [thread:$0]  %s3418, 16, %s21, [#allocation11]
    $region107: #{dcgan_forward.1} parent=1 // pred_fallthru
      _
    // Predicated region
    $region108: #{dcgan_forward.1} parent=1 // pred_check
      _
    $region109: #{dcgan_forward.1} parent=1 // pred_check_branch
      %3422 = sbr.rel (0) target = $region111
    $region110: #{dcgan_forward.1} parent=1 // pred_region
      %3423 = dma.done [#allocation9], 16
    $region111: #{dcgan_forward.1} parent=1 // pred_fallthru
      _
    // Predicated region
    $region112: #{dcgan_forward.1} parent=1 // pred_check
      _
    $region113: #{dcgan_forward.1} parent=1 // pred_check_branch
      %3425 = sbr.rel (0) target = $region115
    $region114: #{dcgan_forward.1} parent=1 // pred_region
      %3426 = dma.done [#allocation11], 16
    $region115: #{dcgan_forward.1} parent=1 // pred_fallthru
      _
    %3427 = vsyncpa [#allocation9], 1
    %3428 = vsyncpa [#allocation11], 1
  %3429 = vsyncmov [#allocation7]
  %s3430 = vpop.sfrf %3429
  %p3431 = scmp.eq.s32.totalorder %s3430, 0
  %p3432 = pneg %p3431
  %3434 = shalt.err (%p3432)
  %s3435 = scalar_lea.sflag [#allocation7], 1
  %3436 = vsyncmov %s3435
  %s3437 = vpop.sfrf %3436
  %p3438 = scmp.eq.s32.totalorder %s3437, 0
  %p3439 = pneg %p3438
  %3441 = shalt.err (%p3439)
  %s3442 = scalar_lea.sflag [#allocation7], 2
  %3443 = vsyncmov %s3442
  %s3444 = vpop.sfrf %3443
  %p3445 = scmp.eq.s32.totalorder %s3444, 0
  %p3446 = pneg %p3445
  %3448 = shalt.err (%p3446)
  %s3449 = scalar_lea.sflag [#allocation7], 3
  %3450 = vsyncmov %s3449
  %s3451 = vpop.sfrf %3450
  %p3452 = scmp.eq.s32.totalorder %s3451, 0
  %p3453 = pneg %p3452
  %3455 = shalt.err (%p3453)

</llo_original>
